<compile_context>
chip_gen: v7x
topology: tpu7x:2x2x1
jax: 0.10.0
libtpu: 0.0.40
codegen_flags: <defaults>
</compile_context>

<pallas_src>
import jax
import jax.numpy as jnp
import numpy as np
from jax.experimental import pallas as pl
from jax.experimental.pallas import tpu as pltpu

# ------------------------------------------------------------------ config
DIM_NODE = 16                                  # raw node feature dim
DIM_EDGE = 16                                  # edge feature dim (part of mem_input)
DIM_OUT = 32                                   # memory/gnn dim_out (H)
DIM_TIME = 8                                   # memory_param['dim_time']
DIM_MI = 2 * DIM_OUT + DIM_EDGE                # 80  GRU input before time concat
K_IN = DIM_MI + DIM_TIME                       # 88  fused GRU input width
G3 = 3 * DIM_OUT                               # 96  gate-concat width = slab lane width
LN_EPS = 1e-5

NEG_SAMPLES = 1
NUM_EDGE = 8                                   # edges per MFG block
N_PER_BLOCK = (NEG_SAMPLES + 2) * NUM_EDGE     # 24 src rows per block
NUM_BLOCKS = 64                                # MFG blocks batched per call
BLOCKS_PER_TILE = 8                            # -> 192 rows per grid step (>=128)
ROWS_PER_TILE = BLOCKS_PER_TILE * N_PER_BLOCK  # 192
NUM_TILES = NUM_BLOCKS // BLOCKS_PER_TILE      # 8
assert NUM_BLOCKS % BLOCKS_PER_TILE == 0

# ---- packed activation slab lane offsets
_X_MI = 0                                      # lanes   0: 80  mem_input
_X_MEM = 80                                    # lanes  80:112  mem
_X_H = 112                                     # lanes 112:128  raw node features
_X_TS = 128                                    # lane  128      ts
_X_MTS = 129                                   # lane  129      mem_ts
D_IN = 136                                     # padded lane width

# ---- packed parameter slab row offsets (lane width = G3 = 96)
_R_WIN = 0                                     # (88, 96) GRU input->hidden  [mi | tfeat] rows
_R_WHH = 88                                    # (32, 96) GRU hidden->hidden
_R_WSRC = 120                                  # (32, 32) edge predictor src_fc   (lanes 0:32)
_R_WDST = 152                                  # (32, 32) edge predictor dst_fc   (lanes 0:32)
_R_WMAP = 184                                  # (16, 32) node_feat_map           (lanes 0:32)
_R_BIH = 200                                   # (1, 96) GRU b_ih (r|z|n)
_R_BHH = 201                                   # (1, 96) GRU b_hh (r|z|n)
_R_TW = 202                                    # (1, 8)  TimeEncode freqs
_R_TB = 203                                    # (1, 8)  TimeEncode bias
_R_BMAP = 204                                  # (1, 32)
_R_LNW = 205                                   # (1, 32)
_R_LNB = 206                                   # (1, 32)
_R_BSRC = 207                                  # (1, 32)
_R_BDST = 208                                  # (1, 32)
_R_WOUT = 209                                  # (1, 32) out_fc weight row
_R_BOUT = 210                                  # (1, 96) out_fc bias (broadcast)
W_ROWS = 216                                   # padded to multiple of 8


# ------------------------------------------------------------------ fused kernel
def _fused_kernel(x_ref, w_ref, out_ref):
    H, E, BPT, NPB = DIM_OUT, NUM_EDGE, BLOCKS_PER_TILE, N_PER_BLOCK
    x = x_ref[...]                                                   # (R, 136)

    mi = x[:, _X_MI:_X_MI + DIM_MI]                                  # (R, 80)
    mem = x[:, _X_MEM:_X_MEM + H]                                    # (R, 32)
    h_raw = x[:, _X_H:_X_H + DIM_NODE]                               # (R, 16)
    dt = x[:, _X_TS:_X_TS + 1] - x[:, _X_MTS:_X_MTS + 1]             # (R, 1)

    def vrow(r, n=DIM_OUT):
        return w_ref[r:r + 1, 0:n]                                   # (1, n) broadcast row

    # TimeEncode: cos((ts - mem_ts) * freqs + bias) -> (R, 8)
    tfeat = jnp.cos(dt * vrow(_R_TW, DIM_TIME) + vrow(_R_TB, DIM_TIME))

    # Fused GRU gates: one input->hidden matmul on [mi | tfeat], one hidden->hidden.
    x_in = jnp.concatenate([mi, tfeat], axis=1)                      # (R, 88)
    gi = jnp.dot(x_in, w_ref[_R_WIN:_R_WIN + K_IN, :],
                 preferred_element_type=jnp.float32) + vrow(_R_BIH, G3)
    gh = jnp.dot(mem, w_ref[_R_WHH:_R_WHH + H, :],
                 preferred_element_type=jnp.float32) + vrow(_R_BHH, G3)

    r = jax.nn.sigmoid(gi[:, 0:H] + gh[:, 0:H])
    z = jax.nn.sigmoid(gi[:, H:2 * H] + gh[:, H:2 * H])
    n = jnp.tanh(gi[:, 2 * H:3 * H] + r * gh[:, 2 * H:3 * H])
    upd = (1.0 - z) * n + z * mem                                    # updated memory

    # combine_node_feature (dim_node != dim_out -> add mapped raw node features)
    h_comb = (upd
              + jnp.dot(h_raw, w_ref[_R_WMAP:_R_WMAP + DIM_NODE, 0:H],
                        preferred_element_type=jnp.float32)
              + vrow(_R_BMAP))

    # IdentityNormLayer: LayerNorm over the feature dim
    mu = jnp.mean(h_comb, axis=1, keepdims=True)
    var = jnp.mean(jnp.square(h_comb - mu), axis=1, keepdims=True)
    emb = ((h_comb - mu) * jax.lax.rsqrt(var + LN_EPS)
           * vrow(_R_LNW) + vrow(_R_LNB))                            # (R, 32)

    # EdgePredictor: project ALL rows with two (R,32)x(32,32) matmuls (cheaper than
    # 2*BPT per-block tiny matmuls), then split per block via sublane-aligned slices.
    p_src = jnp.dot(emb, w_ref[_R_WSRC:_R_WSRC + H, 0:H],
                    preferred_element_type=jnp.float32) + vrow(_R_BSRC)
    p_dst = jnp.dot(emb, w_ref[_R_WDST:_R_WDST + H, 0:H],
                    preferred_element_type=jnp.float32) + vrow(_R_BDST)

    ps = p_src.reshape(BPT, NPB, H)
    pd = p_dst.reshape(BPT, NPB, H)
    h_src = ps[:, 0:E, :]                                            # (BPT, 8, 32)
    # TODO(synk): NEG_SAMPLES > 1 would tile h_src over the negative block here.
    act_pos = jnp.maximum(h_src + pd[:, E:2 * E, :], 0.0)
    act_neg = jnp.maximum(h_src + pd[:, 2 * E:3 * E, :], 0.0)

    # out_fc as a VPU lane reduction (no 1-column MXU pass).
    wout = vrow(_R_WOUT)                                             # (1, 32)
    bout = w_ref[_R_BOUT:_R_BOUT + 1, 0:1]                           # (1, 1)
    s_pos = jnp.sum(act_pos * wout, axis=-1) + bout                  # (BPT, 8)
    s_neg = jnp.sum(act_neg * wout, axis=-1) + bout                  # (BPT, 8)

    out_ref[...] = jnp.concatenate([s_pos, s_neg], axis=-1)          # (BPT, 16) lane-dense store


# ------------------------------------------------------------------ wrapper
@jax.jit
def general_model_forward(x_packed, w_slab):
    scores = pl.pallas_call(
        _fused_kernel,
        out_shape=jax.ShapeDtypeStruct((NUM_BLOCKS, 2 * NUM_EDGE), jnp.float32),
        grid_spec=pltpu.PrefetchScalarGridSpec(
            num_scalar_prefetch=0,
            grid=(NUM_TILES,),
            in_specs=[
                pl.BlockSpec((ROWS_PER_TILE, D_IN), lambda b: (b, 0)),
                # constant index_map -> parameter slab DMA'd once, VMEM-resident
                pl.BlockSpec((W_ROWS, G3), lambda b: (0, 0)),
            ],
            out_specs=pl.BlockSpec((BLOCKS_PER_TILE, 2 * NUM_EDGE), lambda b: (b, 0)),
        ),
        compiler_params=pltpu.CompilerParams(
            dimension_semantics=("parallel",)),   # shards block axis across v7x's 2 TCs
    )(x_packed, w_slab)
    pos = scores[:, :NUM_EDGE, None]              # (NUM_BLOCKS, E, 1)
    neg = scores[:, NUM_EDGE:, None]              # (NUM_BLOCKS, E*NEG_SAMPLES, 1)
    return pos, neg


# ------------------------------------------------------------------ producer-level packing
def pack_inputs(inputs):
    """Pack the 5 per-step activations into one lane-padded slab (producer side, outside jit)."""
    n = inputs["ts"].shape[0]
    x = np.zeros((n, D_IN), np.float32)
    x[:, _X_MI:_X_MI + DIM_MI] = np.asarray(inputs["mem_input"])
    x[:, _X_MEM:_X_MEM + DIM_OUT] = np.asarray(inputs["mem"])
    x[:, _X_H:_X_H + DIM_NODE] = np.asarray(inputs["h"])
    x[:, _X_TS] = np.asarray(inputs["ts"])[:, 0]
    x[:, _X_MTS] = np.asarray(inputs["mem_ts"])[:, 0]
    return jnp.asarray(x)


def pack_params(p):
    """Pack all parameters into a single contiguous (W_ROWS, 96) f32 slab (one DMA)."""
    H = DIM_OUT
    w = np.zeros((W_ROWS, G3), np.float32)
    w[_R_WIN:_R_WIN + DIM_MI, :] = np.asarray(p["w_ih_mi"])
    w[_R_WIN + DIM_MI:_R_WIN + K_IN, :] = np.asarray(p["w_ih_t"])
    w[_R_WHH:_R_WHH + H, :] = np.asarray(p["w_hh"])
    w[_R_WSRC:_R_WSRC + H, 0:H] = np.asarray(p["w_src"])
    w[_R_WDST:_R_WDST + H, 0:H] = np.asarray(p["w_dst"])
    w[_R_WMAP:_R_WMAP + DIM_NODE, 0:H] = np.asarray(p["w_map"])
    w[_R_BIH, :] = np.asarray(p["b_ih"])[0]
    w[_R_BHH, :] = np.asarray(p["b_hh"])[0]
    w[_R_TW, 0:DIM_TIME] = np.asarray(p["time_w"])[0]
    w[_R_TB, 0:DIM_TIME] = np.asarray(p["time_b"])[0]
    w[_R_BMAP, 0:H] = np.asarray(p["b_map"])[0]
    w[_R_LNW, 0:H] = np.asarray(p["ln_w"])[0]
    w[_R_LNB, 0:H] = np.asarray(p["ln_b"])[0]
    w[_R_BSRC, 0:H] = np.asarray(p["b_src"])[0]
    w[_R_BDST, 0:H] = np.asarray(p["b_dst"])[0]
    w[_R_WOUT, 0:H] = np.asarray(p["w_out"])[:, 0]
    w[_R_BOUT, :] = float(np.asarray(p["b_out"])[0, 0])
    return jnp.asarray(w)


# ------------------------------------------------------------------ reference (plain JAX)
def reference_forward(inputs, params):
    dt = inputs["ts"] - inputs["mem_ts"]
    tf = jnp.cos(dt * params["time_w"] + params["time_b"])
    gi = inputs["mem_input"] @ params["w_ih_mi"] + tf @ params["w_ih_t"] + params["b_ih"]
    gh = inputs["mem"] @ params["w_hh"] + params["b_hh"]
    H = DIM_OUT
    r = jax.nn.sigmoid(gi[:, :H] + gh[:, :H])
    z = jax.nn.sigmoid(gi[:, H:2 * H] + gh[:, H:2 * H])
    n = jnp.tanh(gi[:, 2 * H:] + r * gh[:, 2 * H:])
    upd = (1 - z) * n + z * inputs["mem"]
    h = upd + inputs["h"] @ params["w_map"] + params["b_map"]
    mu = h.mean(1, keepdims=True)
    var = ((h - mu) ** 2).mean(1, keepdims=True)
    out = (h - mu) / jnp.sqrt(var + LN_EPS) * params["ln_w"] + params["ln_b"]
    E = NUM_EDGE
    out3 = out.reshape(NUM_BLOCKS, N_PER_BLOCK, H)
    h_src = out3[:, :E] @ params["w_src"] + params["b_src"]
    h_pos = out3[:, E:2 * E] @ params["w_dst"] + params["b_dst"]
    h_neg = out3[:, 2 * E:] @ params["w_dst"] + params["b_dst"]
    pos = jnp.maximum(h_src + h_pos, 0.0) @ params["w_out"] + params["b_out"]
    neg = jnp.maximum(h_src + h_neg, 0.0) @ params["w_out"] + params["b_out"]
    return pos, neg                                   # (NUM_BLOCKS, E, 1) each


# ------------------------------------------------------------------ init
def _linear(key, fan_in, fan_out):
    k1, k2 = jax.random.split(key)
    b = 1.0 / np.sqrt(fan_in)
    w = jax.random.uniform(k1, (fan_in, fan_out), jnp.float32, -b, b)
    bias = jax.random.uniform(k2, (1, fan_out), jnp.float32, -b, b)
    return w, bias


def init_params(key):
    ks = jax.random.split(key, 8)
    p = {}
    # TimeEncode: fixed frequency init, zero bias
    p["time_w"] = jnp.asarray(
        (1.0 / 10 ** np.linspace(0, 9, DIM_TIME, dtype=np.float32)).reshape(1, DIM_TIME))
    p["time_b"] = jnp.zeros((1, DIM_TIME), jnp.float32)
    # GRUCell(input = DIM_MI + DIM_TIME, hidden = DIM_OUT); weights stored transposed
    # (in, 3H), gates ordered r|z|n along the columns.
    bnd = 1.0 / np.sqrt(DIM_OUT)
    w_ih = jax.random.uniform(ks[0], (K_IN, 3 * DIM_OUT), jnp.float32, -bnd, bnd)
    p["w_ih_mi"] = w_ih[:DIM_MI]
    p["w_ih_t"] = w_ih[DIM_MI:]
    p["b_ih"] = jax.random.uniform(ks[1], (1, 3 * DIM_OUT), jnp.float32, -bnd, bnd)
    p["w_hh"] = jax.random.uniform(ks[2], (DIM_OUT, 3 * DIM_OUT), jnp.float32, -bnd, bnd)
    p["b_hh"] = jax.random.uniform(ks[3], (1, 3 * DIM_OUT), jnp.float32, -bnd, bnd)
    # node_feat_map: Linear(dim_node -> dim_out)
    p["w_map"], p["b_map"] = _linear(ks[4], DIM_NODE, DIM_OUT)
    # IdentityNormLayer LayerNorm
    p["ln_w"] = jnp.ones((1, DIM_OUT), jnp.float32)
    p["ln_b"] = jnp.zeros((1, DIM_OUT), jnp.float32)
    # EdgePredictor
    p["w_src"], p["b_src"] = _linear(ks[5], DIM_OUT, DIM_OUT)
    p["w_dst"], p["b_dst"] = _linear(ks[6], DIM_OUT, DIM_OUT)
    p["w_out"], p["b_out"] = _linear(ks[7], DIM_OUT, 1)
    return p


def make_inputs(key):
    n = NUM_BLOCKS * N_PER_BLOCK
    ks = jax.random.split(key, 5)
    ts = jax.random.uniform(ks[0], (n, 1), jnp.float32, 5.0, 10.0)
    mem_ts = ts - jax.random.uniform(ks[1], (n, 1), jnp.float32, 0.0, 5.0)
    return {
        "ts": ts,
        "mem_ts": mem_ts,
        "mem_input": jax.random.normal(ks[2], (n, DIM_MI), jnp.float32),
        "mem": jax.random.normal(ks[3], (n, DIM_OUT), jnp.float32),
        "h": jax.random.normal(ks[4], (n, DIM_NODE), jnp.float32),
    }


# ------------------------------------------------------------------ main
if __name__ == "__main__":
    root = jax.random.PRNGKey(0)
    k_in, k_p = jax.random.split(root)
    inputs = make_inputs(k_in)
    params = init_params(k_p)

    # One-time producer-side packing: 1 activation slab + 1 parameter slab (2 DMAs total).
    x_packed = pack_inputs(inputs)
    w_slab = pack_params(params)

    pos, neg = general_model_forward(x_packed, w_slab)
    jax.block_until_ready((pos, neg))

    ref_pos, ref_neg = reference_forward(inputs, params)
    np.testing.assert_allclose(np.asarray(pos), np.asarray(ref_pos), atol=2e-4, rtol=2e-4)
    np.testing.assert_allclose(np.asarray(neg), np.asarray(ref_neg), atol=2e-4, rtol=2e-4)
    assert pos.shape == (NUM_BLOCKS, NUM_EDGE, 1)
    assert neg.shape == (NUM_BLOCKS, NUM_EDGE * NEG_SAMPLES, 1)

    print("KERNEL_OK")
</pallas_src>

<mosaic_0001>
module attributes {stable_mosaic.version = 11 : i64} {
  func.func @_fused_kernel(%arg0: i32, %arg1: memref<192x136xf32, #tpu.memory_space<vmem>>, %arg2: memref<216x96xf32, #tpu.memory_space<vmem>>, %arg3: memref<8x16xf32, #tpu.memory_space<vmem>>) attributes {dimension_semantics = [#tpu.dimension_semantics<parallel>], iteration_bounds = array<i64: 8>, scalar_prefetch = 0 : i64, scratch_operands = 0 : i64, tpu.core_type = #tpu.core_type<tc>, window_params = [{transform_indices = @transform_0, window_bounds = array<i64: 192, 136>}, {pipeline_mode = #tpu.pipeline_mode<synchronous>, transform_indices = @transform_1, window_bounds = array<i64: 216, 96>}, {transform_indices = @transform_2, window_bounds = array<i64: 8, 16>}]} {
    %c0 = arith.constant 0 : index
    %c0_0 = arith.constant 0 : index
    %0 = vector.load %arg1[%c0, %c0_0] : memref<192x136xf32, #tpu.memory_space<vmem>>, vector<192x136xf32>
    %1 = vector.extract_strided_slice %0 {offsets = [0, 0], sizes = [192, 80], strides = [1, 1]} : vector<192x136xf32> to vector<192x80xf32>
    %2 = vector.extract_strided_slice %0 {offsets = [0, 80], sizes = [192, 32], strides = [1, 1]} : vector<192x136xf32> to vector<192x32xf32>
    %3 = vector.extract_strided_slice %0 {offsets = [0, 112], sizes = [192, 16], strides = [1, 1]} : vector<192x136xf32> to vector<192x16xf32>
    %4 = vector.extract_strided_slice %0 {offsets = [0, 128], sizes = [192, 1], strides = [1, 1]} : vector<192x136xf32> to vector<192x1xf32>
    %5 = vector.extract_strided_slice %0 {offsets = [0, 129], sizes = [192, 1], strides = [1, 1]} : vector<192x136xf32> to vector<192x1xf32>
    %6 = arith.subf %4, %5 : vector<192x1xf32>
    %c202 = arith.constant 202 : index
    %c0_1 = arith.constant 0 : index
    %7 = vector.load %arg2[%c202, %c0_1] : memref<216x96xf32, #tpu.memory_space<vmem>>, vector<1x8xf32>
    %8 = vector.broadcast %6 : vector<192x1xf32> to vector<192x8xf32>
    %9 = vector.broadcast %7 : vector<1x8xf32> to vector<192x8xf32>
    %10 = arith.mulf %8, %9 : vector<192x8xf32>
    %c203 = arith.constant 203 : index
    %c0_2 = arith.constant 0 : index
    %11 = vector.load %arg2[%c203, %c0_2] : memref<216x96xf32, #tpu.memory_space<vmem>>, vector<1x8xf32>
    %12 = vector.broadcast %11 : vector<1x8xf32> to vector<192x8xf32>
    %13 = arith.addf %10, %12 : vector<192x8xf32>
    %14 = math.cos %13 : vector<192x8xf32>
    %15 = tpu.concatenate %1, %14 in 1 : vector<192x80xf32>, vector<192x8xf32> -> vector<192x88xf32>
    %c0_3 = arith.constant 0 : index
    %c0_4 = arith.constant 0 : index
    %16 = vector.load %arg2[%c0_3, %c0_4] : memref<216x96xf32, #tpu.memory_space<vmem>>, vector<88x96xf32>
    %cst = arith.constant dense<0.000000e+00> : vector<192x96xf32>
    %17 = tpu.matmul %15, %16, %cst {dimension_numbers = #tpu.dot_dimension_numbers<[1], [0], [0], [1], [0, 0, 1, 1], [], []>} : vector<192x88xf32>, vector<88x96xf32>, vector<192x96xf32> -> vector<192x96xf32>
    %c200 = arith.constant 200 : index
    %c0_5 = arith.constant 0 : index
    %18 = vector.load %arg2[%c200, %c0_5] : memref<216x96xf32, #tpu.memory_space<vmem>>, vector<1x96xf32>
    %19 = vector.broadcast %18 : vector<1x96xf32> to vector<192x96xf32>
    %20 = arith.addf %17, %19 : vector<192x96xf32>
    %c88 = arith.constant 88 : index
    %c0_6 = arith.constant 0 : index
    %21 = vector.load %arg2[%c88, %c0_6] : memref<216x96xf32, #tpu.memory_space<vmem>>, vector<32x96xf32>
    %cst_7 = arith.constant dense<0.000000e+00> : vector<192x96xf32>
    %22 = tpu.matmul %2, %21, %cst_7 {dimension_numbers = #tpu.dot_dimension_numbers<[1], [0], [0], [1], [0, 0, 1, 1], [], []>} : vector<192x32xf32>, vector<32x96xf32>, vector<192x96xf32> -> vector<192x96xf32>
    %c201 = arith.constant 201 : index
    %c0_8 = arith.constant 0 : index
    %23 = vector.load %arg2[%c201, %c0_8] : memref<216x96xf32, #tpu.memory_space<vmem>>, vector<1x96xf32>
    %24 = vector.broadcast %23 : vector<1x96xf32> to vector<192x96xf32>
    %25 = arith.addf %22, %24 : vector<192x96xf32>
    %26 = vector.extract_strided_slice %20 {offsets = [0, 0], sizes = [192, 32], strides = [1, 1]} : vector<192x96xf32> to vector<192x32xf32>
    %27 = vector.extract_strided_slice %25 {offsets = [0, 0], sizes = [192, 32], strides = [1, 1]} : vector<192x96xf32> to vector<192x32xf32>
    %28 = arith.addf %26, %27 : vector<192x32xf32>
    %29 = arith.negf %28 : vector<192x32xf32>
    %30 = math.exp %29 : vector<192x32xf32>
    %cst_9 = arith.constant 1.000000e+00 : f32
    %31 = vector.broadcast %cst_9 : f32 to vector<192x32xf32>
    %32 = arith.addf %31, %30 : vector<192x32xf32>
    %33 = arith.divf %31, %32 : vector<192x32xf32>
    %34 = vector.extract_strided_slice %20 {offsets = [0, 32], sizes = [192, 32], strides = [1, 1]} : vector<192x96xf32> to vector<192x32xf32>
    %35 = vector.extract_strided_slice %25 {offsets = [0, 32], sizes = [192, 32], strides = [1, 1]} : vector<192x96xf32> to vector<192x32xf32>
    %36 = arith.addf %34, %35 : vector<192x32xf32>
    %37 = arith.negf %36 : vector<192x32xf32>
    %38 = math.exp %37 : vector<192x32xf32>
    %cst_10 = arith.constant 1.000000e+00 : f32
    %39 = vector.broadcast %cst_10 : f32 to vector<192x32xf32>
    %40 = arith.addf %39, %38 : vector<192x32xf32>
    %41 = arith.divf %39, %40 : vector<192x32xf32>
    %42 = vector.extract_strided_slice %20 {offsets = [0, 64], sizes = [192, 32], strides = [1, 1]} : vector<192x96xf32> to vector<192x32xf32>
    %43 = vector.extract_strided_slice %25 {offsets = [0, 64], sizes = [192, 32], strides = [1, 1]} : vector<192x96xf32> to vector<192x32xf32>
    %44 = arith.mulf %33, %43 : vector<192x32xf32>
    %45 = arith.addf %42, %44 : vector<192x32xf32>
    %46 = math.tanh %45 : vector<192x32xf32>
    %cst_11 = arith.constant 1.000000e+00 : f32
    %47 = vector.broadcast %cst_11 : f32 to vector<192x32xf32>
    %48 = arith.subf %47, %41 : vector<192x32xf32>
    %49 = arith.mulf %48, %46 : vector<192x32xf32>
    %50 = arith.mulf %41, %2 : vector<192x32xf32>
    %51 = arith.addf %49, %50 : vector<192x32xf32>
    %c184 = arith.constant 184 : index
    %c0_12 = arith.constant 0 : index
    %52 = vector.load %arg2[%c184, %c0_12] : memref<216x96xf32, #tpu.memory_space<vmem>>, vector<16x32xf32>
    %cst_13 = arith.constant dense<0.000000e+00> : vector<192x32xf32>
    %53 = tpu.matmul %3, %52, %cst_13 {dimension_numbers = #tpu.dot_dimension_numbers<[1], [0], [0], [1], [0, 0, 1, 1], [], []>} : vector<192x16xf32>, vector<16x32xf32>, vector<192x32xf32> -> vector<192x32xf32>
    %54 = arith.addf %51, %53 : vector<192x32xf32>
    %c204 = arith.constant 204 : index
    %c0_14 = arith.constant 0 : index
    %55 = vector.load %arg2[%c204, %c0_14] : memref<216x96xf32, #tpu.memory_space<vmem>>, vector<1x32xf32>
    %56 = vector.broadcast %55 : vector<1x32xf32> to vector<192x32xf32>
    %57 = arith.addf %54, %56 : vector<192x32xf32>
    %cst_15 = arith.constant dense<0.000000e+00> : vector<192xf32>
    %58 = vector.multi_reduction <add>, %57, %cst_15 [1] : vector<192x32xf32> to vector<192xf32>
    %59 = vector.shape_cast %58 : vector<192xf32> to vector<192x1xf32>
    %cst_16 = arith.constant 3.200000e+01 : f32
    %60 = vector.broadcast %cst_16 : f32 to vector<192x1xf32>
    %61 = arith.divf %59, %60 : vector<192x1xf32>
    %62 = vector.broadcast %61 : vector<192x1xf32> to vector<192x32xf32>
    %63 = arith.subf %57, %62 : vector<192x32xf32>
    %64 = arith.mulf %63, %63 : vector<192x32xf32>
    %cst_17 = arith.constant dense<0.000000e+00> : vector<192xf32>
    %65 = vector.multi_reduction <add>, %64, %cst_17 [1] : vector<192x32xf32> to vector<192xf32>
    %66 = vector.shape_cast %65 : vector<192xf32> to vector<192x1xf32>
    %cst_18 = arith.constant 3.200000e+01 : f32
    %67 = vector.broadcast %cst_18 : f32 to vector<192x1xf32>
    %68 = arith.divf %66, %67 : vector<192x1xf32>
    %69 = vector.broadcast %61 : vector<192x1xf32> to vector<192x32xf32>
    %70 = arith.subf %57, %69 : vector<192x32xf32>
    %cst_19 = arith.constant 9.99999974E-6 : f32
    %71 = vector.broadcast %cst_19 : f32 to vector<192x1xf32>
    %72 = arith.addf %68, %71 : vector<192x1xf32>
    %73 = math.rsqrt %72 : vector<192x1xf32>
    %74 = vector.broadcast %73 : vector<192x1xf32> to vector<192x32xf32>
    %75 = arith.mulf %70, %74 : vector<192x32xf32>
    %c205 = arith.constant 205 : index
    %c0_20 = arith.constant 0 : index
    %76 = vector.load %arg2[%c205, %c0_20] : memref<216x96xf32, #tpu.memory_space<vmem>>, vector<1x32xf32>
    %77 = vector.broadcast %76 : vector<1x32xf32> to vector<192x32xf32>
    %78 = arith.mulf %75, %77 : vector<192x32xf32>
    %c206 = arith.constant 206 : index
    %c0_21 = arith.constant 0 : index
    %79 = vector.load %arg2[%c206, %c0_21] : memref<216x96xf32, #tpu.memory_space<vmem>>, vector<1x32xf32>
    %80 = vector.broadcast %79 : vector<1x32xf32> to vector<192x32xf32>
    %81 = arith.addf %78, %80 : vector<192x32xf32>
    %c120 = arith.constant 120 : index
    %c0_22 = arith.constant 0 : index
    %82 = vector.load %arg2[%c120, %c0_22] : memref<216x96xf32, #tpu.memory_space<vmem>>, vector<32x32xf32>
    %cst_23 = arith.constant dense<0.000000e+00> : vector<192x32xf32>
    %83 = tpu.matmul %81, %82, %cst_23 {dimension_numbers = #tpu.dot_dimension_numbers<[1], [0], [0], [1], [0, 0, 1, 1], [], []>} : vector<192x32xf32>, vector<32x32xf32>, vector<192x32xf32> -> vector<192x32xf32>
    %c207 = arith.constant 207 : index
    %c0_24 = arith.constant 0 : index
    %84 = vector.load %arg2[%c207, %c0_24] : memref<216x96xf32, #tpu.memory_space<vmem>>, vector<1x32xf32>
    %85 = vector.broadcast %84 : vector<1x32xf32> to vector<192x32xf32>
    %86 = arith.addf %83, %85 : vector<192x32xf32>
    %c152 = arith.constant 152 : index
    %c0_25 = arith.constant 0 : index
    %87 = vector.load %arg2[%c152, %c0_25] : memref<216x96xf32, #tpu.memory_space<vmem>>, vector<32x32xf32>
    %cst_26 = arith.constant dense<0.000000e+00> : vector<192x32xf32>
    %88 = tpu.matmul %81, %87, %cst_26 {dimension_numbers = #tpu.dot_dimension_numbers<[1], [0], [0], [1], [0, 0, 1, 1], [], []>} : vector<192x32xf32>, vector<32x32xf32>, vector<192x32xf32> -> vector<192x32xf32>
    %c208 = arith.constant 208 : index
    %c0_27 = arith.constant 0 : index
    %89 = vector.load %arg2[%c208, %c0_27] : memref<216x96xf32, #tpu.memory_space<vmem>>, vector<1x32xf32>
    %90 = vector.broadcast %89 : vector<1x32xf32> to vector<192x32xf32>
    %91 = arith.addf %88, %90 : vector<192x32xf32>
    %92 = vector.shape_cast %86 : vector<192x32xf32> to vector<8x24x32xf32>
    %93 = vector.shape_cast %91 : vector<192x32xf32> to vector<8x24x32xf32>
    %94 = vector.extract_strided_slice %92 {offsets = [0, 0, 0], sizes = [8, 8, 32], strides = [1, 1, 1]} : vector<8x24x32xf32> to vector<8x8x32xf32>
    %95 = vector.extract_strided_slice %93 {offsets = [0, 8, 0], sizes = [8, 8, 32], strides = [1, 1, 1]} : vector<8x24x32xf32> to vector<8x8x32xf32>
    %96 = arith.addf %94, %95 : vector<8x8x32xf32>
    %cst_28 = arith.constant 0.000000e+00 : f32
    %97 = vector.broadcast %cst_28 : f32 to vector<8x8x32xf32>
    %98 = arith.maximumf %96, %97 : vector<8x8x32xf32>
    %99 = vector.extract_strided_slice %93 {offsets = [0, 16, 0], sizes = [8, 8, 32], strides = [1, 1, 1]} : vector<8x24x32xf32> to vector<8x8x32xf32>
    %100 = arith.addf %94, %99 : vector<8x8x32xf32>
    %cst_29 = arith.constant 0.000000e+00 : f32
    %101 = vector.broadcast %cst_29 : f32 to vector<8x8x32xf32>
    %102 = arith.maximumf %100, %101 : vector<8x8x32xf32>
    %c209 = arith.constant 209 : index
    %c0_30 = arith.constant 0 : index
    %103 = vector.load %arg2[%c209, %c0_30] : memref<216x96xf32, #tpu.memory_space<vmem>>, vector<1x32xf32>
    %c210 = arith.constant 210 : index
    %c0_31 = arith.constant 0 : index
    %104 = vector.load %arg2[%c210, %c0_31] : memref<216x96xf32, #tpu.memory_space<vmem>>, vector<1x1xf32>
    %105 = vector.shape_cast %103 : vector<1x32xf32> to vector<1x1x32xf32>
    %106 = vector.broadcast %105 : vector<1x1x32xf32> to vector<8x8x32xf32>
    %107 = arith.mulf %98, %106 : vector<8x8x32xf32>
    %cst_32 = arith.constant dense<0.000000e+00> : vector<8x8xf32>
    %108 = vector.multi_reduction <add>, %107, %cst_32 [2] : vector<8x8x32xf32> to vector<8x8xf32>
    %109 = vector.broadcast %104 : vector<1x1xf32> to vector<8x8xf32>
    %110 = arith.addf %108, %109 : vector<8x8xf32>
    %111 = vector.shape_cast %103 : vector<1x32xf32> to vector<1x1x32xf32>
    %112 = vector.broadcast %111 : vector<1x1x32xf32> to vector<8x8x32xf32>
    %113 = arith.mulf %102, %112 : vector<8x8x32xf32>
    %cst_33 = arith.constant dense<0.000000e+00> : vector<8x8xf32>
    %114 = vector.multi_reduction <add>, %113, %cst_33 [2] : vector<8x8x32xf32> to vector<8x8xf32>
    %115 = vector.broadcast %104 : vector<1x1xf32> to vector<8x8xf32>
    %116 = arith.addf %114, %115 : vector<8x8xf32>
    %117 = tpu.concatenate %110, %116 in 1 : vector<8x8xf32>, vector<8x8xf32> -> vector<8x16xf32>
    %c0_34 = arith.constant 0 : index
    %c0_35 = arith.constant 0 : index
    %118 = vector.load %arg3[%c0_34, %c0_35] : memref<8x16xf32, #tpu.memory_space<vmem>>, vector<8x16xf32>
    tpu.vector_store %arg3[%c0_34, %c0_35], %117 {strides = array<i32>} : memref<8x16xf32, #tpu.memory_space<vmem>>, vector<8x16xf32>,
    return
  }
  func.func @transform_0(%arg0: i32) -> (i32, i32) {
    %c0_i32 = arith.constant 0 : i32
    %c0_i32_0 = arith.constant 0 : i32
    return %arg0, %c0_i32 : i32, i32
  }
  func.func @transform_1(%arg0: i32) -> (i32, i32) {
    %c0_i32 = arith.constant 0 : i32
    %c0_i32_0 = arith.constant 0 : i32
    %c0_i32_1 = arith.constant 0 : i32
    return %c0_i32, %c0_i32_0 : i32, i32
  }
  func.func @transform_2(%arg0: i32) -> (i32, i32) {
    %c0_i32 = arith.constant 0 : i32
    %c0_i32_0 = arith.constant 0 : i32
    return %arg0, %c0_i32 : i32, i32
  }
}

</mosaic_0001>

<llo_original>
// kernel: general_model_forward.1
$region0: #{general_model_forward.1}
  #allocation0 [shape = 'u32[]', space=smem, size = 0x4, offset = 0x4, fixed_abs, tag = 'smem constant byte address 0x4 - core index']
  #allocation1 [shape = 'u32[144,128]{1,0:T(1,128)}', space=vmem, size = 0x12000, scoped, tag = 'internal scratch']
  %s0 = inlined_call_operand.vmem [shape: f32[1536,136], index: 0, kind: input, shape index: {}]
  %s1 = inlined_call_operand.vmem [shape: f32[216,96], index: 1, kind: input, shape index: {}]
  %s2 = inlined_call_operand.vmem [shape: f32[64,16], index: 2, kind: output, shape index: {}]
  %s3 = sld [smem:[#allocation0]]
  $region41: #{general_model_forward.1} parent=0
    _
  %s5 = ssub.s32 1, %s3
  %s6 = scalar_select 0, %s5, %s3
  loop: start=0, step=1, limit=10
  $region2: #{general_model_forward.1} parent=0 // loop_pre_header
    _
  $region3: #{general_model_forward.1} parent=0 // loop_header
    %s8 = sphi 0, %s12
    %p9 = scmp.ge.s32.totalorder %s8, 10
    %s18 = sphi 0, %s20
    %s21 = sphi 0, %s18
    %s22 = sphi 0, %s21
    %s38 = sphi 0, %s22
    %s42 = sphi 0, %s42
    %s44 = sphi 0, %s42
    %s45 = sphi 0, %s44
    %s59 = sphi 0, %s45
    %s65 = sphi 0, %s67
    %s68 = sphi 0, %s65
    %s69 = sphi 0, %s68
    %s85 = sphi 0, %s69
  $region4: #{general_model_forward.1} parent=0 // loop_header_branch
    %11 = sbr.rel (%p9) target = $region8
  $region5: #{general_model_forward.1} parent=0 // loop_body
    %s13 = ssub.s32 %s8, 1
    %s14 = ssub.s32 %s8, 2
    %s15 = sadd.s32 %s8, 1
    %s16 = ssub.s32 %s8, %s15
    %p17 = scmp.eq.s32.totalorder %s16, 0
    %s19 = sadd.s32 %s18, 1
    %s20 = scalar_select %p17, %s18, %s19
    %p23 = pneg %p17
    %p24 = scmp.eq.s32.totalorder %s8, 7
    %p25 = por %p23, %p24
    %p26 = scmp.ne.s32.totalorder %s18, %s21
    %p27 = scmp.eq.s32.totalorder %s8, 0
    %p28 = por %p26, %p27
    %p29 = scmp.ne.s32.totalorder %s18, %s21
    %p30 = scmp.eq.s32.totalorder %s13, 7
    %p31 = por %p29, %p30
    %p32 = scmp.ne.s32.totalorder %s21, %s22
    %p33 = scmp.eq.s32.totalorder %s13, 0
    %p34 = por %p32, %p33
    %p35 = scmp.ne.s32.totalorder %s21, %s22
    %p36 = scmp.eq.s32.totalorder %s14, 7
    %p37 = por %p35, %p36
    %p39 = scmp.ne.s32.totalorder %s22, %s38
    %p40 = scmp.eq.s32.totalorder %s14, 0
    %p41 = por %p39, %p40
    %s43 = sadd.s32 %s42, 1
    %p46 = scmp.eq.s32.totalorder %s8, 7
    %p47 = scmp.ne.s32.totalorder %s42, %s44
    %p48 = scmp.eq.s32.totalorder %s8, 0
    %p49 = por %p47, %p48
    %p50 = scmp.ne.s32.totalorder %s42, %s44
    %p51 = scmp.eq.s32.totalorder %s13, 7
    %p52 = por %p50, %p51
    %p53 = scmp.ne.s32.totalorder %s44, %s45
    %p54 = scmp.eq.s32.totalorder %s13, 0
    %p55 = por %p53, %p54
    %p56 = scmp.ne.s32.totalorder %s44, %s45
    %p57 = scmp.eq.s32.totalorder %s14, 7
    %p58 = por %p56, %p57
    %p60 = scmp.ne.s32.totalorder %s45, %s59
    %p61 = scmp.eq.s32.totalorder %s14, 0
    %p62 = por %p60, %p61
    %s63 = ssub.s32 %s8, %s15
    %p64 = scmp.eq.s32.totalorder %s63, 0
    %s66 = sadd.s32 %s65, 1
    %s67 = scalar_select %p64, %s65, %s66
    %p70 = pneg %p64
    %p71 = scmp.eq.s32.totalorder %s8, 7
    %p72 = por %p70, %p71
    %p73 = scmp.ne.s32.totalorder %s65, %s68
    %p74 = scmp.eq.s32.totalorder %s8, 0
    %p75 = por %p73, %p74
    %p76 = scmp.ne.s32.totalorder %s65, %s68
    %p77 = scmp.eq.s32.totalorder %s13, 7
    %p78 = por %p76, %p77
    %p79 = scmp.ne.s32.totalorder %s68, %s69
    %p80 = scmp.eq.s32.totalorder %s13, 0
    %p81 = por %p79, %p80
    %p82 = scmp.ne.s32.totalorder %s68, %s69
    %p83 = scmp.eq.s32.totalorder %s14, 7
    %p84 = por %p82, %p83
    %p86 = scmp.ne.s32.totalorder %s69, %s85
    %p87 = scmp.eq.s32.totalorder %s14, 0
    %p88 = por %p86, %p87
    %p89 = scmp.le.s32.totalorder 1, %s8
    %p90 = scmp.lt.s32.totalorder %s8, 9
    %p91 = pnand %p89, %p90
    %p92 = pneg %p91
    // Predicated region
    $region9: #{general_model_forward.1} parent=5 // pred_check
      _
    $region10: #{general_model_forward.1} parent=5 // pred_check_branch
      %94 = sbr.rel (%p91) target = $region12
    $region11: #{general_model_forward.1} parent=5 // pred_region
      %s95 = ssub.s32 %s8, 1
      // Predicated region
      $region13: #{general_model_forward.1} parent=11 // pred_check
        %p96 = pneg %p55
      $region14: #{general_model_forward.1} parent=11 // pred_check_branch
        %98 = sbr.rel (%p96) target = $region16
      $region15: #{general_model_forward.1} parent=11 // pred_region
        _
      $region16: #{general_model_forward.1} parent=11 // pred_fallthru
        _
    $region12: #{general_model_forward.1} parent=5 // pred_fallthru
      _
    %p99 = scmp.lt.s32.totalorder %s8, 8
    // Predicated region
    $region17: #{general_model_forward.1} parent=5 // pred_check
      %p100 = pneg %p99
    $region18: #{general_model_forward.1} parent=5 // pred_check_branch
      %102 = sbr.rel (%p100) target = $region20
    $region19: #{general_model_forward.1} parent=5 // pred_region
      // Predicated region
      $region21: #{general_model_forward.1} parent=19 // pred_check
        %p103 = pneg %p28
      $region22: #{general_model_forward.1} parent=19 // pred_check_branch
        %105 = sbr.rel (%p103) target = $region24
      $region23: #{general_model_forward.1} parent=19 // pred_region
        %s106 = smul.u32 24, %s8
        %p107 = scmp.lt.s32.totalorder %s106, 191
        %s108 = scalar_select %p107, %s106, 191
        %s109 = smul.addr %s108, 2
        %s110 = smul.addr %s109, 8
        %s111 = scalar_lea.vmem %s0, %s110
        %s112 = smul.u32 24, %s8
      $region24: #{general_model_forward.1} parent=19 // pred_fallthru
        _
    $region20: #{general_model_forward.1} parent=5 // pred_fallthru
      _
    %p113 = scmp.le.s32.totalorder 1, %s8
    %p114 = scmp.lt.s32.totalorder %s8, 9
    %p115 = pnand %p113, %p114
    %p116 = pneg %p115
    // Predicated region
    $region25: #{general_model_forward.1} parent=5 // pred_check
      _
    $region26: #{general_model_forward.1} parent=5 // pred_check_branch
      %118 = sbr.rel (%p115) target = $region28
    $region27: #{general_model_forward.1} parent=5 // pred_region
      %s119 = ssub.s32 %s8, 1
      %s120 = smul.u32 24, %s13
      %p121 = scmp.lt.s32.totalorder %s120, 191
      %s122 = scalar_select %p121, %s120, 191
      %s123 = smul.addr %s122, 2
      %s124 = smul.addr %s123, 8
      %s125 = scalar_lea.vmem %s0, %s124
      %p126 = pneg %p34
      %p127 = pneg %p31
      %p128 = pneg %p55
      %p129 = pneg %p52
      %p130 = pneg %p81
      %p131 = pneg %p78
      %p132 = scmp.lt.s32.totalorder %s13, 7
      %s133 = scalar_select %p132, %s13, 7
      %s134 = smul.addr %s133, 8
      %s135 = scalar_lea.vmem %s2, %s134
      %s136 = smul.u32 24, %s13
      %p137 = scmp.lt.s32.totalorder %s136, 191
      %s138 = scalar_select %p137, %s136, 191
      %s139 = smul.addr %s138, 2
      %s140 = smul.addr %s139, 8
      %s141 = scalar_lea.vmem %s0, %s140
      %s142 = smul.u32 24, %s13
      %p143 = scmp.lt.s32.totalorder %s13, 7
      %s144 = scalar_select %p143, %s13, 7
      %s145 = smul.addr %s144, 8
      %s146 = scalar_lea.vmem %s2, %s145
      %v147 = vld [vmem:[%s141] sm:$0xff]
      %v148 = vld [vmem:[%s141 + $0x8] sm:$0xff]
      %v149 = vld [vmem:[%s141 + $0x10] sm:$0xff]
      %v150 = vld [vmem:[%s141 + $0x18] sm:$0xff]
      %v151 = vld [vmem:[%s141 + $0x20] sm:$0xff]
      %v152 = vld [vmem:[%s141 + $0x28] sm:$0xff]
      %v153 = vld [vmem:[%s141 + $0x30] sm:$0xff]
      %v154 = vld [vmem:[%s141 + $0x38] sm:$0xff]
      %v155 = vld [vmem:[%s141 + $0x40] sm:$0xff]
      %v156 = vld [vmem:[%s141 + $0x48] sm:$0xff]
      %v157 = vld [vmem:[%s141 + $0x50] sm:$0xff]
      %v158 = vld [vmem:[%s141 + $0x58] sm:$0xff]
      %v159 = vld [vmem:[%s141 + $0x60] sm:$0xff]
      %v160 = vld [vmem:[%s141 + $0x68] sm:$0xff]
      %v161 = vld [vmem:[%s141 + $0x70] sm:$0xff]
      %v162 = vld [vmem:[%s141 + $0x78] sm:$0xff]
      %v163 = vld [vmem:[%s141 + $0x80] sm:$0xff]
      %v164 = vld [vmem:[%s141 + $0x88] sm:$0xff]
      %v165 = vld [vmem:[%s141 + $0x90] sm:$0xff]
      %v166 = vld [vmem:[%s141 + $0x98] sm:$0xff]
      %v167 = vld [vmem:[%s141 + $0xa0] sm:$0xff]
      %v168 = vld [vmem:[%s141 + $0xa8] sm:$0xff]
      %v169 = vld [vmem:[%s141 + $0xb0] sm:$0xff]
      %v170 = vld [vmem:[%s141 + $0xb8] sm:$0xff]
      %v171 = vld [vmem:[%s141 + $0xc0] sm:$0xff]
      %v172 = vld [vmem:[%s141 + $0xc8] sm:$0xff]
      %v173 = vld [vmem:[%s141 + $0xd0] sm:$0xff]
      %v174 = vld [vmem:[%s141 + $0xd8] sm:$0xff]
      %v175 = vld [vmem:[%s141 + $0xe0] sm:$0xff]
      %v176 = vld [vmem:[%s141 + $0xe8] sm:$0xff]
      %v177 = vld [vmem:[%s141 + $0xf0] sm:$0xff]
      %v178 = vld [vmem:[%s141 + $0xf8] sm:$0xff]
      %v179 = vld [vmem:[%s141 + $0x100] sm:$0xff]
      %v180 = vld [vmem:[%s141 + $0x108] sm:$0xff]
      %v181 = vld [vmem:[%s141 + $0x110] sm:$0xff]
      %v182 = vld [vmem:[%s141 + $0x118] sm:$0xff]
      %v183 = vld [vmem:[%s141 + $0x120] sm:$0xff]
      %v184 = vld [vmem:[%s141 + $0x128] sm:$0xff]
      %v185 = vld [vmem:[%s141 + $0x130] sm:$0xff]
      %v186 = vld [vmem:[%s141 + $0x138] sm:$0xff]
      %v187 = vld [vmem:[%s141 + $0x140] sm:$0xff]
      %v188 = vld [vmem:[%s141 + $0x148] sm:$0xff]
      %v189 = vld [vmem:[%s141 + $0x150] sm:$0xff]
      %v190 = vld [vmem:[%s141 + $0x158] sm:$0xff]
      %v191 = vld [vmem:[%s141 + $0x160] sm:$0xff]
      %v192 = vld [vmem:[%s141 + $0x168] sm:$0xff]
      %v193 = vld [vmem:[%s141 + $0x170] sm:$0xff]
      %v194 = vld [vmem:[%s141 + $0x178] sm:$0xff]
      %219 = vrot.lane.b32.xlu0 %v148, 127
      %v220 = vpop.permute.xlu0 %219
      %221 = vrot.lane.b32.xlu0 %v150, 127
      %v222 = vpop.permute.xlu0 %221
      %223 = vrot.lane.b32.xlu0 %v152, 127
      %v224 = vpop.permute.xlu0 %223
      %225 = vrot.lane.b32.xlu0 %v154, 127
      %v226 = vpop.permute.xlu0 %225
      %227 = vrot.lane.b32.xlu0 %v156, 127
      %v228 = vpop.permute.xlu0 %227
      %229 = vrot.lane.b32.xlu0 %v158, 127
      %v230 = vpop.permute.xlu0 %229
      %231 = vrot.lane.b32.xlu0 %v160, 127
      %v232 = vpop.permute.xlu0 %231
      %233 = vrot.lane.b32.xlu0 %v162, 127
      %v234 = vpop.permute.xlu0 %233
      %235 = vrot.lane.b32.xlu0 %v164, 127
      %v236 = vpop.permute.xlu0 %235
      %237 = vrot.lane.b32.xlu0 %v166, 127
      %v238 = vpop.permute.xlu0 %237
      %239 = vrot.lane.b32.xlu0 %v168, 127
      %v240 = vpop.permute.xlu0 %239
      %241 = vrot.lane.b32.xlu0 %v170, 127
      %v242 = vpop.permute.xlu0 %241
      %243 = vrot.lane.b32.xlu0 %v172, 127
      %v244 = vpop.permute.xlu0 %243
      %245 = vrot.lane.b32.xlu0 %v174, 127
      %v246 = vpop.permute.xlu0 %245
      %247 = vrot.lane.b32.xlu0 %v176, 127
      %v248 = vpop.permute.xlu0 %247
      %249 = vrot.lane.b32.xlu0 %v178, 127
      %v250 = vpop.permute.xlu0 %249
      %251 = vrot.lane.b32.xlu0 %v180, 127
      %v252 = vpop.permute.xlu0 %251
      %253 = vrot.lane.b32.xlu0 %v182, 127
      %v254 = vpop.permute.xlu0 %253
      %255 = vrot.lane.b32.xlu0 %v184, 127
      %v256 = vpop.permute.xlu0 %255
      %257 = vrot.lane.b32.xlu0 %v186, 127
      %v258 = vpop.permute.xlu0 %257
      %259 = vrot.lane.b32.xlu0 %v188, 127
      %v260 = vpop.permute.xlu0 %259
      %261 = vrot.lane.b32.xlu0 %v190, 127
      %v262 = vpop.permute.xlu0 %261
      %263 = vrot.lane.b32.xlu0 %v192, 127
      %v264 = vpop.permute.xlu0 %263
      %265 = vrot.lane.b32.xlu0 %v194, 127
      %v266 = vpop.permute.xlu0 %265
      %v291 = vsub.f32 %v148, %v220
      %v292 = vsub.f32 %v150, %v222
      %v293 = vsub.f32 %v152, %v224
      %v294 = vsub.f32 %v154, %v226
      %v295 = vsub.f32 %v156, %v228
      %v296 = vsub.f32 %v158, %v230
      %v297 = vsub.f32 %v160, %v232
      %v298 = vsub.f32 %v162, %v234
      %v299 = vsub.f32 %v164, %v236
      %v300 = vsub.f32 %v166, %v238
      %v301 = vsub.f32 %v168, %v240
      %v302 = vsub.f32 %v170, %v242
      %v303 = vsub.f32 %v172, %v244
      %v304 = vsub.f32 %v174, %v246
      %v305 = vsub.f32 %v176, %v248
      %v306 = vsub.f32 %v178, %v250
      %v307 = vsub.f32 %v180, %v252
      %v308 = vsub.f32 %v182, %v254
      %v309 = vsub.f32 %v184, %v256
      %v310 = vsub.f32 %v186, %v258
      %v311 = vsub.f32 %v188, %v260
      %v312 = vsub.f32 %v190, %v262
      %v313 = vsub.f32 %v192, %v264
      %v314 = vsub.f32 %v194, %v266
      %v315 = vld [vmem:[%s1 + $0xca] sm:$0x1]
      %317 = vset.pattern.permute.xlu0 0
      %318 = vperm.xlu0 %317, %v291
      %v319 = vpop.permute.xlu0 %318
      %322 = vset.pattern.permute.xlu0 0
      %323 = vperm.xlu0 %322, %v292
      %v324 = vpop.permute.xlu0 %323
      %327 = vset.pattern.permute.xlu0 0
      %328 = vperm.xlu0 %327, %v293
      %v329 = vpop.permute.xlu0 %328
      %332 = vset.pattern.permute.xlu0 0
      %333 = vperm.xlu0 %332, %v294
      %v334 = vpop.permute.xlu0 %333
      %337 = vset.pattern.permute.xlu0 0
      %338 = vperm.xlu0 %337, %v295
      %v339 = vpop.permute.xlu0 %338
      %342 = vset.pattern.permute.xlu0 0
      %343 = vperm.xlu0 %342, %v296
      %v344 = vpop.permute.xlu0 %343
      %347 = vset.pattern.permute.xlu0 0
      %348 = vperm.xlu0 %347, %v297
      %v349 = vpop.permute.xlu0 %348
      %352 = vset.pattern.permute.xlu0 0
      %353 = vperm.xlu0 %352, %v298
      %v354 = vpop.permute.xlu0 %353
      %357 = vset.pattern.permute.xlu0 0
      %358 = vperm.xlu0 %357, %v299
      %v359 = vpop.permute.xlu0 %358
      %362 = vset.pattern.permute.xlu0 0
      %363 = vperm.xlu0 %362, %v300
      %v364 = vpop.permute.xlu0 %363
      %367 = vset.pattern.permute.xlu0 0
      %368 = vperm.xlu0 %367, %v301
      %v369 = vpop.permute.xlu0 %368
      %372 = vset.pattern.permute.xlu0 0
      %373 = vperm.xlu0 %372, %v302
      %v374 = vpop.permute.xlu0 %373
      %377 = vset.pattern.permute.xlu0 0
      %378 = vperm.xlu0 %377, %v303
      %v379 = vpop.permute.xlu0 %378
      %382 = vset.pattern.permute.xlu0 0
      %383 = vperm.xlu0 %382, %v304
      %v384 = vpop.permute.xlu0 %383
      %387 = vset.pattern.permute.xlu0 0
      %388 = vperm.xlu0 %387, %v305
      %v389 = vpop.permute.xlu0 %388
      %392 = vset.pattern.permute.xlu0 0
      %393 = vperm.xlu0 %392, %v306
      %v394 = vpop.permute.xlu0 %393
      %397 = vset.pattern.permute.xlu0 0
      %398 = vperm.xlu0 %397, %v307
      %v399 = vpop.permute.xlu0 %398
      %402 = vset.pattern.permute.xlu0 0
      %403 = vperm.xlu0 %402, %v308
      %v404 = vpop.permute.xlu0 %403
      %407 = vset.pattern.permute.xlu0 0
      %408 = vperm.xlu0 %407, %v309
      %v409 = vpop.permute.xlu0 %408
      %412 = vset.pattern.permute.xlu0 0
      %413 = vperm.xlu0 %412, %v310
      %v414 = vpop.permute.xlu0 %413
      %417 = vset.pattern.permute.xlu0 0
      %418 = vperm.xlu0 %417, %v311
      %v419 = vpop.permute.xlu0 %418
      %422 = vset.pattern.permute.xlu0 0
      %423 = vperm.xlu0 %422, %v312
      %v424 = vpop.permute.xlu0 %423
      %427 = vset.pattern.permute.xlu0 0
      %428 = vperm.xlu0 %427, %v313
      %v429 = vpop.permute.xlu0 %428
      %432 = vset.pattern.permute.xlu0 0
      %433 = vperm.xlu0 %432, %v314
      %v434 = vpop.permute.xlu0 %433
      %v436 = vlaneseq
      %v437 = vshrl.u32 %v436, 7
      %v438 = vsub.s32 0, %v437
      %v439 = vrot.slane %v315, %v438
      %v440 = vmul.f32 %v319, %v439
      %v441 = vmul.f32 %v324, %v439
      %v442 = vmul.f32 %v329, %v439
      %v443 = vmul.f32 %v334, %v439
      %v444 = vmul.f32 %v339, %v439
      %v445 = vmul.f32 %v344, %v439
      %v446 = vmul.f32 %v349, %v439
      %v447 = vmul.f32 %v354, %v439
      %v448 = vmul.f32 %v359, %v439
      %v449 = vmul.f32 %v364, %v439
      %v450 = vmul.f32 %v369, %v439
      %v451 = vmul.f32 %v374, %v439
      %v452 = vmul.f32 %v379, %v439
      %v453 = vmul.f32 %v384, %v439
      %v454 = vmul.f32 %v389, %v439
      %v455 = vmul.f32 %v394, %v439
      %v456 = vmul.f32 %v399, %v439
      %v457 = vmul.f32 %v404, %v439
      %v458 = vmul.f32 %v409, %v439
      %v459 = vmul.f32 %v414, %v439
      %v460 = vmul.f32 %v419, %v439
      %v461 = vmul.f32 %v424, %v439
      %v462 = vmul.f32 %v429, %v439
      %v463 = vmul.f32 %v434, %v439
      %v464 = vld [vmem:[%s1 + $0xcb] sm:$0x1]
      %v465 = vlaneseq
      %v466 = vshrl.u32 %v465, 7
      %v467 = vsub.s32 0, %v466
      %v468 = vrot.slane %v464, %v467
      %v469 = vadd.f32 %v440, %v468
      %v470 = vadd.f32 %v441, %v468
      %v471 = vadd.f32 %v442, %v468
      %v472 = vadd.f32 %v443, %v468
      %v473 = vadd.f32 %v444, %v468
      %v474 = vadd.f32 %v445, %v468
      %v475 = vadd.f32 %v446, %v468
      %v476 = vadd.f32 %v447, %v468
      %v477 = vadd.f32 %v448, %v468
      %v478 = vadd.f32 %v449, %v468
      %v479 = vadd.f32 %v450, %v468
      %v480 = vadd.f32 %v451, %v468
      %v481 = vadd.f32 %v452, %v468
      %v482 = vadd.f32 %v453, %v468
      %v483 = vadd.f32 %v454, %v468
      %v484 = vadd.f32 %v455, %v468
      %v485 = vadd.f32 %v456, %v468
      %v486 = vadd.f32 %v457, %v468
      %v487 = vadd.f32 %v458, %v468
      %v488 = vadd.f32 %v459, %v468
      %v489 = vadd.f32 %v460, %v468
      %v490 = vadd.f32 %v461, %v468
      %v491 = vadd.f32 %v462, %v468
      %v492 = vadd.f32 %v463, %v468
      %v493 = vand.u32 2147483647, %v469
      %vm494 = vcmp.le.f32.partialorder %v493, 0.7853982
      %vm495 = vcmp.lt.s32.totalorder %v469, 0
      %v496 = vand.u32 %v469, 2139095040
      %v497 = vshrl.u32 %v496, 23
      %v498 = vsub.s32 %v497, 127
      %v499 = vand.u32 2147483647, %v469
      %v500 = vand.u32 %v499, 8388607
      %v501 = vor.u32 %v500, 8388608
      %v502 = vsub.s32 0, %v501
      %v503 = vadd.s32 %v498, 1
      %vm504 = vcmp.gt.s32.totalorder %v503, 0
      %v505 = vsel %vm504, %v503, 0
      %v506 = vshrl.u32 %v505, 5
      %v507 = vand.u32 %v505, 31
      %v508 = vsub.s32 32, %v507
      %v509 = vshrl.u32 683565275, %v508
      %v510 = vshll.u32 683565275, %v507
      %v511 = vshrl.u32 2475754826, %v508
      %v512 = vor.u32 %v510, %v511
      %v513 = vshll.u32 2475754826, %v507
      %v514 = vshrl.u32 2131351028, %v508
      %v515 = vor.u32 %v513, %v514
      %v516 = vshll.u32 2131351028, %v507
      %v517 = vshrl.u32 2102212464, %v508
      %v518 = vor.u32 %v516, %v517
      %v519 = vshll.u32 2102212464, %v507
      %v520 = vshrl.u32 920167782, %v508
      %v521 = vor.u32 %v519, %v520
      %v522 = vshll.u32 920167782, %v507
      %v523 = vshrl.u32 1326507024, %v508
      %v524 = vor.u32 %v522, %v523
      %vm525 = vcmp.lt.s32.totalorder %v506, 1
      %vm526 = vcmp.lt.s32.totalorder %v506, 2
      %vm527 = vcmp.lt.s32.totalorder %v506, 3
      %vm528 = vcmp.lt.s32.totalorder %v506, 4
      %v529 = vsel %vm525, %v509, %v512
      %v530 = vsel %vm528, %v518, 2102212464
      %v531 = vsel %vm527, %v515, %v530
      %v532 = vsel %vm526, %v529, %v531
      %v533 = vsel %vm525, %v512, %v515
      %v534 = vsel %vm528, %v521, 920167782
      %v535 = vsel %vm527, %v518, %v534
      %v536 = vsel %vm526, %v533, %v535
      %v537 = vsel %vm525, %v515, %v518
      %v538 = vsel %vm528, %v524, 1326507024
      %v539 = vsel %vm527, %v521, %v538
      %v540 = vsel %vm526, %v537, %v539
      %v541 = vshll.u32 %v501, 8
      %v542 = vmul.u32.u64.compose %v541, %v540
      %v543 = vextract.low.u32 %v542
      %v544 = vextract.high.u32 %v542
      %v545 = vmul.u32.u64.compose %v541, %v536
      %v546 = vextract.low.u32 %v545
      %v547 = vextract.high.u32 %v545
      %v548 = vmul.u32 %v541, %v532
      %v549 = vadd.s32 %v544, %v546
      %vm550 = vc.u32 %v544, %v546
      %v551 = vadd.s32 %v547, 1
      %v552 = vsel %vm550, %v551, %v547
      %v553 = vadd.s32 %v548, %v552
      %v554 = vadd.s32 %v553, 536870912
      %v555 = vshrl.u32 %v554, 30
      %v556 = vshll.u32 %v555, 30
      %v557 = vsub.s32 %v553, %v556
      %vm558 = vcmp.lt.s32.totalorder %v557, 0
      %v559 = vsub.s32 0, %v557
      %v560 = vsel %vm558, %v559, %v557
      %v561 = vclz %v560
      %v562 = vsub.s32 %v561, 2
      %vm563 = vcmp.gt.s32.totalorder 0, %v562
      %v564 = vsel %vm563, 0, %v562
      %v565 = vsub.s32 32, %v564
      %v566 = vshll.u32 %v557, %v564
      %v567 = vshrl.u32 %v549, %v565
      %v568 = vor.u32 %v566, %v567
      %v569 = vsub.s32 4294967266, %v564
      %v570 = vadd.s32 %v569, 127
      %v571 = vshll.u32 %v570, 23
      %v572 = vor.u32 4788187, %v571
      %v573 = vand.u32 2147483647, %v572
      %v575 = vcvt.s32.f32 %v568
      %v576 = vmul.f32 %v575, %v573
      %v577 = vxor.u32 %v576, 2147483648
      %v578 = vsel %vm495, %v577, %v576
      %v579 = vsub.s32 4, %v555
      %v580 = vsel %vm495, %v579, %v555
      %v581 = vsel %vm494, %v469, %v578
      %v582 = vsel %vm494, 0, %v580
      %v583 = vcosq.f32.pop %v581
      %v584 = vsinq.f32.pop %v581
      %vm585 = vweird.f32 %v469
      %v586 = vand.u32 %v582, 3
      %vm587 = vcmp.lt.s32.totalorder %v586, 2
      %vm588 = vcmp.eq.s32.totalorder %v586, 0
      %v589 = vxor.u32 %v584, 2147483648
      %v590 = vsel %vm588, %v583, %v589
      %vm591 = vcmp.eq.s32.totalorder %v586, 2
      %v592 = vxor.u32 %v583, 2147483648
      %v593 = vsel %vm591, %v592, %v584
      %v594 = vsel %vm587, %v590, %v593
      %v595 = vsel %vm585, nan, %v594
      %v596 = vand.u32 2147483647, %v470
      %vm597 = vcmp.le.f32.partialorder %v596, 0.7853982
      %vm598 = vcmp.lt.s32.totalorder %v470, 0
      %v599 = vand.u32 %v470, 2139095040
      %v600 = vshrl.u32 %v599, 23
      %v601 = vsub.s32 %v600, 127
      %v602 = vand.u32 2147483647, %v470
      %v603 = vand.u32 %v602, 8388607
      %v604 = vor.u32 %v603, 8388608
      %v605 = vsub.s32 0, %v604
      %v606 = vadd.s32 %v601, 1
      %vm607 = vcmp.gt.s32.totalorder %v606, 0
      %v608 = vsel %vm607, %v606, 0
      %v609 = vshrl.u32 %v608, 5
      %v610 = vand.u32 %v608, 31
      %v611 = vsub.s32 32, %v610
      %v612 = vshrl.u32 683565275, %v611
      %v613 = vshll.u32 683565275, %v610
      %v614 = vshrl.u32 2475754826, %v611
      %v615 = vor.u32 %v613, %v614
      %v616 = vshll.u32 2475754826, %v610
      %v617 = vshrl.u32 2131351028, %v611
      %v618 = vor.u32 %v616, %v617
      %v619 = vshll.u32 2131351028, %v610
      %v620 = vshrl.u32 2102212464, %v611
      %v621 = vor.u32 %v619, %v620
      %v622 = vshll.u32 2102212464, %v610
      %v623 = vshrl.u32 920167782, %v611
      %v624 = vor.u32 %v622, %v623
      %v625 = vshll.u32 920167782, %v610
      %v626 = vshrl.u32 1326507024, %v611
      %v627 = vor.u32 %v625, %v626
      %vm628 = vcmp.lt.s32.totalorder %v609, 1
      %vm629 = vcmp.lt.s32.totalorder %v609, 2
      %vm630 = vcmp.lt.s32.totalorder %v609, 3
      %vm631 = vcmp.lt.s32.totalorder %v609, 4
      %v632 = vsel %vm628, %v612, %v615
      %v633 = vsel %vm631, %v621, 2102212464
      %v634 = vsel %vm630, %v618, %v633
      %v635 = vsel %vm629, %v632, %v634
      %v636 = vsel %vm628, %v615, %v618
      %v637 = vsel %vm631, %v624, 920167782
      %v638 = vsel %vm630, %v621, %v637
      %v639 = vsel %vm629, %v636, %v638
      %v640 = vsel %vm628, %v618, %v621
      %v641 = vsel %vm631, %v627, 1326507024
      %v642 = vsel %vm630, %v624, %v641
      %v643 = vsel %vm629, %v640, %v642
      %v644 = vshll.u32 %v604, 8
      %v645 = vmul.u32.u64.compose %v644, %v643
      %v646 = vextract.low.u32 %v645
      %v647 = vextract.high.u32 %v645
      %v648 = vmul.u32.u64.compose %v644, %v639
      %v649 = vextract.low.u32 %v648
      %v650 = vextract.high.u32 %v648
      %v651 = vmul.u32 %v644, %v635
      %v652 = vadd.s32 %v647, %v649
      %vm653 = vc.u32 %v647, %v649
      %v654 = vadd.s32 %v650, 1
      %v655 = vsel %vm653, %v654, %v650
      %v656 = vadd.s32 %v651, %v655
      %v657 = vadd.s32 %v656, 536870912
      %v658 = vshrl.u32 %v657, 30
      %v659 = vshll.u32 %v658, 30
      %v660 = vsub.s32 %v656, %v659
      %vm661 = vcmp.lt.s32.totalorder %v660, 0
      %v662 = vsub.s32 0, %v660
      %v663 = vsel %vm661, %v662, %v660
      %v664 = vclz %v663
      %v665 = vsub.s32 %v664, 2
      %vm666 = vcmp.gt.s32.totalorder 0, %v665
      %v667 = vsel %vm666, 0, %v665
      %v668 = vsub.s32 32, %v667
      %v669 = vshll.u32 %v660, %v667
      %v670 = vshrl.u32 %v652, %v668
      %v671 = vor.u32 %v669, %v670
      %v672 = vsub.s32 4294967266, %v667
      %v673 = vadd.s32 %v672, 127
      %v674 = vshll.u32 %v673, 23
      %v675 = vor.u32 4788187, %v674
      %v676 = vand.u32 2147483647, %v675
      %v678 = vcvt.s32.f32 %v671
      %v679 = vmul.f32 %v678, %v676
      %v680 = vxor.u32 %v679, 2147483648
      %v681 = vsel %vm598, %v680, %v679
      %v682 = vsub.s32 4, %v658
      %v683 = vsel %vm598, %v682, %v658
      %v684 = vsel %vm597, %v470, %v681
      %v685 = vsel %vm597, 0, %v683
      %v686 = vcosq.f32.pop %v684
      %v687 = vsinq.f32.pop %v684
      %vm688 = vweird.f32 %v470
      %v689 = vand.u32 %v685, 3
      %vm690 = vcmp.lt.s32.totalorder %v689, 2
      %vm691 = vcmp.eq.s32.totalorder %v689, 0
      %v692 = vxor.u32 %v687, 2147483648
      %v693 = vsel %vm691, %v686, %v692
      %vm694 = vcmp.eq.s32.totalorder %v689, 2
      %v695 = vxor.u32 %v686, 2147483648
      %v696 = vsel %vm694, %v695, %v687
      %v697 = vsel %vm690, %v693, %v696
      %v698 = vsel %vm688, nan, %v697
      %v699 = vand.u32 2147483647, %v471
      %vm700 = vcmp.le.f32.partialorder %v699, 0.7853982
      %vm701 = vcmp.lt.s32.totalorder %v471, 0
      %v702 = vand.u32 %v471, 2139095040
      %v703 = vshrl.u32 %v702, 23
      %v704 = vsub.s32 %v703, 127
      %v705 = vand.u32 2147483647, %v471
      %v706 = vand.u32 %v705, 8388607
      %v707 = vor.u32 %v706, 8388608
      %v708 = vsub.s32 0, %v707
      %v709 = vadd.s32 %v704, 1
      %vm710 = vcmp.gt.s32.totalorder %v709, 0
      %v711 = vsel %vm710, %v709, 0
      %v712 = vshrl.u32 %v711, 5
      %v713 = vand.u32 %v711, 31
      %v714 = vsub.s32 32, %v713
      %v715 = vshrl.u32 683565275, %v714
      %v716 = vshll.u32 683565275, %v713
      %v717 = vshrl.u32 2475754826, %v714
      %v718 = vor.u32 %v716, %v717
      %v719 = vshll.u32 2475754826, %v713
      %v720 = vshrl.u32 2131351028, %v714
      %v721 = vor.u32 %v719, %v720
      %v722 = vshll.u32 2131351028, %v713
      %v723 = vshrl.u32 2102212464, %v714
      %v724 = vor.u32 %v722, %v723
      %v725 = vshll.u32 2102212464, %v713
      %v726 = vshrl.u32 920167782, %v714
      %v727 = vor.u32 %v725, %v726
      %v728 = vshll.u32 920167782, %v713
      %v729 = vshrl.u32 1326507024, %v714
      %v730 = vor.u32 %v728, %v729
      %vm731 = vcmp.lt.s32.totalorder %v712, 1
      %vm732 = vcmp.lt.s32.totalorder %v712, 2
      %vm733 = vcmp.lt.s32.totalorder %v712, 3
      %vm734 = vcmp.lt.s32.totalorder %v712, 4
      %v735 = vsel %vm731, %v715, %v718
      %v736 = vsel %vm734, %v724, 2102212464
      %v737 = vsel %vm733, %v721, %v736
      %v738 = vsel %vm732, %v735, %v737
      %v739 = vsel %vm731, %v718, %v721
      %v740 = vsel %vm734, %v727, 920167782
      %v741 = vsel %vm733, %v724, %v740
      %v742 = vsel %vm732, %v739, %v741
      %v743 = vsel %vm731, %v721, %v724
      %v744 = vsel %vm734, %v730, 1326507024
      %v745 = vsel %vm733, %v727, %v744
      %v746 = vsel %vm732, %v743, %v745
      %v747 = vshll.u32 %v707, 8
      %v748 = vmul.u32.u64.compose %v747, %v746
      %v749 = vextract.low.u32 %v748
      %v750 = vextract.high.u32 %v748
      %v751 = vmul.u32.u64.compose %v747, %v742
      %v752 = vextract.low.u32 %v751
      %v753 = vextract.high.u32 %v751
      %v754 = vmul.u32 %v747, %v738
      %v755 = vadd.s32 %v750, %v752
      %vm756 = vc.u32 %v750, %v752
      %v757 = vadd.s32 %v753, 1
      %v758 = vsel %vm756, %v757, %v753
      %v759 = vadd.s32 %v754, %v758
      %v760 = vadd.s32 %v759, 536870912
      %v761 = vshrl.u32 %v760, 30
      %v762 = vshll.u32 %v761, 30
      %v763 = vsub.s32 %v759, %v762
      %vm764 = vcmp.lt.s32.totalorder %v763, 0
      %v765 = vsub.s32 0, %v763
      %v766 = vsel %vm764, %v765, %v763
      %v767 = vclz %v766
      %v768 = vsub.s32 %v767, 2
      %vm769 = vcmp.gt.s32.totalorder 0, %v768
      %v770 = vsel %vm769, 0, %v768
      %v771 = vsub.s32 32, %v770
      %v772 = vshll.u32 %v763, %v770
      %v773 = vshrl.u32 %v755, %v771
      %v774 = vor.u32 %v772, %v773
      %v775 = vsub.s32 4294967266, %v770
      %v776 = vadd.s32 %v775, 127
      %v777 = vshll.u32 %v776, 23
      %v778 = vor.u32 4788187, %v777
      %v779 = vand.u32 2147483647, %v778
      %v781 = vcvt.s32.f32 %v774
      %v782 = vmul.f32 %v781, %v779
      %v783 = vxor.u32 %v782, 2147483648
      %v784 = vsel %vm701, %v783, %v782
      %v785 = vsub.s32 4, %v761
      %v786 = vsel %vm701, %v785, %v761
      %v787 = vsel %vm700, %v471, %v784
      %v788 = vsel %vm700, 0, %v786
      %v789 = vcosq.f32.pop %v787
      %v790 = vsinq.f32.pop %v787
      %vm791 = vweird.f32 %v471
      %v792 = vand.u32 %v788, 3
      %vm793 = vcmp.lt.s32.totalorder %v792, 2
      %vm794 = vcmp.eq.s32.totalorder %v792, 0
      %v795 = vxor.u32 %v790, 2147483648
      %v796 = vsel %vm794, %v789, %v795
      %vm797 = vcmp.eq.s32.totalorder %v792, 2
      %v798 = vxor.u32 %v789, 2147483648
      %v799 = vsel %vm797, %v798, %v790
      %v800 = vsel %vm793, %v796, %v799
      %v801 = vsel %vm791, nan, %v800
      %v802 = vand.u32 2147483647, %v472
      %vm803 = vcmp.le.f32.partialorder %v802, 0.7853982
      %vm804 = vcmp.lt.s32.totalorder %v472, 0
      %v805 = vand.u32 %v472, 2139095040
      %v806 = vshrl.u32 %v805, 23
      %v807 = vsub.s32 %v806, 127
      %v808 = vand.u32 2147483647, %v472
      %v809 = vand.u32 %v808, 8388607
      %v810 = vor.u32 %v809, 8388608
      %v811 = vsub.s32 0, %v810
      %v812 = vadd.s32 %v807, 1
      %vm813 = vcmp.gt.s32.totalorder %v812, 0
      %v814 = vsel %vm813, %v812, 0
      %v815 = vshrl.u32 %v814, 5
      %v816 = vand.u32 %v814, 31
      %v817 = vsub.s32 32, %v816
      %v818 = vshrl.u32 683565275, %v817
      %v819 = vshll.u32 683565275, %v816
      %v820 = vshrl.u32 2475754826, %v817
      %v821 = vor.u32 %v819, %v820
      %v822 = vshll.u32 2475754826, %v816
      %v823 = vshrl.u32 2131351028, %v817
      %v824 = vor.u32 %v822, %v823
      %v825 = vshll.u32 2131351028, %v816
      %v826 = vshrl.u32 2102212464, %v817
      %v827 = vor.u32 %v825, %v826
      %v828 = vshll.u32 2102212464, %v816
      %v829 = vshrl.u32 920167782, %v817
      %v830 = vor.u32 %v828, %v829
      %v831 = vshll.u32 920167782, %v816
      %v832 = vshrl.u32 1326507024, %v817
      %v833 = vor.u32 %v831, %v832
      %vm834 = vcmp.lt.s32.totalorder %v815, 1
      %vm835 = vcmp.lt.s32.totalorder %v815, 2
      %vm836 = vcmp.lt.s32.totalorder %v815, 3
      %vm837 = vcmp.lt.s32.totalorder %v815, 4
      %v838 = vsel %vm834, %v818, %v821
      %v839 = vsel %vm837, %v827, 2102212464
      %v840 = vsel %vm836, %v824, %v839
      %v841 = vsel %vm835, %v838, %v840
      %v842 = vsel %vm834, %v821, %v824
      %v843 = vsel %vm837, %v830, 920167782
      %v844 = vsel %vm836, %v827, %v843
      %v845 = vsel %vm835, %v842, %v844
      %v846 = vsel %vm834, %v824, %v827
      %v847 = vsel %vm837, %v833, 1326507024
      %v848 = vsel %vm836, %v830, %v847
      %v849 = vsel %vm835, %v846, %v848
      %v850 = vshll.u32 %v810, 8
      %v851 = vmul.u32.u64.compose %v850, %v849
      %v852 = vextract.low.u32 %v851
      %v853 = vextract.high.u32 %v851
      %v854 = vmul.u32.u64.compose %v850, %v845
      %v855 = vextract.low.u32 %v854
      %v856 = vextract.high.u32 %v854
      %v857 = vmul.u32 %v850, %v841
      %v858 = vadd.s32 %v853, %v855
      %vm859 = vc.u32 %v853, %v855
      %v860 = vadd.s32 %v856, 1
      %v861 = vsel %vm859, %v860, %v856
      %v862 = vadd.s32 %v857, %v861
      %v863 = vadd.s32 %v862, 536870912
      %v864 = vshrl.u32 %v863, 30
      %v865 = vshll.u32 %v864, 30
      %v866 = vsub.s32 %v862, %v865
      %vm867 = vcmp.lt.s32.totalorder %v866, 0
      %v868 = vsub.s32 0, %v866
      %v869 = vsel %vm867, %v868, %v866
      %v870 = vclz %v869
      %v871 = vsub.s32 %v870, 2
      %vm872 = vcmp.gt.s32.totalorder 0, %v871
      %v873 = vsel %vm872, 0, %v871
      %v874 = vsub.s32 32, %v873
      %v875 = vshll.u32 %v866, %v873
      %v876 = vshrl.u32 %v858, %v874
      %v877 = vor.u32 %v875, %v876
      %v878 = vsub.s32 4294967266, %v873
      %v879 = vadd.s32 %v878, 127
      %v880 = vshll.u32 %v879, 23
      %v881 = vor.u32 4788187, %v880
      %v882 = vand.u32 2147483647, %v881
      %v884 = vcvt.s32.f32 %v877
      %v885 = vmul.f32 %v884, %v882
      %v886 = vxor.u32 %v885, 2147483648
      %v887 = vsel %vm804, %v886, %v885
      %v888 = vsub.s32 4, %v864
      %v889 = vsel %vm804, %v888, %v864
      %v890 = vsel %vm803, %v472, %v887
      %v891 = vsel %vm803, 0, %v889
      %v892 = vcosq.f32.pop %v890
      %v893 = vsinq.f32.pop %v890
      %vm894 = vweird.f32 %v472
      %v895 = vand.u32 %v891, 3
      %vm896 = vcmp.lt.s32.totalorder %v895, 2
      %vm897 = vcmp.eq.s32.totalorder %v895, 0
      %v898 = vxor.u32 %v893, 2147483648
      %v899 = vsel %vm897, %v892, %v898
      %vm900 = vcmp.eq.s32.totalorder %v895, 2
      %v901 = vxor.u32 %v892, 2147483648
      %v902 = vsel %vm900, %v901, %v893
      %v903 = vsel %vm896, %v899, %v902
      %v904 = vsel %vm894, nan, %v903
      %v905 = vand.u32 2147483647, %v473
      %vm906 = vcmp.le.f32.partialorder %v905, 0.7853982
      %vm907 = vcmp.lt.s32.totalorder %v473, 0
      %v908 = vand.u32 %v473, 2139095040
      %v909 = vshrl.u32 %v908, 23
      %v910 = vsub.s32 %v909, 127
      %v911 = vand.u32 2147483647, %v473
      %v912 = vand.u32 %v911, 8388607
      %v913 = vor.u32 %v912, 8388608
      %v914 = vsub.s32 0, %v913
      %v915 = vadd.s32 %v910, 1
      %vm916 = vcmp.gt.s32.totalorder %v915, 0
      %v917 = vsel %vm916, %v915, 0
      %v918 = vshrl.u32 %v917, 5
      %v919 = vand.u32 %v917, 31
      %v920 = vsub.s32 32, %v919
      %v921 = vshrl.u32 683565275, %v920
      %v922 = vshll.u32 683565275, %v919
      %v923 = vshrl.u32 2475754826, %v920
      %v924 = vor.u32 %v922, %v923
      %v925 = vshll.u32 2475754826, %v919
      %v926 = vshrl.u32 2131351028, %v920
      %v927 = vor.u32 %v925, %v926
      %v928 = vshll.u32 2131351028, %v919
      %v929 = vshrl.u32 2102212464, %v920
      %v930 = vor.u32 %v928, %v929
      %v931 = vshll.u32 2102212464, %v919
      %v932 = vshrl.u32 920167782, %v920
      %v933 = vor.u32 %v931, %v932
      %v934 = vshll.u32 920167782, %v919
      %v935 = vshrl.u32 1326507024, %v920
      %v936 = vor.u32 %v934, %v935
      %vm937 = vcmp.lt.s32.totalorder %v918, 1
      %vm938 = vcmp.lt.s32.totalorder %v918, 2
      %vm939 = vcmp.lt.s32.totalorder %v918, 3
      %vm940 = vcmp.lt.s32.totalorder %v918, 4
      %v941 = vsel %vm937, %v921, %v924
      %v942 = vsel %vm940, %v930, 2102212464
      %v943 = vsel %vm939, %v927, %v942
      %v944 = vsel %vm938, %v941, %v943
      %v945 = vsel %vm937, %v924, %v927
      %v946 = vsel %vm940, %v933, 920167782
      %v947 = vsel %vm939, %v930, %v946
      %v948 = vsel %vm938, %v945, %v947
      %v949 = vsel %vm937, %v927, %v930
      %v950 = vsel %vm940, %v936, 1326507024
      %v951 = vsel %vm939, %v933, %v950
      %v952 = vsel %vm938, %v949, %v951
      %v953 = vshll.u32 %v913, 8
      %v954 = vmul.u32.u64.compose %v953, %v952
      %v955 = vextract.low.u32 %v954
      %v956 = vextract.high.u32 %v954
      %v957 = vmul.u32.u64.compose %v953, %v948
      %v958 = vextract.low.u32 %v957
      %v959 = vextract.high.u32 %v957
      %v960 = vmul.u32 %v953, %v944
      %v961 = vadd.s32 %v956, %v958
      %vm962 = vc.u32 %v956, %v958
      %v963 = vadd.s32 %v959, 1
      %v964 = vsel %vm962, %v963, %v959
      %v965 = vadd.s32 %v960, %v964
      %v966 = vadd.s32 %v965, 536870912
      %v967 = vshrl.u32 %v966, 30
      %v968 = vshll.u32 %v967, 30
      %v969 = vsub.s32 %v965, %v968
      %vm970 = vcmp.lt.s32.totalorder %v969, 0
      %v971 = vsub.s32 0, %v969
      %v972 = vsel %vm970, %v971, %v969
      %v973 = vclz %v972
      %v974 = vsub.s32 %v973, 2
      %vm975 = vcmp.gt.s32.totalorder 0, %v974
      %v976 = vsel %vm975, 0, %v974
      %v977 = vsub.s32 32, %v976
      %v978 = vshll.u32 %v969, %v976
      %v979 = vshrl.u32 %v961, %v977
      %v980 = vor.u32 %v978, %v979
      %v981 = vsub.s32 4294967266, %v976
      %v982 = vadd.s32 %v981, 127
      %v983 = vshll.u32 %v982, 23
      %v984 = vor.u32 4788187, %v983
      %v985 = vand.u32 2147483647, %v984
      %v987 = vcvt.s32.f32 %v980
      %v988 = vmul.f32 %v987, %v985
      %v989 = vxor.u32 %v988, 2147483648
      %v990 = vsel %vm907, %v989, %v988
      %v991 = vsub.s32 4, %v967
      %v992 = vsel %vm907, %v991, %v967
      %v993 = vsel %vm906, %v473, %v990
      %v994 = vsel %vm906, 0, %v992
      %v995 = vcosq.f32.pop %v993
      %v996 = vsinq.f32.pop %v993
      %vm997 = vweird.f32 %v473
      %v998 = vand.u32 %v994, 3
      %vm999 = vcmp.lt.s32.totalorder %v998, 2
      %vm1000 = vcmp.eq.s32.totalorder %v998, 0
      %v1001 = vxor.u32 %v996, 2147483648
      %v1002 = vsel %vm1000, %v995, %v1001
      %vm1003 = vcmp.eq.s32.totalorder %v998, 2
      %v1004 = vxor.u32 %v995, 2147483648
      %v1005 = vsel %vm1003, %v1004, %v996
      %v1006 = vsel %vm999, %v1002, %v1005
      %v1007 = vsel %vm997, nan, %v1006
      %v1008 = vand.u32 2147483647, %v474
      %vm1009 = vcmp.le.f32.partialorder %v1008, 0.7853982
      %vm1010 = vcmp.lt.s32.totalorder %v474, 0
      %v1011 = vand.u32 %v474, 2139095040
      %v1012 = vshrl.u32 %v1011, 23
      %v1013 = vsub.s32 %v1012, 127
      %v1014 = vand.u32 2147483647, %v474
      %v1015 = vand.u32 %v1014, 8388607
      %v1016 = vor.u32 %v1015, 8388608
      %v1017 = vsub.s32 0, %v1016
      %v1018 = vadd.s32 %v1013, 1
      %vm1019 = vcmp.gt.s32.totalorder %v1018, 0
      %v1020 = vsel %vm1019, %v1018, 0
      %v1021 = vshrl.u32 %v1020, 5
      %v1022 = vand.u32 %v1020, 31
      %v1023 = vsub.s32 32, %v1022
      %v1024 = vshrl.u32 683565275, %v1023
      %v1025 = vshll.u32 683565275, %v1022
      %v1026 = vshrl.u32 2475754826, %v1023
      %v1027 = vor.u32 %v1025, %v1026
      %v1028 = vshll.u32 2475754826, %v1022
      %v1029 = vshrl.u32 2131351028, %v1023
      %v1030 = vor.u32 %v1028, %v1029
      %v1031 = vshll.u32 2131351028, %v1022
      %v1032 = vshrl.u32 2102212464, %v1023
      %v1033 = vor.u32 %v1031, %v1032
      %v1034 = vshll.u32 2102212464, %v1022
      %v1035 = vshrl.u32 920167782, %v1023
      %v1036 = vor.u32 %v1034, %v1035
      %v1037 = vshll.u32 920167782, %v1022
      %v1038 = vshrl.u32 1326507024, %v1023
      %v1039 = vor.u32 %v1037, %v1038
      %vm1040 = vcmp.lt.s32.totalorder %v1021, 1
      %vm1041 = vcmp.lt.s32.totalorder %v1021, 2
      %vm1042 = vcmp.lt.s32.totalorder %v1021, 3
      %vm1043 = vcmp.lt.s32.totalorder %v1021, 4
      %v1044 = vsel %vm1040, %v1024, %v1027
      %v1045 = vsel %vm1043, %v1033, 2102212464
      %v1046 = vsel %vm1042, %v1030, %v1045
      %v1047 = vsel %vm1041, %v1044, %v1046
      %v1048 = vsel %vm1040, %v1027, %v1030
      %v1049 = vsel %vm1043, %v1036, 920167782
      %v1050 = vsel %vm1042, %v1033, %v1049
      %v1051 = vsel %vm1041, %v1048, %v1050
      %v1052 = vsel %vm1040, %v1030, %v1033
      %v1053 = vsel %vm1043, %v1039, 1326507024
      %v1054 = vsel %vm1042, %v1036, %v1053
      %v1055 = vsel %vm1041, %v1052, %v1054
      %v1056 = vshll.u32 %v1016, 8
      %v1057 = vmul.u32.u64.compose %v1056, %v1055
      %v1058 = vextract.low.u32 %v1057
      %v1059 = vextract.high.u32 %v1057
      %v1060 = vmul.u32.u64.compose %v1056, %v1051
      %v1061 = vextract.low.u32 %v1060
      %v1062 = vextract.high.u32 %v1060
      %v1063 = vmul.u32 %v1056, %v1047
      %v1064 = vadd.s32 %v1059, %v1061
      %vm1065 = vc.u32 %v1059, %v1061
      %v1066 = vadd.s32 %v1062, 1
      %v1067 = vsel %vm1065, %v1066, %v1062
      %v1068 = vadd.s32 %v1063, %v1067
      %v1069 = vadd.s32 %v1068, 536870912
      %v1070 = vshrl.u32 %v1069, 30
      %v1071 = vshll.u32 %v1070, 30
      %v1072 = vsub.s32 %v1068, %v1071
      %vm1073 = vcmp.lt.s32.totalorder %v1072, 0
      %v1074 = vsub.s32 0, %v1072
      %v1075 = vsel %vm1073, %v1074, %v1072
      %v1076 = vclz %v1075
      %v1077 = vsub.s32 %v1076, 2
      %vm1078 = vcmp.gt.s32.totalorder 0, %v1077
      %v1079 = vsel %vm1078, 0, %v1077
      %v1080 = vsub.s32 32, %v1079
      %v1081 = vshll.u32 %v1072, %v1079
      %v1082 = vshrl.u32 %v1064, %v1080
      %v1083 = vor.u32 %v1081, %v1082
      %v1084 = vsub.s32 4294967266, %v1079
      %v1085 = vadd.s32 %v1084, 127
      %v1086 = vshll.u32 %v1085, 23
      %v1087 = vor.u32 4788187, %v1086
      %v1088 = vand.u32 2147483647, %v1087
      %v1090 = vcvt.s32.f32 %v1083
      %v1091 = vmul.f32 %v1090, %v1088
      %v1092 = vxor.u32 %v1091, 2147483648
      %v1093 = vsel %vm1010, %v1092, %v1091
      %v1094 = vsub.s32 4, %v1070
      %v1095 = vsel %vm1010, %v1094, %v1070
      %v1096 = vsel %vm1009, %v474, %v1093
      %v1097 = vsel %vm1009, 0, %v1095
      %v1098 = vcosq.f32.pop %v1096
      %v1099 = vsinq.f32.pop %v1096
      %vm1100 = vweird.f32 %v474
      %v1101 = vand.u32 %v1097, 3
      %vm1102 = vcmp.lt.s32.totalorder %v1101, 2
      %vm1103 = vcmp.eq.s32.totalorder %v1101, 0
      %v1104 = vxor.u32 %v1099, 2147483648
      %v1105 = vsel %vm1103, %v1098, %v1104
      %vm1106 = vcmp.eq.s32.totalorder %v1101, 2
      %v1107 = vxor.u32 %v1098, 2147483648
      %v1108 = vsel %vm1106, %v1107, %v1099
      %v1109 = vsel %vm1102, %v1105, %v1108
      %v1110 = vsel %vm1100, nan, %v1109
      %v1111 = vand.u32 2147483647, %v475
      %vm1112 = vcmp.le.f32.partialorder %v1111, 0.7853982
      %vm1113 = vcmp.lt.s32.totalorder %v475, 0
      %v1114 = vand.u32 %v475, 2139095040
      %v1115 = vshrl.u32 %v1114, 23
      %v1116 = vsub.s32 %v1115, 127
      %v1117 = vand.u32 2147483647, %v475
      %v1118 = vand.u32 %v1117, 8388607
      %v1119 = vor.u32 %v1118, 8388608
      %v1120 = vsub.s32 0, %v1119
      %v1121 = vadd.s32 %v1116, 1
      %vm1122 = vcmp.gt.s32.totalorder %v1121, 0
      %v1123 = vsel %vm1122, %v1121, 0
      %v1124 = vshrl.u32 %v1123, 5
      %v1125 = vand.u32 %v1123, 31
      %v1126 = vsub.s32 32, %v1125
      %v1127 = vshrl.u32 683565275, %v1126
      %v1128 = vshll.u32 683565275, %v1125
      %v1129 = vshrl.u32 2475754826, %v1126
      %v1130 = vor.u32 %v1128, %v1129
      %v1131 = vshll.u32 2475754826, %v1125
      %v1132 = vshrl.u32 2131351028, %v1126
      %v1133 = vor.u32 %v1131, %v1132
      %v1134 = vshll.u32 2131351028, %v1125
      %v1135 = vshrl.u32 2102212464, %v1126
      %v1136 = vor.u32 %v1134, %v1135
      %v1137 = vshll.u32 2102212464, %v1125
      %v1138 = vshrl.u32 920167782, %v1126
      %v1139 = vor.u32 %v1137, %v1138
      %v1140 = vshll.u32 920167782, %v1125
      %v1141 = vshrl.u32 1326507024, %v1126
      %v1142 = vor.u32 %v1140, %v1141
      %vm1143 = vcmp.lt.s32.totalorder %v1124, 1
      %vm1144 = vcmp.lt.s32.totalorder %v1124, 2
      %vm1145 = vcmp.lt.s32.totalorder %v1124, 3
      %vm1146 = vcmp.lt.s32.totalorder %v1124, 4
      %v1147 = vsel %vm1143, %v1127, %v1130
      %v1148 = vsel %vm1146, %v1136, 2102212464
      %v1149 = vsel %vm1145, %v1133, %v1148
      %v1150 = vsel %vm1144, %v1147, %v1149
      %v1151 = vsel %vm1143, %v1130, %v1133
      %v1152 = vsel %vm1146, %v1139, 920167782
      %v1153 = vsel %vm1145, %v1136, %v1152
      %v1154 = vsel %vm1144, %v1151, %v1153
      %v1155 = vsel %vm1143, %v1133, %v1136
      %v1156 = vsel %vm1146, %v1142, 1326507024
      %v1157 = vsel %vm1145, %v1139, %v1156
      %v1158 = vsel %vm1144, %v1155, %v1157
      %v1159 = vshll.u32 %v1119, 8
      %v1160 = vmul.u32.u64.compose %v1159, %v1158
      %v1161 = vextract.low.u32 %v1160
      %v1162 = vextract.high.u32 %v1160
      %v1163 = vmul.u32.u64.compose %v1159, %v1154
      %v1164 = vextract.low.u32 %v1163
      %v1165 = vextract.high.u32 %v1163
      %v1166 = vmul.u32 %v1159, %v1150
      %v1167 = vadd.s32 %v1162, %v1164
      %vm1168 = vc.u32 %v1162, %v1164
      %v1169 = vadd.s32 %v1165, 1
      %v1170 = vsel %vm1168, %v1169, %v1165
      %v1171 = vadd.s32 %v1166, %v1170
      %v1172 = vadd.s32 %v1171, 536870912
      %v1173 = vshrl.u32 %v1172, 30
      %v1174 = vshll.u32 %v1173, 30
      %v1175 = vsub.s32 %v1171, %v1174
      %vm1176 = vcmp.lt.s32.totalorder %v1175, 0
      %v1177 = vsub.s32 0, %v1175
      %v1178 = vsel %vm1176, %v1177, %v1175
      %v1179 = vclz %v1178
      %v1180 = vsub.s32 %v1179, 2
      %vm1181 = vcmp.gt.s32.totalorder 0, %v1180
      %v1182 = vsel %vm1181, 0, %v1180
      %v1183 = vsub.s32 32, %v1182
      %v1184 = vshll.u32 %v1175, %v1182
      %v1185 = vshrl.u32 %v1167, %v1183
      %v1186 = vor.u32 %v1184, %v1185
      %v1187 = vsub.s32 4294967266, %v1182
      %v1188 = vadd.s32 %v1187, 127
      %v1189 = vshll.u32 %v1188, 23
      %v1190 = vor.u32 4788187, %v1189
      %v1191 = vand.u32 2147483647, %v1190
      %v1193 = vcvt.s32.f32 %v1186
      %v1194 = vmul.f32 %v1193, %v1191
      %v1195 = vxor.u32 %v1194, 2147483648
      %v1196 = vsel %vm1113, %v1195, %v1194
      %v1197 = vsub.s32 4, %v1173
      %v1198 = vsel %vm1113, %v1197, %v1173
      %v1199 = vsel %vm1112, %v475, %v1196
      %v1200 = vsel %vm1112, 0, %v1198
      %v1201 = vcosq.f32.pop %v1199
      %v1202 = vsinq.f32.pop %v1199
      %vm1203 = vweird.f32 %v475
      %v1204 = vand.u32 %v1200, 3
      %vm1205 = vcmp.lt.s32.totalorder %v1204, 2
      %vm1206 = vcmp.eq.s32.totalorder %v1204, 0
      %v1207 = vxor.u32 %v1202, 2147483648
      %v1208 = vsel %vm1206, %v1201, %v1207
      %vm1209 = vcmp.eq.s32.totalorder %v1204, 2
      %v1210 = vxor.u32 %v1201, 2147483648
      %v1211 = vsel %vm1209, %v1210, %v1202
      %v1212 = vsel %vm1205, %v1208, %v1211
      %v1213 = vsel %vm1203, nan, %v1212
      %v1214 = vand.u32 2147483647, %v476
      %vm1215 = vcmp.le.f32.partialorder %v1214, 0.7853982
      %vm1216 = vcmp.lt.s32.totalorder %v476, 0
      %v1217 = vand.u32 %v476, 2139095040
      %v1218 = vshrl.u32 %v1217, 23
      %v1219 = vsub.s32 %v1218, 127
      %v1220 = vand.u32 2147483647, %v476
      %v1221 = vand.u32 %v1220, 8388607
      %v1222 = vor.u32 %v1221, 8388608
      %v1223 = vsub.s32 0, %v1222
      %v1224 = vadd.s32 %v1219, 1
      %vm1225 = vcmp.gt.s32.totalorder %v1224, 0
      %v1226 = vsel %vm1225, %v1224, 0
      %v1227 = vshrl.u32 %v1226, 5
      %v1228 = vand.u32 %v1226, 31
      %v1229 = vsub.s32 32, %v1228
      %v1230 = vshrl.u32 683565275, %v1229
      %v1231 = vshll.u32 683565275, %v1228
      %v1232 = vshrl.u32 2475754826, %v1229
      %v1233 = vor.u32 %v1231, %v1232
      %v1234 = vshll.u32 2475754826, %v1228
      %v1235 = vshrl.u32 2131351028, %v1229
      %v1236 = vor.u32 %v1234, %v1235
      %v1237 = vshll.u32 2131351028, %v1228
      %v1238 = vshrl.u32 2102212464, %v1229
      %v1239 = vor.u32 %v1237, %v1238
      %v1240 = vshll.u32 2102212464, %v1228
      %v1241 = vshrl.u32 920167782, %v1229
      %v1242 = vor.u32 %v1240, %v1241
      %v1243 = vshll.u32 920167782, %v1228
      %v1244 = vshrl.u32 1326507024, %v1229
      %v1245 = vor.u32 %v1243, %v1244
      %vm1246 = vcmp.lt.s32.totalorder %v1227, 1
      %vm1247 = vcmp.lt.s32.totalorder %v1227, 2
      %vm1248 = vcmp.lt.s32.totalorder %v1227, 3
      %vm1249 = vcmp.lt.s32.totalorder %v1227, 4
      %v1250 = vsel %vm1246, %v1230, %v1233
      %v1251 = vsel %vm1249, %v1239, 2102212464
      %v1252 = vsel %vm1248, %v1236, %v1251
      %v1253 = vsel %vm1247, %v1250, %v1252
      %v1254 = vsel %vm1246, %v1233, %v1236
      %v1255 = vsel %vm1249, %v1242, 920167782
      %v1256 = vsel %vm1248, %v1239, %v1255
      %v1257 = vsel %vm1247, %v1254, %v1256
      %v1258 = vsel %vm1246, %v1236, %v1239
      %v1259 = vsel %vm1249, %v1245, 1326507024
      %v1260 = vsel %vm1248, %v1242, %v1259
      %v1261 = vsel %vm1247, %v1258, %v1260
      %v1262 = vshll.u32 %v1222, 8
      %v1263 = vmul.u32.u64.compose %v1262, %v1261
      %v1264 = vextract.low.u32 %v1263
      %v1265 = vextract.high.u32 %v1263
      %v1266 = vmul.u32.u64.compose %v1262, %v1257
      %v1267 = vextract.low.u32 %v1266
      %v1268 = vextract.high.u32 %v1266
      %v1269 = vmul.u32 %v1262, %v1253
      %v1270 = vadd.s32 %v1265, %v1267
      %vm1271 = vc.u32 %v1265, %v1267
      %v1272 = vadd.s32 %v1268, 1
      %v1273 = vsel %vm1271, %v1272, %v1268
      %v1274 = vadd.s32 %v1269, %v1273
      %v1275 = vadd.s32 %v1274, 536870912
      %v1276 = vshrl.u32 %v1275, 30
      %v1277 = vshll.u32 %v1276, 30
      %v1278 = vsub.s32 %v1274, %v1277
      %vm1279 = vcmp.lt.s32.totalorder %v1278, 0
      %v1280 = vsub.s32 0, %v1278
      %v1281 = vsel %vm1279, %v1280, %v1278
      %v1282 = vclz %v1281
      %v1283 = vsub.s32 %v1282, 2
      %vm1284 = vcmp.gt.s32.totalorder 0, %v1283
      %v1285 = vsel %vm1284, 0, %v1283
      %v1286 = vsub.s32 32, %v1285
      %v1287 = vshll.u32 %v1278, %v1285
      %v1288 = vshrl.u32 %v1270, %v1286
      %v1289 = vor.u32 %v1287, %v1288
      %v1290 = vsub.s32 4294967266, %v1285
      %v1291 = vadd.s32 %v1290, 127
      %v1292 = vshll.u32 %v1291, 23
      %v1293 = vor.u32 4788187, %v1292
      %v1294 = vand.u32 2147483647, %v1293
      %v1296 = vcvt.s32.f32 %v1289
      %v1297 = vmul.f32 %v1296, %v1294
      %v1298 = vxor.u32 %v1297, 2147483648
      %v1299 = vsel %vm1216, %v1298, %v1297
      %v1300 = vsub.s32 4, %v1276
      %v1301 = vsel %vm1216, %v1300, %v1276
      %v1302 = vsel %vm1215, %v476, %v1299
      %v1303 = vsel %vm1215, 0, %v1301
      %v1304 = vcosq.f32.pop %v1302
      %v1305 = vsinq.f32.pop %v1302
      %vm1306 = vweird.f32 %v476
      %v1307 = vand.u32 %v1303, 3
      %vm1308 = vcmp.lt.s32.totalorder %v1307, 2
      %vm1309 = vcmp.eq.s32.totalorder %v1307, 0
      %v1310 = vxor.u32 %v1305, 2147483648
      %v1311 = vsel %vm1309, %v1304, %v1310
      %vm1312 = vcmp.eq.s32.totalorder %v1307, 2
      %v1313 = vxor.u32 %v1304, 2147483648
      %v1314 = vsel %vm1312, %v1313, %v1305
      %v1315 = vsel %vm1308, %v1311, %v1314
      %v1316 = vsel %vm1306, nan, %v1315
      %v1317 = vand.u32 2147483647, %v477
      %vm1318 = vcmp.le.f32.partialorder %v1317, 0.7853982
      %vm1319 = vcmp.lt.s32.totalorder %v477, 0
      %v1320 = vand.u32 %v477, 2139095040
      %v1321 = vshrl.u32 %v1320, 23
      %v1322 = vsub.s32 %v1321, 127
      %v1323 = vand.u32 2147483647, %v477
      %v1324 = vand.u32 %v1323, 8388607
      %v1325 = vor.u32 %v1324, 8388608
      %v1326 = vsub.s32 0, %v1325
      %v1327 = vadd.s32 %v1322, 1
      %vm1328 = vcmp.gt.s32.totalorder %v1327, 0
      %v1329 = vsel %vm1328, %v1327, 0
      %v1330 = vshrl.u32 %v1329, 5
      %v1331 = vand.u32 %v1329, 31
      %v1332 = vsub.s32 32, %v1331
      %v1333 = vshrl.u32 683565275, %v1332
      %v1334 = vshll.u32 683565275, %v1331
      %v1335 = vshrl.u32 2475754826, %v1332
      %v1336 = vor.u32 %v1334, %v1335
      %v1337 = vshll.u32 2475754826, %v1331
      %v1338 = vshrl.u32 2131351028, %v1332
      %v1339 = vor.u32 %v1337, %v1338
      %v1340 = vshll.u32 2131351028, %v1331
      %v1341 = vshrl.u32 2102212464, %v1332
      %v1342 = vor.u32 %v1340, %v1341
      %v1343 = vshll.u32 2102212464, %v1331
      %v1344 = vshrl.u32 920167782, %v1332
      %v1345 = vor.u32 %v1343, %v1344
      %v1346 = vshll.u32 920167782, %v1331
      %v1347 = vshrl.u32 1326507024, %v1332
      %v1348 = vor.u32 %v1346, %v1347
      %vm1349 = vcmp.lt.s32.totalorder %v1330, 1
      %vm1350 = vcmp.lt.s32.totalorder %v1330, 2
      %vm1351 = vcmp.lt.s32.totalorder %v1330, 3
      %vm1352 = vcmp.lt.s32.totalorder %v1330, 4
      %v1353 = vsel %vm1349, %v1333, %v1336
      %v1354 = vsel %vm1352, %v1342, 2102212464
      %v1355 = vsel %vm1351, %v1339, %v1354
      %v1356 = vsel %vm1350, %v1353, %v1355
      %v1357 = vsel %vm1349, %v1336, %v1339
      %v1358 = vsel %vm1352, %v1345, 920167782
      %v1359 = vsel %vm1351, %v1342, %v1358
      %v1360 = vsel %vm1350, %v1357, %v1359
      %v1361 = vsel %vm1349, %v1339, %v1342
      %v1362 = vsel %vm1352, %v1348, 1326507024
      %v1363 = vsel %vm1351, %v1345, %v1362
      %v1364 = vsel %vm1350, %v1361, %v1363
      %v1365 = vshll.u32 %v1325, 8
      %v1366 = vmul.u32.u64.compose %v1365, %v1364
      %v1367 = vextract.low.u32 %v1366
      %v1368 = vextract.high.u32 %v1366
      %v1369 = vmul.u32.u64.compose %v1365, %v1360
      %v1370 = vextract.low.u32 %v1369
      %v1371 = vextract.high.u32 %v1369
      %v1372 = vmul.u32 %v1365, %v1356
      %v1373 = vadd.s32 %v1368, %v1370
      %vm1374 = vc.u32 %v1368, %v1370
      %v1375 = vadd.s32 %v1371, 1
      %v1376 = vsel %vm1374, %v1375, %v1371
      %v1377 = vadd.s32 %v1372, %v1376
      %v1378 = vadd.s32 %v1377, 536870912
      %v1379 = vshrl.u32 %v1378, 30
      %v1380 = vshll.u32 %v1379, 30
      %v1381 = vsub.s32 %v1377, %v1380
      %vm1382 = vcmp.lt.s32.totalorder %v1381, 0
      %v1383 = vsub.s32 0, %v1381
      %v1384 = vsel %vm1382, %v1383, %v1381
      %v1385 = vclz %v1384
      %v1386 = vsub.s32 %v1385, 2
      %vm1387 = vcmp.gt.s32.totalorder 0, %v1386
      %v1388 = vsel %vm1387, 0, %v1386
      %v1389 = vsub.s32 32, %v1388
      %v1390 = vshll.u32 %v1381, %v1388
      %v1391 = vshrl.u32 %v1373, %v1389
      %v1392 = vor.u32 %v1390, %v1391
      %v1393 = vsub.s32 4294967266, %v1388
      %v1394 = vadd.s32 %v1393, 127
      %v1395 = vshll.u32 %v1394, 23
      %v1396 = vor.u32 4788187, %v1395
      %v1397 = vand.u32 2147483647, %v1396
      %v1399 = vcvt.s32.f32 %v1392
      %v1400 = vmul.f32 %v1399, %v1397
      %v1401 = vxor.u32 %v1400, 2147483648
      %v1402 = vsel %vm1319, %v1401, %v1400
      %v1403 = vsub.s32 4, %v1379
      %v1404 = vsel %vm1319, %v1403, %v1379
      %v1405 = vsel %vm1318, %v477, %v1402
      %v1406 = vsel %vm1318, 0, %v1404
      %v1407 = vcosq.f32.pop %v1405
      %v1408 = vsinq.f32.pop %v1405
      %vm1409 = vweird.f32 %v477
      %v1410 = vand.u32 %v1406, 3
      %vm1411 = vcmp.lt.s32.totalorder %v1410, 2
      %vm1412 = vcmp.eq.s32.totalorder %v1410, 0
      %v1413 = vxor.u32 %v1408, 2147483648
      %v1414 = vsel %vm1412, %v1407, %v1413
      %vm1415 = vcmp.eq.s32.totalorder %v1410, 2
      %v1416 = vxor.u32 %v1407, 2147483648
      %v1417 = vsel %vm1415, %v1416, %v1408
      %v1418 = vsel %vm1411, %v1414, %v1417
      %v1419 = vsel %vm1409, nan, %v1418
      %v1420 = vand.u32 2147483647, %v478
      %vm1421 = vcmp.le.f32.partialorder %v1420, 0.7853982
      %vm1422 = vcmp.lt.s32.totalorder %v478, 0
      %v1423 = vand.u32 %v478, 2139095040
      %v1424 = vshrl.u32 %v1423, 23
      %v1425 = vsub.s32 %v1424, 127
      %v1426 = vand.u32 2147483647, %v478
      %v1427 = vand.u32 %v1426, 8388607
      %v1428 = vor.u32 %v1427, 8388608
      %v1429 = vsub.s32 0, %v1428
      %v1430 = vadd.s32 %v1425, 1
      %vm1431 = vcmp.gt.s32.totalorder %v1430, 0
      %v1432 = vsel %vm1431, %v1430, 0
      %v1433 = vshrl.u32 %v1432, 5
      %v1434 = vand.u32 %v1432, 31
      %v1435 = vsub.s32 32, %v1434
      %v1436 = vshrl.u32 683565275, %v1435
      %v1437 = vshll.u32 683565275, %v1434
      %v1438 = vshrl.u32 2475754826, %v1435
      %v1439 = vor.u32 %v1437, %v1438
      %v1440 = vshll.u32 2475754826, %v1434
      %v1441 = vshrl.u32 2131351028, %v1435
      %v1442 = vor.u32 %v1440, %v1441
      %v1443 = vshll.u32 2131351028, %v1434
      %v1444 = vshrl.u32 2102212464, %v1435
      %v1445 = vor.u32 %v1443, %v1444
      %v1446 = vshll.u32 2102212464, %v1434
      %v1447 = vshrl.u32 920167782, %v1435
      %v1448 = vor.u32 %v1446, %v1447
      %v1449 = vshll.u32 920167782, %v1434
      %v1450 = vshrl.u32 1326507024, %v1435
      %v1451 = vor.u32 %v1449, %v1450
      %vm1452 = vcmp.lt.s32.totalorder %v1433, 1
      %vm1453 = vcmp.lt.s32.totalorder %v1433, 2
      %vm1454 = vcmp.lt.s32.totalorder %v1433, 3
      %vm1455 = vcmp.lt.s32.totalorder %v1433, 4
      %v1456 = vsel %vm1452, %v1436, %v1439
      %v1457 = vsel %vm1455, %v1445, 2102212464
      %v1458 = vsel %vm1454, %v1442, %v1457
      %v1459 = vsel %vm1453, %v1456, %v1458
      %v1460 = vsel %vm1452, %v1439, %v1442
      %v1461 = vsel %vm1455, %v1448, 920167782
      %v1462 = vsel %vm1454, %v1445, %v1461
      %v1463 = vsel %vm1453, %v1460, %v1462
      %v1464 = vsel %vm1452, %v1442, %v1445
      %v1465 = vsel %vm1455, %v1451, 1326507024
      %v1466 = vsel %vm1454, %v1448, %v1465
      %v1467 = vsel %vm1453, %v1464, %v1466
      %v1468 = vshll.u32 %v1428, 8
      %v1469 = vmul.u32.u64.compose %v1468, %v1467
      %v1470 = vextract.low.u32 %v1469
      %v1471 = vextract.high.u32 %v1469
      %v1472 = vmul.u32.u64.compose %v1468, %v1463
      %v1473 = vextract.low.u32 %v1472
      %v1474 = vextract.high.u32 %v1472
      %v1475 = vmul.u32 %v1468, %v1459
      %v1476 = vadd.s32 %v1471, %v1473
      %vm1477 = vc.u32 %v1471, %v1473
      %v1478 = vadd.s32 %v1474, 1
      %v1479 = vsel %vm1477, %v1478, %v1474
      %v1480 = vadd.s32 %v1475, %v1479
      %v1481 = vadd.s32 %v1480, 536870912
      %v1482 = vshrl.u32 %v1481, 30
      %v1483 = vshll.u32 %v1482, 30
      %v1484 = vsub.s32 %v1480, %v1483
      %vm1485 = vcmp.lt.s32.totalorder %v1484, 0
      %v1486 = vsub.s32 0, %v1484
      %v1487 = vsel %vm1485, %v1486, %v1484
      %v1488 = vclz %v1487
      %v1489 = vsub.s32 %v1488, 2
      %vm1490 = vcmp.gt.s32.totalorder 0, %v1489
      %v1491 = vsel %vm1490, 0, %v1489
      %v1492 = vsub.s32 32, %v1491
      %v1493 = vshll.u32 %v1484, %v1491
      %v1494 = vshrl.u32 %v1476, %v1492
      %v1495 = vor.u32 %v1493, %v1494
      %v1496 = vsub.s32 4294967266, %v1491
      %v1497 = vadd.s32 %v1496, 127
      %v1498 = vshll.u32 %v1497, 23
      %v1499 = vor.u32 4788187, %v1498
      %v1500 = vand.u32 2147483647, %v1499
      %v1502 = vcvt.s32.f32 %v1495
      %v1503 = vmul.f32 %v1502, %v1500
      %v1504 = vxor.u32 %v1503, 2147483648
      %v1505 = vsel %vm1422, %v1504, %v1503
      %v1506 = vsub.s32 4, %v1482
      %v1507 = vsel %vm1422, %v1506, %v1482
      %v1508 = vsel %vm1421, %v478, %v1505
      %v1509 = vsel %vm1421, 0, %v1507
      %v1510 = vcosq.f32.pop %v1508
      %v1511 = vsinq.f32.pop %v1508
      %vm1512 = vweird.f32 %v478
      %v1513 = vand.u32 %v1509, 3
      %vm1514 = vcmp.lt.s32.totalorder %v1513, 2
      %vm1515 = vcmp.eq.s32.totalorder %v1513, 0
      %v1516 = vxor.u32 %v1511, 2147483648
      %v1517 = vsel %vm1515, %v1510, %v1516
      %vm1518 = vcmp.eq.s32.totalorder %v1513, 2
      %v1519 = vxor.u32 %v1510, 2147483648
      %v1520 = vsel %vm1518, %v1519, %v1511
      %v1521 = vsel %vm1514, %v1517, %v1520
      %v1522 = vsel %vm1512, nan, %v1521
      %v1523 = vand.u32 2147483647, %v479
      %vm1524 = vcmp.le.f32.partialorder %v1523, 0.7853982
      %vm1525 = vcmp.lt.s32.totalorder %v479, 0
      %v1526 = vand.u32 %v479, 2139095040
      %v1527 = vshrl.u32 %v1526, 23
      %v1528 = vsub.s32 %v1527, 127
      %v1529 = vand.u32 2147483647, %v479
      %v1530 = vand.u32 %v1529, 8388607
      %v1531 = vor.u32 %v1530, 8388608
      %v1532 = vsub.s32 0, %v1531
      %v1533 = vadd.s32 %v1528, 1
      %vm1534 = vcmp.gt.s32.totalorder %v1533, 0
      %v1535 = vsel %vm1534, %v1533, 0
      %v1536 = vshrl.u32 %v1535, 5
      %v1537 = vand.u32 %v1535, 31
      %v1538 = vsub.s32 32, %v1537
      %v1539 = vshrl.u32 683565275, %v1538
      %v1540 = vshll.u32 683565275, %v1537
      %v1541 = vshrl.u32 2475754826, %v1538
      %v1542 = vor.u32 %v1540, %v1541
      %v1543 = vshll.u32 2475754826, %v1537
      %v1544 = vshrl.u32 2131351028, %v1538
      %v1545 = vor.u32 %v1543, %v1544
      %v1546 = vshll.u32 2131351028, %v1537
      %v1547 = vshrl.u32 2102212464, %v1538
      %v1548 = vor.u32 %v1546, %v1547
      %v1549 = vshll.u32 2102212464, %v1537
      %v1550 = vshrl.u32 920167782, %v1538
      %v1551 = vor.u32 %v1549, %v1550
      %v1552 = vshll.u32 920167782, %v1537
      %v1553 = vshrl.u32 1326507024, %v1538
      %v1554 = vor.u32 %v1552, %v1553
      %vm1555 = vcmp.lt.s32.totalorder %v1536, 1
      %vm1556 = vcmp.lt.s32.totalorder %v1536, 2
      %vm1557 = vcmp.lt.s32.totalorder %v1536, 3
      %vm1558 = vcmp.lt.s32.totalorder %v1536, 4
      %v1559 = vsel %vm1555, %v1539, %v1542
      %v1560 = vsel %vm1558, %v1548, 2102212464
      %v1561 = vsel %vm1557, %v1545, %v1560
      %v1562 = vsel %vm1556, %v1559, %v1561
      %v1563 = vsel %vm1555, %v1542, %v1545
      %v1564 = vsel %vm1558, %v1551, 920167782
      %v1565 = vsel %vm1557, %v1548, %v1564
      %v1566 = vsel %vm1556, %v1563, %v1565
      %v1567 = vsel %vm1555, %v1545, %v1548
      %v1568 = vsel %vm1558, %v1554, 1326507024
      %v1569 = vsel %vm1557, %v1551, %v1568
      %v1570 = vsel %vm1556, %v1567, %v1569
      %v1571 = vshll.u32 %v1531, 8
      %v1572 = vmul.u32.u64.compose %v1571, %v1570
      %v1573 = vextract.low.u32 %v1572
      %v1574 = vextract.high.u32 %v1572
      %v1575 = vmul.u32.u64.compose %v1571, %v1566
      %v1576 = vextract.low.u32 %v1575
      %v1577 = vextract.high.u32 %v1575
      %v1578 = vmul.u32 %v1571, %v1562
      %v1579 = vadd.s32 %v1574, %v1576
      %vm1580 = vc.u32 %v1574, %v1576
      %v1581 = vadd.s32 %v1577, 1
      %v1582 = vsel %vm1580, %v1581, %v1577
      %v1583 = vadd.s32 %v1578, %v1582
      %v1584 = vadd.s32 %v1583, 536870912
      %v1585 = vshrl.u32 %v1584, 30
      %v1586 = vshll.u32 %v1585, 30
      %v1587 = vsub.s32 %v1583, %v1586
      %vm1588 = vcmp.lt.s32.totalorder %v1587, 0
      %v1589 = vsub.s32 0, %v1587
      %v1590 = vsel %vm1588, %v1589, %v1587
      %v1591 = vclz %v1590
      %v1592 = vsub.s32 %v1591, 2
      %vm1593 = vcmp.gt.s32.totalorder 0, %v1592
      %v1594 = vsel %vm1593, 0, %v1592
      %v1595 = vsub.s32 32, %v1594
      %v1596 = vshll.u32 %v1587, %v1594
      %v1597 = vshrl.u32 %v1579, %v1595
      %v1598 = vor.u32 %v1596, %v1597
      %v1599 = vsub.s32 4294967266, %v1594
      %v1600 = vadd.s32 %v1599, 127
      %v1601 = vshll.u32 %v1600, 23
      %v1602 = vor.u32 4788187, %v1601
      %v1603 = vand.u32 2147483647, %v1602
      %v1605 = vcvt.s32.f32 %v1598
      %v1606 = vmul.f32 %v1605, %v1603
      %v1607 = vxor.u32 %v1606, 2147483648
      %v1608 = vsel %vm1525, %v1607, %v1606
      %v1609 = vsub.s32 4, %v1585
      %v1610 = vsel %vm1525, %v1609, %v1585
      %v1611 = vsel %vm1524, %v479, %v1608
      %v1612 = vsel %vm1524, 0, %v1610
      %v1613 = vcosq.f32.pop %v1611
      %v1614 = vsinq.f32.pop %v1611
      %vm1615 = vweird.f32 %v479
      %v1616 = vand.u32 %v1612, 3
      %vm1617 = vcmp.lt.s32.totalorder %v1616, 2
      %vm1618 = vcmp.eq.s32.totalorder %v1616, 0
      %v1619 = vxor.u32 %v1614, 2147483648
      %v1620 = vsel %vm1618, %v1613, %v1619
      %vm1621 = vcmp.eq.s32.totalorder %v1616, 2
      %v1622 = vxor.u32 %v1613, 2147483648
      %v1623 = vsel %vm1621, %v1622, %v1614
      %v1624 = vsel %vm1617, %v1620, %v1623
      %v1625 = vsel %vm1615, nan, %v1624
      %v1626 = vand.u32 2147483647, %v480
      %vm1627 = vcmp.le.f32.partialorder %v1626, 0.7853982
      %vm1628 = vcmp.lt.s32.totalorder %v480, 0
      %v1629 = vand.u32 %v480, 2139095040
      %v1630 = vshrl.u32 %v1629, 23
      %v1631 = vsub.s32 %v1630, 127
      %v1632 = vand.u32 2147483647, %v480
      %v1633 = vand.u32 %v1632, 8388607
      %v1634 = vor.u32 %v1633, 8388608
      %v1635 = vsub.s32 0, %v1634
      %v1636 = vadd.s32 %v1631, 1
      %vm1637 = vcmp.gt.s32.totalorder %v1636, 0
      %v1638 = vsel %vm1637, %v1636, 0
      %v1639 = vshrl.u32 %v1638, 5
      %v1640 = vand.u32 %v1638, 31
      %v1641 = vsub.s32 32, %v1640
      %v1642 = vshrl.u32 683565275, %v1641
      %v1643 = vshll.u32 683565275, %v1640
      %v1644 = vshrl.u32 2475754826, %v1641
      %v1645 = vor.u32 %v1643, %v1644
      %v1646 = vshll.u32 2475754826, %v1640
      %v1647 = vshrl.u32 2131351028, %v1641
      %v1648 = vor.u32 %v1646, %v1647
      %v1649 = vshll.u32 2131351028, %v1640
      %v1650 = vshrl.u32 2102212464, %v1641
      %v1651 = vor.u32 %v1649, %v1650
      %v1652 = vshll.u32 2102212464, %v1640
      %v1653 = vshrl.u32 920167782, %v1641
      %v1654 = vor.u32 %v1652, %v1653
      %v1655 = vshll.u32 920167782, %v1640
      %v1656 = vshrl.u32 1326507024, %v1641
      %v1657 = vor.u32 %v1655, %v1656
      %vm1658 = vcmp.lt.s32.totalorder %v1639, 1
      %vm1659 = vcmp.lt.s32.totalorder %v1639, 2
      %vm1660 = vcmp.lt.s32.totalorder %v1639, 3
      %vm1661 = vcmp.lt.s32.totalorder %v1639, 4
      %v1662 = vsel %vm1658, %v1642, %v1645
      %v1663 = vsel %vm1661, %v1651, 2102212464
      %v1664 = vsel %vm1660, %v1648, %v1663
      %v1665 = vsel %vm1659, %v1662, %v1664
      %v1666 = vsel %vm1658, %v1645, %v1648
      %v1667 = vsel %vm1661, %v1654, 920167782
      %v1668 = vsel %vm1660, %v1651, %v1667
      %v1669 = vsel %vm1659, %v1666, %v1668
      %v1670 = vsel %vm1658, %v1648, %v1651
      %v1671 = vsel %vm1661, %v1657, 1326507024
      %v1672 = vsel %vm1660, %v1654, %v1671
      %v1673 = vsel %vm1659, %v1670, %v1672
      %v1674 = vshll.u32 %v1634, 8
      %v1675 = vmul.u32.u64.compose %v1674, %v1673
      %v1676 = vextract.low.u32 %v1675
      %v1677 = vextract.high.u32 %v1675
      %v1678 = vmul.u32.u64.compose %v1674, %v1669
      %v1679 = vextract.low.u32 %v1678
      %v1680 = vextract.high.u32 %v1678
      %v1681 = vmul.u32 %v1674, %v1665
      %v1682 = vadd.s32 %v1677, %v1679
      %vm1683 = vc.u32 %v1677, %v1679
      %v1684 = vadd.s32 %v1680, 1
      %v1685 = vsel %vm1683, %v1684, %v1680
      %v1686 = vadd.s32 %v1681, %v1685
      %v1687 = vadd.s32 %v1686, 536870912
      %v1688 = vshrl.u32 %v1687, 30
      %v1689 = vshll.u32 %v1688, 30
      %v1690 = vsub.s32 %v1686, %v1689
      %vm1691 = vcmp.lt.s32.totalorder %v1690, 0
      %v1692 = vsub.s32 0, %v1690
      %v1693 = vsel %vm1691, %v1692, %v1690
      %v1694 = vclz %v1693
      %v1695 = vsub.s32 %v1694, 2
      %vm1696 = vcmp.gt.s32.totalorder 0, %v1695
      %v1697 = vsel %vm1696, 0, %v1695
      %v1698 = vsub.s32 32, %v1697
      %v1699 = vshll.u32 %v1690, %v1697
      %v1700 = vshrl.u32 %v1682, %v1698
      %v1701 = vor.u32 %v1699, %v1700
      %v1702 = vsub.s32 4294967266, %v1697
      %v1703 = vadd.s32 %v1702, 127
      %v1704 = vshll.u32 %v1703, 23
      %v1705 = vor.u32 4788187, %v1704
      %v1706 = vand.u32 2147483647, %v1705
      %v1708 = vcvt.s32.f32 %v1701
      %v1709 = vmul.f32 %v1708, %v1706
      %v1710 = vxor.u32 %v1709, 2147483648
      %v1711 = vsel %vm1628, %v1710, %v1709
      %v1712 = vsub.s32 4, %v1688
      %v1713 = vsel %vm1628, %v1712, %v1688
      %v1714 = vsel %vm1627, %v480, %v1711
      %v1715 = vsel %vm1627, 0, %v1713
      %v1716 = vcosq.f32.pop %v1714
      %v1717 = vsinq.f32.pop %v1714
      %vm1718 = vweird.f32 %v480
      %v1719 = vand.u32 %v1715, 3
      %vm1720 = vcmp.lt.s32.totalorder %v1719, 2
      %vm1721 = vcmp.eq.s32.totalorder %v1719, 0
      %v1722 = vxor.u32 %v1717, 2147483648
      %v1723 = vsel %vm1721, %v1716, %v1722
      %vm1724 = vcmp.eq.s32.totalorder %v1719, 2
      %v1725 = vxor.u32 %v1716, 2147483648
      %v1726 = vsel %vm1724, %v1725, %v1717
      %v1727 = vsel %vm1720, %v1723, %v1726
      %v1728 = vsel %vm1718, nan, %v1727
      %v1729 = vand.u32 2147483647, %v481
      %vm1730 = vcmp.le.f32.partialorder %v1729, 0.7853982
      %vm1731 = vcmp.lt.s32.totalorder %v481, 0
      %v1732 = vand.u32 %v481, 2139095040
      %v1733 = vshrl.u32 %v1732, 23
      %v1734 = vsub.s32 %v1733, 127
      %v1735 = vand.u32 2147483647, %v481
      %v1736 = vand.u32 %v1735, 8388607
      %v1737 = vor.u32 %v1736, 8388608
      %v1738 = vsub.s32 0, %v1737
      %v1739 = vadd.s32 %v1734, 1
      %vm1740 = vcmp.gt.s32.totalorder %v1739, 0
      %v1741 = vsel %vm1740, %v1739, 0
      %v1742 = vshrl.u32 %v1741, 5
      %v1743 = vand.u32 %v1741, 31
      %v1744 = vsub.s32 32, %v1743
      %v1745 = vshrl.u32 683565275, %v1744
      %v1746 = vshll.u32 683565275, %v1743
      %v1747 = vshrl.u32 2475754826, %v1744
      %v1748 = vor.u32 %v1746, %v1747
      %v1749 = vshll.u32 2475754826, %v1743
      %v1750 = vshrl.u32 2131351028, %v1744
      %v1751 = vor.u32 %v1749, %v1750
      %v1752 = vshll.u32 2131351028, %v1743
      %v1753 = vshrl.u32 2102212464, %v1744
      %v1754 = vor.u32 %v1752, %v1753
      %v1755 = vshll.u32 2102212464, %v1743
      %v1756 = vshrl.u32 920167782, %v1744
      %v1757 = vor.u32 %v1755, %v1756
      %v1758 = vshll.u32 920167782, %v1743
      %v1759 = vshrl.u32 1326507024, %v1744
      %v1760 = vor.u32 %v1758, %v1759
      %vm1761 = vcmp.lt.s32.totalorder %v1742, 1
      %vm1762 = vcmp.lt.s32.totalorder %v1742, 2
      %vm1763 = vcmp.lt.s32.totalorder %v1742, 3
      %vm1764 = vcmp.lt.s32.totalorder %v1742, 4
      %v1765 = vsel %vm1761, %v1745, %v1748
      %v1766 = vsel %vm1764, %v1754, 2102212464
      %v1767 = vsel %vm1763, %v1751, %v1766
      %v1768 = vsel %vm1762, %v1765, %v1767
      %v1769 = vsel %vm1761, %v1748, %v1751
      %v1770 = vsel %vm1764, %v1757, 920167782
      %v1771 = vsel %vm1763, %v1754, %v1770
      %v1772 = vsel %vm1762, %v1769, %v1771
      %v1773 = vsel %vm1761, %v1751, %v1754
      %v1774 = vsel %vm1764, %v1760, 1326507024
      %v1775 = vsel %vm1763, %v1757, %v1774
      %v1776 = vsel %vm1762, %v1773, %v1775
      %v1777 = vshll.u32 %v1737, 8
      %v1778 = vmul.u32.u64.compose %v1777, %v1776
      %v1779 = vextract.low.u32 %v1778
      %v1780 = vextract.high.u32 %v1778
      %v1781 = vmul.u32.u64.compose %v1777, %v1772
      %v1782 = vextract.low.u32 %v1781
      %v1783 = vextract.high.u32 %v1781
      %v1784 = vmul.u32 %v1777, %v1768
      %v1785 = vadd.s32 %v1780, %v1782
      %vm1786 = vc.u32 %v1780, %v1782
      %v1787 = vadd.s32 %v1783, 1
      %v1788 = vsel %vm1786, %v1787, %v1783
      %v1789 = vadd.s32 %v1784, %v1788
      %v1790 = vadd.s32 %v1789, 536870912
      %v1791 = vshrl.u32 %v1790, 30
      %v1792 = vshll.u32 %v1791, 30
      %v1793 = vsub.s32 %v1789, %v1792
      %vm1794 = vcmp.lt.s32.totalorder %v1793, 0
      %v1795 = vsub.s32 0, %v1793
      %v1796 = vsel %vm1794, %v1795, %v1793
      %v1797 = vclz %v1796
      %v1798 = vsub.s32 %v1797, 2
      %vm1799 = vcmp.gt.s32.totalorder 0, %v1798
      %v1800 = vsel %vm1799, 0, %v1798
      %v1801 = vsub.s32 32, %v1800
      %v1802 = vshll.u32 %v1793, %v1800
      %v1803 = vshrl.u32 %v1785, %v1801
      %v1804 = vor.u32 %v1802, %v1803
      %v1805 = vsub.s32 4294967266, %v1800
      %v1806 = vadd.s32 %v1805, 127
      %v1807 = vshll.u32 %v1806, 23
      %v1808 = vor.u32 4788187, %v1807
      %v1809 = vand.u32 2147483647, %v1808
      %v1811 = vcvt.s32.f32 %v1804
      %v1812 = vmul.f32 %v1811, %v1809
      %v1813 = vxor.u32 %v1812, 2147483648
      %v1814 = vsel %vm1731, %v1813, %v1812
      %v1815 = vsub.s32 4, %v1791
      %v1816 = vsel %vm1731, %v1815, %v1791
      %v1817 = vsel %vm1730, %v481, %v1814
      %v1818 = vsel %vm1730, 0, %v1816
      %v1819 = vcosq.f32.pop %v1817
      %v1820 = vsinq.f32.pop %v1817
      %vm1821 = vweird.f32 %v481
      %v1822 = vand.u32 %v1818, 3
      %vm1823 = vcmp.lt.s32.totalorder %v1822, 2
      %vm1824 = vcmp.eq.s32.totalorder %v1822, 0
      %v1825 = vxor.u32 %v1820, 2147483648
      %v1826 = vsel %vm1824, %v1819, %v1825
      %vm1827 = vcmp.eq.s32.totalorder %v1822, 2
      %v1828 = vxor.u32 %v1819, 2147483648
      %v1829 = vsel %vm1827, %v1828, %v1820
      %v1830 = vsel %vm1823, %v1826, %v1829
      %v1831 = vsel %vm1821, nan, %v1830
      %v1832 = vand.u32 2147483647, %v482
      %vm1833 = vcmp.le.f32.partialorder %v1832, 0.7853982
      %vm1834 = vcmp.lt.s32.totalorder %v482, 0
      %v1835 = vand.u32 %v482, 2139095040
      %v1836 = vshrl.u32 %v1835, 23
      %v1837 = vsub.s32 %v1836, 127
      %v1838 = vand.u32 2147483647, %v482
      %v1839 = vand.u32 %v1838, 8388607
      %v1840 = vor.u32 %v1839, 8388608
      %v1841 = vsub.s32 0, %v1840
      %v1842 = vadd.s32 %v1837, 1
      %vm1843 = vcmp.gt.s32.totalorder %v1842, 0
      %v1844 = vsel %vm1843, %v1842, 0
      %v1845 = vshrl.u32 %v1844, 5
      %v1846 = vand.u32 %v1844, 31
      %v1847 = vsub.s32 32, %v1846
      %v1848 = vshrl.u32 683565275, %v1847
      %v1849 = vshll.u32 683565275, %v1846
      %v1850 = vshrl.u32 2475754826, %v1847
      %v1851 = vor.u32 %v1849, %v1850
      %v1852 = vshll.u32 2475754826, %v1846
      %v1853 = vshrl.u32 2131351028, %v1847
      %v1854 = vor.u32 %v1852, %v1853
      %v1855 = vshll.u32 2131351028, %v1846
      %v1856 = vshrl.u32 2102212464, %v1847
      %v1857 = vor.u32 %v1855, %v1856
      %v1858 = vshll.u32 2102212464, %v1846
      %v1859 = vshrl.u32 920167782, %v1847
      %v1860 = vor.u32 %v1858, %v1859
      %v1861 = vshll.u32 920167782, %v1846
      %v1862 = vshrl.u32 1326507024, %v1847
      %v1863 = vor.u32 %v1861, %v1862
      %vm1864 = vcmp.lt.s32.totalorder %v1845, 1
      %vm1865 = vcmp.lt.s32.totalorder %v1845, 2
      %vm1866 = vcmp.lt.s32.totalorder %v1845, 3
      %vm1867 = vcmp.lt.s32.totalorder %v1845, 4
      %v1868 = vsel %vm1864, %v1848, %v1851
      %v1869 = vsel %vm1867, %v1857, 2102212464
      %v1870 = vsel %vm1866, %v1854, %v1869
      %v1871 = vsel %vm1865, %v1868, %v1870
      %v1872 = vsel %vm1864, %v1851, %v1854
      %v1873 = vsel %vm1867, %v1860, 920167782
      %v1874 = vsel %vm1866, %v1857, %v1873
      %v1875 = vsel %vm1865, %v1872, %v1874
      %v1876 = vsel %vm1864, %v1854, %v1857
      %v1877 = vsel %vm1867, %v1863, 1326507024
      %v1878 = vsel %vm1866, %v1860, %v1877
      %v1879 = vsel %vm1865, %v1876, %v1878
      %v1880 = vshll.u32 %v1840, 8
      %v1881 = vmul.u32.u64.compose %v1880, %v1879
      %v1882 = vextract.low.u32 %v1881
      %v1883 = vextract.high.u32 %v1881
      %v1884 = vmul.u32.u64.compose %v1880, %v1875
      %v1885 = vextract.low.u32 %v1884
      %v1886 = vextract.high.u32 %v1884
      %v1887 = vmul.u32 %v1880, %v1871
      %v1888 = vadd.s32 %v1883, %v1885
      %vm1889 = vc.u32 %v1883, %v1885
      %v1890 = vadd.s32 %v1886, 1
      %v1891 = vsel %vm1889, %v1890, %v1886
      %v1892 = vadd.s32 %v1887, %v1891
      %v1893 = vadd.s32 %v1892, 536870912
      %v1894 = vshrl.u32 %v1893, 30
      %v1895 = vshll.u32 %v1894, 30
      %v1896 = vsub.s32 %v1892, %v1895
      %vm1897 = vcmp.lt.s32.totalorder %v1896, 0
      %v1898 = vsub.s32 0, %v1896
      %v1899 = vsel %vm1897, %v1898, %v1896
      %v1900 = vclz %v1899
      %v1901 = vsub.s32 %v1900, 2
      %vm1902 = vcmp.gt.s32.totalorder 0, %v1901
      %v1903 = vsel %vm1902, 0, %v1901
      %v1904 = vsub.s32 32, %v1903
      %v1905 = vshll.u32 %v1896, %v1903
      %v1906 = vshrl.u32 %v1888, %v1904
      %v1907 = vor.u32 %v1905, %v1906
      %v1908 = vsub.s32 4294967266, %v1903
      %v1909 = vadd.s32 %v1908, 127
      %v1910 = vshll.u32 %v1909, 23
      %v1911 = vor.u32 4788187, %v1910
      %v1912 = vand.u32 2147483647, %v1911
      %v1914 = vcvt.s32.f32 %v1907
      %v1915 = vmul.f32 %v1914, %v1912
      %v1916 = vxor.u32 %v1915, 2147483648
      %v1917 = vsel %vm1834, %v1916, %v1915
      %v1918 = vsub.s32 4, %v1894
      %v1919 = vsel %vm1834, %v1918, %v1894
      %v1920 = vsel %vm1833, %v482, %v1917
      %v1921 = vsel %vm1833, 0, %v1919
      %v1922 = vcosq.f32.pop %v1920
      %v1923 = vsinq.f32.pop %v1920
      %vm1924 = vweird.f32 %v482
      %v1925 = vand.u32 %v1921, 3
      %vm1926 = vcmp.lt.s32.totalorder %v1925, 2
      %vm1927 = vcmp.eq.s32.totalorder %v1925, 0
      %v1928 = vxor.u32 %v1923, 2147483648
      %v1929 = vsel %vm1927, %v1922, %v1928
      %vm1930 = vcmp.eq.s32.totalorder %v1925, 2
      %v1931 = vxor.u32 %v1922, 2147483648
      %v1932 = vsel %vm1930, %v1931, %v1923
      %v1933 = vsel %vm1926, %v1929, %v1932
      %v1934 = vsel %vm1924, nan, %v1933
      %v1935 = vand.u32 2147483647, %v483
      %vm1936 = vcmp.le.f32.partialorder %v1935, 0.7853982
      %vm1937 = vcmp.lt.s32.totalorder %v483, 0
      %v1938 = vand.u32 %v483, 2139095040
      %v1939 = vshrl.u32 %v1938, 23
      %v1940 = vsub.s32 %v1939, 127
      %v1941 = vand.u32 2147483647, %v483
      %v1942 = vand.u32 %v1941, 8388607
      %v1943 = vor.u32 %v1942, 8388608
      %v1944 = vsub.s32 0, %v1943
      %v1945 = vadd.s32 %v1940, 1
      %vm1946 = vcmp.gt.s32.totalorder %v1945, 0
      %v1947 = vsel %vm1946, %v1945, 0
      %v1948 = vshrl.u32 %v1947, 5
      %v1949 = vand.u32 %v1947, 31
      %v1950 = vsub.s32 32, %v1949
      %v1951 = vshrl.u32 683565275, %v1950
      %v1952 = vshll.u32 683565275, %v1949
      %v1953 = vshrl.u32 2475754826, %v1950
      %v1954 = vor.u32 %v1952, %v1953
      %v1955 = vshll.u32 2475754826, %v1949
      %v1956 = vshrl.u32 2131351028, %v1950
      %v1957 = vor.u32 %v1955, %v1956
      %v1958 = vshll.u32 2131351028, %v1949
      %v1959 = vshrl.u32 2102212464, %v1950
      %v1960 = vor.u32 %v1958, %v1959
      %v1961 = vshll.u32 2102212464, %v1949
      %v1962 = vshrl.u32 920167782, %v1950
      %v1963 = vor.u32 %v1961, %v1962
      %v1964 = vshll.u32 920167782, %v1949
      %v1965 = vshrl.u32 1326507024, %v1950
      %v1966 = vor.u32 %v1964, %v1965
      %vm1967 = vcmp.lt.s32.totalorder %v1948, 1
      %vm1968 = vcmp.lt.s32.totalorder %v1948, 2
      %vm1969 = vcmp.lt.s32.totalorder %v1948, 3
      %vm1970 = vcmp.lt.s32.totalorder %v1948, 4
      %v1971 = vsel %vm1967, %v1951, %v1954
      %v1972 = vsel %vm1970, %v1960, 2102212464
      %v1973 = vsel %vm1969, %v1957, %v1972
      %v1974 = vsel %vm1968, %v1971, %v1973
      %v1975 = vsel %vm1967, %v1954, %v1957
      %v1976 = vsel %vm1970, %v1963, 920167782
      %v1977 = vsel %vm1969, %v1960, %v1976
      %v1978 = vsel %vm1968, %v1975, %v1977
      %v1979 = vsel %vm1967, %v1957, %v1960
      %v1980 = vsel %vm1970, %v1966, 1326507024
      %v1981 = vsel %vm1969, %v1963, %v1980
      %v1982 = vsel %vm1968, %v1979, %v1981
      %v1983 = vshll.u32 %v1943, 8
      %v1984 = vmul.u32.u64.compose %v1983, %v1982
      %v1985 = vextract.low.u32 %v1984
      %v1986 = vextract.high.u32 %v1984
      %v1987 = vmul.u32.u64.compose %v1983, %v1978
      %v1988 = vextract.low.u32 %v1987
      %v1989 = vextract.high.u32 %v1987
      %v1990 = vmul.u32 %v1983, %v1974
      %v1991 = vadd.s32 %v1986, %v1988
      %vm1992 = vc.u32 %v1986, %v1988
      %v1993 = vadd.s32 %v1989, 1
      %v1994 = vsel %vm1992, %v1993, %v1989
      %v1995 = vadd.s32 %v1990, %v1994
      %v1996 = vadd.s32 %v1995, 536870912
      %v1997 = vshrl.u32 %v1996, 30
      %v1998 = vshll.u32 %v1997, 30
      %v1999 = vsub.s32 %v1995, %v1998
      %vm2000 = vcmp.lt.s32.totalorder %v1999, 0
      %v2001 = vsub.s32 0, %v1999
      %v2002 = vsel %vm2000, %v2001, %v1999
      %v2003 = vclz %v2002
      %v2004 = vsub.s32 %v2003, 2
      %vm2005 = vcmp.gt.s32.totalorder 0, %v2004
      %v2006 = vsel %vm2005, 0, %v2004
      %v2007 = vsub.s32 32, %v2006
      %v2008 = vshll.u32 %v1999, %v2006
      %v2009 = vshrl.u32 %v1991, %v2007
      %v2010 = vor.u32 %v2008, %v2009
      %v2011 = vsub.s32 4294967266, %v2006
      %v2012 = vadd.s32 %v2011, 127
      %v2013 = vshll.u32 %v2012, 23
      %v2014 = vor.u32 4788187, %v2013
      %v2015 = vand.u32 2147483647, %v2014
      %v2017 = vcvt.s32.f32 %v2010
      %v2018 = vmul.f32 %v2017, %v2015
      %v2019 = vxor.u32 %v2018, 2147483648
      %v2020 = vsel %vm1937, %v2019, %v2018
      %v2021 = vsub.s32 4, %v1997
      %v2022 = vsel %vm1937, %v2021, %v1997
      %v2023 = vsel %vm1936, %v483, %v2020
      %v2024 = vsel %vm1936, 0, %v2022
      %v2025 = vcosq.f32.pop %v2023
      %v2026 = vsinq.f32.pop %v2023
      %vm2027 = vweird.f32 %v483
      %v2028 = vand.u32 %v2024, 3
      %vm2029 = vcmp.lt.s32.totalorder %v2028, 2
      %vm2030 = vcmp.eq.s32.totalorder %v2028, 0
      %v2031 = vxor.u32 %v2026, 2147483648
      %v2032 = vsel %vm2030, %v2025, %v2031
      %vm2033 = vcmp.eq.s32.totalorder %v2028, 2
      %v2034 = vxor.u32 %v2025, 2147483648
      %v2035 = vsel %vm2033, %v2034, %v2026
      %v2036 = vsel %vm2029, %v2032, %v2035
      %v2037 = vsel %vm2027, nan, %v2036
      %v2038 = vand.u32 2147483647, %v484
      %vm2039 = vcmp.le.f32.partialorder %v2038, 0.7853982
      %vm2040 = vcmp.lt.s32.totalorder %v484, 0
      %v2041 = vand.u32 %v484, 2139095040
      %v2042 = vshrl.u32 %v2041, 23
      %v2043 = vsub.s32 %v2042, 127
      %v2044 = vand.u32 2147483647, %v484
      %v2045 = vand.u32 %v2044, 8388607
      %v2046 = vor.u32 %v2045, 8388608
      %v2047 = vsub.s32 0, %v2046
      %v2048 = vadd.s32 %v2043, 1
      %vm2049 = vcmp.gt.s32.totalorder %v2048, 0
      %v2050 = vsel %vm2049, %v2048, 0
      %v2051 = vshrl.u32 %v2050, 5
      %v2052 = vand.u32 %v2050, 31
      %v2053 = vsub.s32 32, %v2052
      %v2054 = vshrl.u32 683565275, %v2053
      %v2055 = vshll.u32 683565275, %v2052
      %v2056 = vshrl.u32 2475754826, %v2053
      %v2057 = vor.u32 %v2055, %v2056
      %v2058 = vshll.u32 2475754826, %v2052
      %v2059 = vshrl.u32 2131351028, %v2053
      %v2060 = vor.u32 %v2058, %v2059
      %v2061 = vshll.u32 2131351028, %v2052
      %v2062 = vshrl.u32 2102212464, %v2053
      %v2063 = vor.u32 %v2061, %v2062
      %v2064 = vshll.u32 2102212464, %v2052
      %v2065 = vshrl.u32 920167782, %v2053
      %v2066 = vor.u32 %v2064, %v2065
      %v2067 = vshll.u32 920167782, %v2052
      %v2068 = vshrl.u32 1326507024, %v2053
      %v2069 = vor.u32 %v2067, %v2068
      %vm2070 = vcmp.lt.s32.totalorder %v2051, 1
      %vm2071 = vcmp.lt.s32.totalorder %v2051, 2
      %vm2072 = vcmp.lt.s32.totalorder %v2051, 3
      %vm2073 = vcmp.lt.s32.totalorder %v2051, 4
      %v2074 = vsel %vm2070, %v2054, %v2057
      %v2075 = vsel %vm2073, %v2063, 2102212464
      %v2076 = vsel %vm2072, %v2060, %v2075
      %v2077 = vsel %vm2071, %v2074, %v2076
      %v2078 = vsel %vm2070, %v2057, %v2060
      %v2079 = vsel %vm2073, %v2066, 920167782
      %v2080 = vsel %vm2072, %v2063, %v2079
      %v2081 = vsel %vm2071, %v2078, %v2080
      %v2082 = vsel %vm2070, %v2060, %v2063
      %v2083 = vsel %vm2073, %v2069, 1326507024
      %v2084 = vsel %vm2072, %v2066, %v2083
      %v2085 = vsel %vm2071, %v2082, %v2084
      %v2086 = vshll.u32 %v2046, 8
      %v2087 = vmul.u32.u64.compose %v2086, %v2085
      %v2088 = vextract.low.u32 %v2087
      %v2089 = vextract.high.u32 %v2087
      %v2090 = vmul.u32.u64.compose %v2086, %v2081
      %v2091 = vextract.low.u32 %v2090
      %v2092 = vextract.high.u32 %v2090
      %v2093 = vmul.u32 %v2086, %v2077
      %v2094 = vadd.s32 %v2089, %v2091
      %vm2095 = vc.u32 %v2089, %v2091
      %v2096 = vadd.s32 %v2092, 1
      %v2097 = vsel %vm2095, %v2096, %v2092
      %v2098 = vadd.s32 %v2093, %v2097
      %v2099 = vadd.s32 %v2098, 536870912
      %v2100 = vshrl.u32 %v2099, 30
      %v2101 = vshll.u32 %v2100, 30
      %v2102 = vsub.s32 %v2098, %v2101
      %vm2103 = vcmp.lt.s32.totalorder %v2102, 0
      %v2104 = vsub.s32 0, %v2102
      %v2105 = vsel %vm2103, %v2104, %v2102
      %v2106 = vclz %v2105
      %v2107 = vsub.s32 %v2106, 2
      %vm2108 = vcmp.gt.s32.totalorder 0, %v2107
      %v2109 = vsel %vm2108, 0, %v2107
      %v2110 = vsub.s32 32, %v2109
      %v2111 = vshll.u32 %v2102, %v2109
      %v2112 = vshrl.u32 %v2094, %v2110
      %v2113 = vor.u32 %v2111, %v2112
      %v2114 = vsub.s32 4294967266, %v2109
      %v2115 = vadd.s32 %v2114, 127
      %v2116 = vshll.u32 %v2115, 23
      %v2117 = vor.u32 4788187, %v2116
      %v2118 = vand.u32 2147483647, %v2117
      %v2120 = vcvt.s32.f32 %v2113
      %v2121 = vmul.f32 %v2120, %v2118
      %v2122 = vxor.u32 %v2121, 2147483648
      %v2123 = vsel %vm2040, %v2122, %v2121
      %v2124 = vsub.s32 4, %v2100
      %v2125 = vsel %vm2040, %v2124, %v2100
      %v2126 = vsel %vm2039, %v484, %v2123
      %v2127 = vsel %vm2039, 0, %v2125
      %v2128 = vcosq.f32.pop %v2126
      %v2129 = vsinq.f32.pop %v2126
      %vm2130 = vweird.f32 %v484
      %v2131 = vand.u32 %v2127, 3
      %vm2132 = vcmp.lt.s32.totalorder %v2131, 2
      %vm2133 = vcmp.eq.s32.totalorder %v2131, 0
      %v2134 = vxor.u32 %v2129, 2147483648
      %v2135 = vsel %vm2133, %v2128, %v2134
      %vm2136 = vcmp.eq.s32.totalorder %v2131, 2
      %v2137 = vxor.u32 %v2128, 2147483648
      %v2138 = vsel %vm2136, %v2137, %v2129
      %v2139 = vsel %vm2132, %v2135, %v2138
      %v2140 = vsel %vm2130, nan, %v2139
      %v2141 = vand.u32 2147483647, %v485
      %vm2142 = vcmp.le.f32.partialorder %v2141, 0.7853982
      %vm2143 = vcmp.lt.s32.totalorder %v485, 0
      %v2144 = vand.u32 %v485, 2139095040
      %v2145 = vshrl.u32 %v2144, 23
      %v2146 = vsub.s32 %v2145, 127
      %v2147 = vand.u32 2147483647, %v485
      %v2148 = vand.u32 %v2147, 8388607
      %v2149 = vor.u32 %v2148, 8388608
      %v2150 = vsub.s32 0, %v2149
      %v2151 = vadd.s32 %v2146, 1
      %vm2152 = vcmp.gt.s32.totalorder %v2151, 0
      %v2153 = vsel %vm2152, %v2151, 0
      %v2154 = vshrl.u32 %v2153, 5
      %v2155 = vand.u32 %v2153, 31
      %v2156 = vsub.s32 32, %v2155
      %v2157 = vshrl.u32 683565275, %v2156
      %v2158 = vshll.u32 683565275, %v2155
      %v2159 = vshrl.u32 2475754826, %v2156
      %v2160 = vor.u32 %v2158, %v2159
      %v2161 = vshll.u32 2475754826, %v2155
      %v2162 = vshrl.u32 2131351028, %v2156
      %v2163 = vor.u32 %v2161, %v2162
      %v2164 = vshll.u32 2131351028, %v2155
      %v2165 = vshrl.u32 2102212464, %v2156
      %v2166 = vor.u32 %v2164, %v2165
      %v2167 = vshll.u32 2102212464, %v2155
      %v2168 = vshrl.u32 920167782, %v2156
      %v2169 = vor.u32 %v2167, %v2168
      %v2170 = vshll.u32 920167782, %v2155
      %v2171 = vshrl.u32 1326507024, %v2156
      %v2172 = vor.u32 %v2170, %v2171
      %vm2173 = vcmp.lt.s32.totalorder %v2154, 1
      %vm2174 = vcmp.lt.s32.totalorder %v2154, 2
      %vm2175 = vcmp.lt.s32.totalorder %v2154, 3
      %vm2176 = vcmp.lt.s32.totalorder %v2154, 4
      %v2177 = vsel %vm2173, %v2157, %v2160
      %v2178 = vsel %vm2176, %v2166, 2102212464
      %v2179 = vsel %vm2175, %v2163, %v2178
      %v2180 = vsel %vm2174, %v2177, %v2179
      %v2181 = vsel %vm2173, %v2160, %v2163
      %v2182 = vsel %vm2176, %v2169, 920167782
      %v2183 = vsel %vm2175, %v2166, %v2182
      %v2184 = vsel %vm2174, %v2181, %v2183
      %v2185 = vsel %vm2173, %v2163, %v2166
      %v2186 = vsel %vm2176, %v2172, 1326507024
      %v2187 = vsel %vm2175, %v2169, %v2186
      %v2188 = vsel %vm2174, %v2185, %v2187
      %v2189 = vshll.u32 %v2149, 8
      %v2190 = vmul.u32.u64.compose %v2189, %v2188
      %v2191 = vextract.low.u32 %v2190
      %v2192 = vextract.high.u32 %v2190
      %v2193 = vmul.u32.u64.compose %v2189, %v2184
      %v2194 = vextract.low.u32 %v2193
      %v2195 = vextract.high.u32 %v2193
      %v2196 = vmul.u32 %v2189, %v2180
      %v2197 = vadd.s32 %v2192, %v2194
      %vm2198 = vc.u32 %v2192, %v2194
      %v2199 = vadd.s32 %v2195, 1
      %v2200 = vsel %vm2198, %v2199, %v2195
      %v2201 = vadd.s32 %v2196, %v2200
      %v2202 = vadd.s32 %v2201, 536870912
      %v2203 = vshrl.u32 %v2202, 30
      %v2204 = vshll.u32 %v2203, 30
      %v2205 = vsub.s32 %v2201, %v2204
      %vm2206 = vcmp.lt.s32.totalorder %v2205, 0
      %v2207 = vsub.s32 0, %v2205
      %v2208 = vsel %vm2206, %v2207, %v2205
      %v2209 = vclz %v2208
      %v2210 = vsub.s32 %v2209, 2
      %vm2211 = vcmp.gt.s32.totalorder 0, %v2210
      %v2212 = vsel %vm2211, 0, %v2210
      %v2213 = vsub.s32 32, %v2212
      %v2214 = vshll.u32 %v2205, %v2212
      %v2215 = vshrl.u32 %v2197, %v2213
      %v2216 = vor.u32 %v2214, %v2215
      %v2217 = vsub.s32 4294967266, %v2212
      %v2218 = vadd.s32 %v2217, 127
      %v2219 = vshll.u32 %v2218, 23
      %v2220 = vor.u32 4788187, %v2219
      %v2221 = vand.u32 2147483647, %v2220
      %v2223 = vcvt.s32.f32 %v2216
      %v2224 = vmul.f32 %v2223, %v2221
      %v2225 = vxor.u32 %v2224, 2147483648
      %v2226 = vsel %vm2143, %v2225, %v2224
      %v2227 = vsub.s32 4, %v2203
      %v2228 = vsel %vm2143, %v2227, %v2203
      %v2229 = vsel %vm2142, %v485, %v2226
      %v2230 = vsel %vm2142, 0, %v2228
      %v2231 = vcosq.f32.pop %v2229
      %v2232 = vsinq.f32.pop %v2229
      %vm2233 = vweird.f32 %v485
      %v2234 = vand.u32 %v2230, 3
      %vm2235 = vcmp.lt.s32.totalorder %v2234, 2
      %vm2236 = vcmp.eq.s32.totalorder %v2234, 0
      %v2237 = vxor.u32 %v2232, 2147483648
      %v2238 = vsel %vm2236, %v2231, %v2237
      %vm2239 = vcmp.eq.s32.totalorder %v2234, 2
      %v2240 = vxor.u32 %v2231, 2147483648
      %v2241 = vsel %vm2239, %v2240, %v2232
      %v2242 = vsel %vm2235, %v2238, %v2241
      %v2243 = vsel %vm2233, nan, %v2242
      %v2244 = vand.u32 2147483647, %v486
      %vm2245 = vcmp.le.f32.partialorder %v2244, 0.7853982
      %vm2246 = vcmp.lt.s32.totalorder %v486, 0
      %v2247 = vand.u32 %v486, 2139095040
      %v2248 = vshrl.u32 %v2247, 23
      %v2249 = vsub.s32 %v2248, 127
      %v2250 = vand.u32 2147483647, %v486
      %v2251 = vand.u32 %v2250, 8388607
      %v2252 = vor.u32 %v2251, 8388608
      %v2253 = vsub.s32 0, %v2252
      %v2254 = vadd.s32 %v2249, 1
      %vm2255 = vcmp.gt.s32.totalorder %v2254, 0
      %v2256 = vsel %vm2255, %v2254, 0
      %v2257 = vshrl.u32 %v2256, 5
      %v2258 = vand.u32 %v2256, 31
      %v2259 = vsub.s32 32, %v2258
      %v2260 = vshrl.u32 683565275, %v2259
      %v2261 = vshll.u32 683565275, %v2258
      %v2262 = vshrl.u32 2475754826, %v2259
      %v2263 = vor.u32 %v2261, %v2262
      %v2264 = vshll.u32 2475754826, %v2258
      %v2265 = vshrl.u32 2131351028, %v2259
      %v2266 = vor.u32 %v2264, %v2265
      %v2267 = vshll.u32 2131351028, %v2258
      %v2268 = vshrl.u32 2102212464, %v2259
      %v2269 = vor.u32 %v2267, %v2268
      %v2270 = vshll.u32 2102212464, %v2258
      %v2271 = vshrl.u32 920167782, %v2259
      %v2272 = vor.u32 %v2270, %v2271
      %v2273 = vshll.u32 920167782, %v2258
      %v2274 = vshrl.u32 1326507024, %v2259
      %v2275 = vor.u32 %v2273, %v2274
      %vm2276 = vcmp.lt.s32.totalorder %v2257, 1
      %vm2277 = vcmp.lt.s32.totalorder %v2257, 2
      %vm2278 = vcmp.lt.s32.totalorder %v2257, 3
      %vm2279 = vcmp.lt.s32.totalorder %v2257, 4
      %v2280 = vsel %vm2276, %v2260, %v2263
      %v2281 = vsel %vm2279, %v2269, 2102212464
      %v2282 = vsel %vm2278, %v2266, %v2281
      %v2283 = vsel %vm2277, %v2280, %v2282
      %v2284 = vsel %vm2276, %v2263, %v2266
      %v2285 = vsel %vm2279, %v2272, 920167782
      %v2286 = vsel %vm2278, %v2269, %v2285
      %v2287 = vsel %vm2277, %v2284, %v2286
      %v2288 = vsel %vm2276, %v2266, %v2269
      %v2289 = vsel %vm2279, %v2275, 1326507024
      %v2290 = vsel %vm2278, %v2272, %v2289
      %v2291 = vsel %vm2277, %v2288, %v2290
      %v2292 = vshll.u32 %v2252, 8
      %v2293 = vmul.u32.u64.compose %v2292, %v2291
      %v2294 = vextract.low.u32 %v2293
      %v2295 = vextract.high.u32 %v2293
      %v2296 = vmul.u32.u64.compose %v2292, %v2287
      %v2297 = vextract.low.u32 %v2296
      %v2298 = vextract.high.u32 %v2296
      %v2299 = vmul.u32 %v2292, %v2283
      %v2300 = vadd.s32 %v2295, %v2297
      %vm2301 = vc.u32 %v2295, %v2297
      %v2302 = vadd.s32 %v2298, 1
      %v2303 = vsel %vm2301, %v2302, %v2298
      %v2304 = vadd.s32 %v2299, %v2303
      %v2305 = vadd.s32 %v2304, 536870912
      %v2306 = vshrl.u32 %v2305, 30
      %v2307 = vshll.u32 %v2306, 30
      %v2308 = vsub.s32 %v2304, %v2307
      %vm2309 = vcmp.lt.s32.totalorder %v2308, 0
      %v2310 = vsub.s32 0, %v2308
      %v2311 = vsel %vm2309, %v2310, %v2308
      %v2312 = vclz %v2311
      %v2313 = vsub.s32 %v2312, 2
      %vm2314 = vcmp.gt.s32.totalorder 0, %v2313
      %v2315 = vsel %vm2314, 0, %v2313
      %v2316 = vsub.s32 32, %v2315
      %v2317 = vshll.u32 %v2308, %v2315
      %v2318 = vshrl.u32 %v2300, %v2316
      %v2319 = vor.u32 %v2317, %v2318
      %v2320 = vsub.s32 4294967266, %v2315
      %v2321 = vadd.s32 %v2320, 127
      %v2322 = vshll.u32 %v2321, 23
      %v2323 = vor.u32 4788187, %v2322
      %v2324 = vand.u32 2147483647, %v2323
      %v2326 = vcvt.s32.f32 %v2319
      %v2327 = vmul.f32 %v2326, %v2324
      %v2328 = vxor.u32 %v2327, 2147483648
      %v2329 = vsel %vm2246, %v2328, %v2327
      %v2330 = vsub.s32 4, %v2306
      %v2331 = vsel %vm2246, %v2330, %v2306
      %v2332 = vsel %vm2245, %v486, %v2329
      %v2333 = vsel %vm2245, 0, %v2331
      %v2334 = vcosq.f32.pop %v2332
      %v2335 = vsinq.f32.pop %v2332
      %vm2336 = vweird.f32 %v486
      %v2337 = vand.u32 %v2333, 3
      %vm2338 = vcmp.lt.s32.totalorder %v2337, 2
      %vm2339 = vcmp.eq.s32.totalorder %v2337, 0
      %v2340 = vxor.u32 %v2335, 2147483648
      %v2341 = vsel %vm2339, %v2334, %v2340
      %vm2342 = vcmp.eq.s32.totalorder %v2337, 2
      %v2343 = vxor.u32 %v2334, 2147483648
      %v2344 = vsel %vm2342, %v2343, %v2335
      %v2345 = vsel %vm2338, %v2341, %v2344
      %v2346 = vsel %vm2336, nan, %v2345
      %v2347 = vand.u32 2147483647, %v487
      %vm2348 = vcmp.le.f32.partialorder %v2347, 0.7853982
      %vm2349 = vcmp.lt.s32.totalorder %v487, 0
      %v2350 = vand.u32 %v487, 2139095040
      %v2351 = vshrl.u32 %v2350, 23
      %v2352 = vsub.s32 %v2351, 127
      %v2353 = vand.u32 2147483647, %v487
      %v2354 = vand.u32 %v2353, 8388607
      %v2355 = vor.u32 %v2354, 8388608
      %v2356 = vsub.s32 0, %v2355
      %v2357 = vadd.s32 %v2352, 1
      %vm2358 = vcmp.gt.s32.totalorder %v2357, 0
      %v2359 = vsel %vm2358, %v2357, 0
      %v2360 = vshrl.u32 %v2359, 5
      %v2361 = vand.u32 %v2359, 31
      %v2362 = vsub.s32 32, %v2361
      %v2363 = vshrl.u32 683565275, %v2362
      %v2364 = vshll.u32 683565275, %v2361
      %v2365 = vshrl.u32 2475754826, %v2362
      %v2366 = vor.u32 %v2364, %v2365
      %v2367 = vshll.u32 2475754826, %v2361
      %v2368 = vshrl.u32 2131351028, %v2362
      %v2369 = vor.u32 %v2367, %v2368
      %v2370 = vshll.u32 2131351028, %v2361
      %v2371 = vshrl.u32 2102212464, %v2362
      %v2372 = vor.u32 %v2370, %v2371
      %v2373 = vshll.u32 2102212464, %v2361
      %v2374 = vshrl.u32 920167782, %v2362
      %v2375 = vor.u32 %v2373, %v2374
      %v2376 = vshll.u32 920167782, %v2361
      %v2377 = vshrl.u32 1326507024, %v2362
      %v2378 = vor.u32 %v2376, %v2377
      %vm2379 = vcmp.lt.s32.totalorder %v2360, 1
      %vm2380 = vcmp.lt.s32.totalorder %v2360, 2
      %vm2381 = vcmp.lt.s32.totalorder %v2360, 3
      %vm2382 = vcmp.lt.s32.totalorder %v2360, 4
      %v2383 = vsel %vm2379, %v2363, %v2366
      %v2384 = vsel %vm2382, %v2372, 2102212464
      %v2385 = vsel %vm2381, %v2369, %v2384
      %v2386 = vsel %vm2380, %v2383, %v2385
      %v2387 = vsel %vm2379, %v2366, %v2369
      %v2388 = vsel %vm2382, %v2375, 920167782
      %v2389 = vsel %vm2381, %v2372, %v2388
      %v2390 = vsel %vm2380, %v2387, %v2389
      %v2391 = vsel %vm2379, %v2369, %v2372
      %v2392 = vsel %vm2382, %v2378, 1326507024
      %v2393 = vsel %vm2381, %v2375, %v2392
      %v2394 = vsel %vm2380, %v2391, %v2393
      %v2395 = vshll.u32 %v2355, 8
      %v2396 = vmul.u32.u64.compose %v2395, %v2394
      %v2397 = vextract.low.u32 %v2396
      %v2398 = vextract.high.u32 %v2396
      %v2399 = vmul.u32.u64.compose %v2395, %v2390
      %v2400 = vextract.low.u32 %v2399
      %v2401 = vextract.high.u32 %v2399
      %v2402 = vmul.u32 %v2395, %v2386
      %v2403 = vadd.s32 %v2398, %v2400
      %vm2404 = vc.u32 %v2398, %v2400
      %v2405 = vadd.s32 %v2401, 1
      %v2406 = vsel %vm2404, %v2405, %v2401
      %v2407 = vadd.s32 %v2402, %v2406
      %v2408 = vadd.s32 %v2407, 536870912
      %v2409 = vshrl.u32 %v2408, 30
      %v2410 = vshll.u32 %v2409, 30
      %v2411 = vsub.s32 %v2407, %v2410
      %vm2412 = vcmp.lt.s32.totalorder %v2411, 0
      %v2413 = vsub.s32 0, %v2411
      %v2414 = vsel %vm2412, %v2413, %v2411
      %v2415 = vclz %v2414
      %v2416 = vsub.s32 %v2415, 2
      %vm2417 = vcmp.gt.s32.totalorder 0, %v2416
      %v2418 = vsel %vm2417, 0, %v2416
      %v2419 = vsub.s32 32, %v2418
      %v2420 = vshll.u32 %v2411, %v2418
      %v2421 = vshrl.u32 %v2403, %v2419
      %v2422 = vor.u32 %v2420, %v2421
      %v2423 = vsub.s32 4294967266, %v2418
      %v2424 = vadd.s32 %v2423, 127
      %v2425 = vshll.u32 %v2424, 23
      %v2426 = vor.u32 4788187, %v2425
      %v2427 = vand.u32 2147483647, %v2426
      %v2429 = vcvt.s32.f32 %v2422
      %v2430 = vmul.f32 %v2429, %v2427
      %v2431 = vxor.u32 %v2430, 2147483648
      %v2432 = vsel %vm2349, %v2431, %v2430
      %v2433 = vsub.s32 4, %v2409
      %v2434 = vsel %vm2349, %v2433, %v2409
      %v2435 = vsel %vm2348, %v487, %v2432
      %v2436 = vsel %vm2348, 0, %v2434
      %v2437 = vcosq.f32.pop %v2435
      %v2438 = vsinq.f32.pop %v2435
      %vm2439 = vweird.f32 %v487
      %v2440 = vand.u32 %v2436, 3
      %vm2441 = vcmp.lt.s32.totalorder %v2440, 2
      %vm2442 = vcmp.eq.s32.totalorder %v2440, 0
      %v2443 = vxor.u32 %v2438, 2147483648
      %v2444 = vsel %vm2442, %v2437, %v2443
      %vm2445 = vcmp.eq.s32.totalorder %v2440, 2
      %v2446 = vxor.u32 %v2437, 2147483648
      %v2447 = vsel %vm2445, %v2446, %v2438
      %v2448 = vsel %vm2441, %v2444, %v2447
      %v2449 = vsel %vm2439, nan, %v2448
      %v2450 = vand.u32 2147483647, %v488
      %vm2451 = vcmp.le.f32.partialorder %v2450, 0.7853982
      %vm2452 = vcmp.lt.s32.totalorder %v488, 0
      %v2453 = vand.u32 %v488, 2139095040
      %v2454 = vshrl.u32 %v2453, 23
      %v2455 = vsub.s32 %v2454, 127
      %v2456 = vand.u32 2147483647, %v488
      %v2457 = vand.u32 %v2456, 8388607
      %v2458 = vor.u32 %v2457, 8388608
      %v2459 = vsub.s32 0, %v2458
      %v2460 = vadd.s32 %v2455, 1
      %vm2461 = vcmp.gt.s32.totalorder %v2460, 0
      %v2462 = vsel %vm2461, %v2460, 0
      %v2463 = vshrl.u32 %v2462, 5
      %v2464 = vand.u32 %v2462, 31
      %v2465 = vsub.s32 32, %v2464
      %v2466 = vshrl.u32 683565275, %v2465
      %v2467 = vshll.u32 683565275, %v2464
      %v2468 = vshrl.u32 2475754826, %v2465
      %v2469 = vor.u32 %v2467, %v2468
      %v2470 = vshll.u32 2475754826, %v2464
      %v2471 = vshrl.u32 2131351028, %v2465
      %v2472 = vor.u32 %v2470, %v2471
      %v2473 = vshll.u32 2131351028, %v2464
      %v2474 = vshrl.u32 2102212464, %v2465
      %v2475 = vor.u32 %v2473, %v2474
      %v2476 = vshll.u32 2102212464, %v2464
      %v2477 = vshrl.u32 920167782, %v2465
      %v2478 = vor.u32 %v2476, %v2477
      %v2479 = vshll.u32 920167782, %v2464
      %v2480 = vshrl.u32 1326507024, %v2465
      %v2481 = vor.u32 %v2479, %v2480
      %vm2482 = vcmp.lt.s32.totalorder %v2463, 1
      %vm2483 = vcmp.lt.s32.totalorder %v2463, 2
      %vm2484 = vcmp.lt.s32.totalorder %v2463, 3
      %vm2485 = vcmp.lt.s32.totalorder %v2463, 4
      %v2486 = vsel %vm2482, %v2466, %v2469
      %v2487 = vsel %vm2485, %v2475, 2102212464
      %v2488 = vsel %vm2484, %v2472, %v2487
      %v2489 = vsel %vm2483, %v2486, %v2488
      %v2490 = vsel %vm2482, %v2469, %v2472
      %v2491 = vsel %vm2485, %v2478, 920167782
      %v2492 = vsel %vm2484, %v2475, %v2491
      %v2493 = vsel %vm2483, %v2490, %v2492
      %v2494 = vsel %vm2482, %v2472, %v2475
      %v2495 = vsel %vm2485, %v2481, 1326507024
      %v2496 = vsel %vm2484, %v2478, %v2495
      %v2497 = vsel %vm2483, %v2494, %v2496
      %v2498 = vshll.u32 %v2458, 8
      %v2499 = vmul.u32.u64.compose %v2498, %v2497
      %v2500 = vextract.low.u32 %v2499
      %v2501 = vextract.high.u32 %v2499
      %v2502 = vmul.u32.u64.compose %v2498, %v2493
      %v2503 = vextract.low.u32 %v2502
      %v2504 = vextract.high.u32 %v2502
      %v2505 = vmul.u32 %v2498, %v2489
      %v2506 = vadd.s32 %v2501, %v2503
      %vm2507 = vc.u32 %v2501, %v2503
      %v2508 = vadd.s32 %v2504, 1
      %v2509 = vsel %vm2507, %v2508, %v2504
      %v2510 = vadd.s32 %v2505, %v2509
      %v2511 = vadd.s32 %v2510, 536870912
      %v2512 = vshrl.u32 %v2511, 30
      %v2513 = vshll.u32 %v2512, 30
      %v2514 = vsub.s32 %v2510, %v2513
      %vm2515 = vcmp.lt.s32.totalorder %v2514, 0
      %v2516 = vsub.s32 0, %v2514
      %v2517 = vsel %vm2515, %v2516, %v2514
      %v2518 = vclz %v2517
      %v2519 = vsub.s32 %v2518, 2
      %vm2520 = vcmp.gt.s32.totalorder 0, %v2519
      %v2521 = vsel %vm2520, 0, %v2519
      %v2522 = vsub.s32 32, %v2521
      %v2523 = vshll.u32 %v2514, %v2521
      %v2524 = vshrl.u32 %v2506, %v2522
      %v2525 = vor.u32 %v2523, %v2524
      %v2526 = vsub.s32 4294967266, %v2521
      %v2527 = vadd.s32 %v2526, 127
      %v2528 = vshll.u32 %v2527, 23
      %v2529 = vor.u32 4788187, %v2528
      %v2530 = vand.u32 2147483647, %v2529
      %v2532 = vcvt.s32.f32 %v2525
      %v2533 = vmul.f32 %v2532, %v2530
      %v2534 = vxor.u32 %v2533, 2147483648
      %v2535 = vsel %vm2452, %v2534, %v2533
      %v2536 = vsub.s32 4, %v2512
      %v2537 = vsel %vm2452, %v2536, %v2512
      %v2538 = vsel %vm2451, %v488, %v2535
      %v2539 = vsel %vm2451, 0, %v2537
      %v2540 = vcosq.f32.pop %v2538
      %v2541 = vsinq.f32.pop %v2538
      %vm2542 = vweird.f32 %v488
      %v2543 = vand.u32 %v2539, 3
      %vm2544 = vcmp.lt.s32.totalorder %v2543, 2
      %vm2545 = vcmp.eq.s32.totalorder %v2543, 0
      %v2546 = vxor.u32 %v2541, 2147483648
      %v2547 = vsel %vm2545, %v2540, %v2546
      %vm2548 = vcmp.eq.s32.totalorder %v2543, 2
      %v2549 = vxor.u32 %v2540, 2147483648
      %v2550 = vsel %vm2548, %v2549, %v2541
      %v2551 = vsel %vm2544, %v2547, %v2550
      %v2552 = vsel %vm2542, nan, %v2551
      %v2553 = vand.u32 2147483647, %v489
      %vm2554 = vcmp.le.f32.partialorder %v2553, 0.7853982
      %vm2555 = vcmp.lt.s32.totalorder %v489, 0
      %v2556 = vand.u32 %v489, 2139095040
      %v2557 = vshrl.u32 %v2556, 23
      %v2558 = vsub.s32 %v2557, 127
      %v2559 = vand.u32 2147483647, %v489
      %v2560 = vand.u32 %v2559, 8388607
      %v2561 = vor.u32 %v2560, 8388608
      %v2562 = vsub.s32 0, %v2561
      %v2563 = vadd.s32 %v2558, 1
      %vm2564 = vcmp.gt.s32.totalorder %v2563, 0
      %v2565 = vsel %vm2564, %v2563, 0
      %v2566 = vshrl.u32 %v2565, 5
      %v2567 = vand.u32 %v2565, 31
      %v2568 = vsub.s32 32, %v2567
      %v2569 = vshrl.u32 683565275, %v2568
      %v2570 = vshll.u32 683565275, %v2567
      %v2571 = vshrl.u32 2475754826, %v2568
      %v2572 = vor.u32 %v2570, %v2571
      %v2573 = vshll.u32 2475754826, %v2567
      %v2574 = vshrl.u32 2131351028, %v2568
      %v2575 = vor.u32 %v2573, %v2574
      %v2576 = vshll.u32 2131351028, %v2567
      %v2577 = vshrl.u32 2102212464, %v2568
      %v2578 = vor.u32 %v2576, %v2577
      %v2579 = vshll.u32 2102212464, %v2567
      %v2580 = vshrl.u32 920167782, %v2568
      %v2581 = vor.u32 %v2579, %v2580
      %v2582 = vshll.u32 920167782, %v2567
      %v2583 = vshrl.u32 1326507024, %v2568
      %v2584 = vor.u32 %v2582, %v2583
      %vm2585 = vcmp.lt.s32.totalorder %v2566, 1
      %vm2586 = vcmp.lt.s32.totalorder %v2566, 2
      %vm2587 = vcmp.lt.s32.totalorder %v2566, 3
      %vm2588 = vcmp.lt.s32.totalorder %v2566, 4
      %v2589 = vsel %vm2585, %v2569, %v2572
      %v2590 = vsel %vm2588, %v2578, 2102212464
      %v2591 = vsel %vm2587, %v2575, %v2590
      %v2592 = vsel %vm2586, %v2589, %v2591
      %v2593 = vsel %vm2585, %v2572, %v2575
      %v2594 = vsel %vm2588, %v2581, 920167782
      %v2595 = vsel %vm2587, %v2578, %v2594
      %v2596 = vsel %vm2586, %v2593, %v2595
      %v2597 = vsel %vm2585, %v2575, %v2578
      %v2598 = vsel %vm2588, %v2584, 1326507024
      %v2599 = vsel %vm2587, %v2581, %v2598
      %v2600 = vsel %vm2586, %v2597, %v2599
      %v2601 = vshll.u32 %v2561, 8
      %v2602 = vmul.u32.u64.compose %v2601, %v2600
      %v2603 = vextract.low.u32 %v2602
      %v2604 = vextract.high.u32 %v2602
      %v2605 = vmul.u32.u64.compose %v2601, %v2596
      %v2606 = vextract.low.u32 %v2605
      %v2607 = vextract.high.u32 %v2605
      %v2608 = vmul.u32 %v2601, %v2592
      %v2609 = vadd.s32 %v2604, %v2606
      %vm2610 = vc.u32 %v2604, %v2606
      %v2611 = vadd.s32 %v2607, 1
      %v2612 = vsel %vm2610, %v2611, %v2607
      %v2613 = vadd.s32 %v2608, %v2612
      %v2614 = vadd.s32 %v2613, 536870912
      %v2615 = vshrl.u32 %v2614, 30
      %v2616 = vshll.u32 %v2615, 30
      %v2617 = vsub.s32 %v2613, %v2616
      %vm2618 = vcmp.lt.s32.totalorder %v2617, 0
      %v2619 = vsub.s32 0, %v2617
      %v2620 = vsel %vm2618, %v2619, %v2617
      %v2621 = vclz %v2620
      %v2622 = vsub.s32 %v2621, 2
      %vm2623 = vcmp.gt.s32.totalorder 0, %v2622
      %v2624 = vsel %vm2623, 0, %v2622
      %v2625 = vsub.s32 32, %v2624
      %v2626 = vshll.u32 %v2617, %v2624
      %v2627 = vshrl.u32 %v2609, %v2625
      %v2628 = vor.u32 %v2626, %v2627
      %v2629 = vsub.s32 4294967266, %v2624
      %v2630 = vadd.s32 %v2629, 127
      %v2631 = vshll.u32 %v2630, 23
      %v2632 = vor.u32 4788187, %v2631
      %v2633 = vand.u32 2147483647, %v2632
      %v2635 = vcvt.s32.f32 %v2628
      %v2636 = vmul.f32 %v2635, %v2633
      %v2637 = vxor.u32 %v2636, 2147483648
      %v2638 = vsel %vm2555, %v2637, %v2636
      %v2639 = vsub.s32 4, %v2615
      %v2640 = vsel %vm2555, %v2639, %v2615
      %v2641 = vsel %vm2554, %v489, %v2638
      %v2642 = vsel %vm2554, 0, %v2640
      %v2643 = vcosq.f32.pop %v2641
      %v2644 = vsinq.f32.pop %v2641
      %vm2645 = vweird.f32 %v489
      %v2646 = vand.u32 %v2642, 3
      %vm2647 = vcmp.lt.s32.totalorder %v2646, 2
      %vm2648 = vcmp.eq.s32.totalorder %v2646, 0
      %v2649 = vxor.u32 %v2644, 2147483648
      %v2650 = vsel %vm2648, %v2643, %v2649
      %vm2651 = vcmp.eq.s32.totalorder %v2646, 2
      %v2652 = vxor.u32 %v2643, 2147483648
      %v2653 = vsel %vm2651, %v2652, %v2644
      %v2654 = vsel %vm2647, %v2650, %v2653
      %v2655 = vsel %vm2645, nan, %v2654
      %v2656 = vand.u32 2147483647, %v490
      %vm2657 = vcmp.le.f32.partialorder %v2656, 0.7853982
      %vm2658 = vcmp.lt.s32.totalorder %v490, 0
      %v2659 = vand.u32 %v490, 2139095040
      %v2660 = vshrl.u32 %v2659, 23
      %v2661 = vsub.s32 %v2660, 127
      %v2662 = vand.u32 2147483647, %v490
      %v2663 = vand.u32 %v2662, 8388607
      %v2664 = vor.u32 %v2663, 8388608
      %v2665 = vsub.s32 0, %v2664
      %v2666 = vadd.s32 %v2661, 1
      %vm2667 = vcmp.gt.s32.totalorder %v2666, 0
      %v2668 = vsel %vm2667, %v2666, 0
      %v2669 = vshrl.u32 %v2668, 5
      %v2670 = vand.u32 %v2668, 31
      %v2671 = vsub.s32 32, %v2670
      %v2672 = vshrl.u32 683565275, %v2671
      %v2673 = vshll.u32 683565275, %v2670
      %v2674 = vshrl.u32 2475754826, %v2671
      %v2675 = vor.u32 %v2673, %v2674
      %v2676 = vshll.u32 2475754826, %v2670
      %v2677 = vshrl.u32 2131351028, %v2671
      %v2678 = vor.u32 %v2676, %v2677
      %v2679 = vshll.u32 2131351028, %v2670
      %v2680 = vshrl.u32 2102212464, %v2671
      %v2681 = vor.u32 %v2679, %v2680
      %v2682 = vshll.u32 2102212464, %v2670
      %v2683 = vshrl.u32 920167782, %v2671
      %v2684 = vor.u32 %v2682, %v2683
      %v2685 = vshll.u32 920167782, %v2670
      %v2686 = vshrl.u32 1326507024, %v2671
      %v2687 = vor.u32 %v2685, %v2686
      %vm2688 = vcmp.lt.s32.totalorder %v2669, 1
      %vm2689 = vcmp.lt.s32.totalorder %v2669, 2
      %vm2690 = vcmp.lt.s32.totalorder %v2669, 3
      %vm2691 = vcmp.lt.s32.totalorder %v2669, 4
      %v2692 = vsel %vm2688, %v2672, %v2675
      %v2693 = vsel %vm2691, %v2681, 2102212464
      %v2694 = vsel %vm2690, %v2678, %v2693
      %v2695 = vsel %vm2689, %v2692, %v2694
      %v2696 = vsel %vm2688, %v2675, %v2678
      %v2697 = vsel %vm2691, %v2684, 920167782
      %v2698 = vsel %vm2690, %v2681, %v2697
      %v2699 = vsel %vm2689, %v2696, %v2698
      %v2700 = vsel %vm2688, %v2678, %v2681
      %v2701 = vsel %vm2691, %v2687, 1326507024
      %v2702 = vsel %vm2690, %v2684, %v2701
      %v2703 = vsel %vm2689, %v2700, %v2702
      %v2704 = vshll.u32 %v2664, 8
      %v2705 = vmul.u32.u64.compose %v2704, %v2703
      %v2706 = vextract.low.u32 %v2705
      %v2707 = vextract.high.u32 %v2705
      %v2708 = vmul.u32.u64.compose %v2704, %v2699
      %v2709 = vextract.low.u32 %v2708
      %v2710 = vextract.high.u32 %v2708
      %v2711 = vmul.u32 %v2704, %v2695
      %v2712 = vadd.s32 %v2707, %v2709
      %vm2713 = vc.u32 %v2707, %v2709
      %v2714 = vadd.s32 %v2710, 1
      %v2715 = vsel %vm2713, %v2714, %v2710
      %v2716 = vadd.s32 %v2711, %v2715
      %v2717 = vadd.s32 %v2716, 536870912
      %v2718 = vshrl.u32 %v2717, 30
      %v2719 = vshll.u32 %v2718, 30
      %v2720 = vsub.s32 %v2716, %v2719
      %vm2721 = vcmp.lt.s32.totalorder %v2720, 0
      %v2722 = vsub.s32 0, %v2720
      %v2723 = vsel %vm2721, %v2722, %v2720
      %v2724 = vclz %v2723
      %v2725 = vsub.s32 %v2724, 2
      %vm2726 = vcmp.gt.s32.totalorder 0, %v2725
      %v2727 = vsel %vm2726, 0, %v2725
      %v2728 = vsub.s32 32, %v2727
      %v2729 = vshll.u32 %v2720, %v2727
      %v2730 = vshrl.u32 %v2712, %v2728
      %v2731 = vor.u32 %v2729, %v2730
      %v2732 = vsub.s32 4294967266, %v2727
      %v2733 = vadd.s32 %v2732, 127
      %v2734 = vshll.u32 %v2733, 23
      %v2735 = vor.u32 4788187, %v2734
      %v2736 = vand.u32 2147483647, %v2735
      %v2738 = vcvt.s32.f32 %v2731
      %v2739 = vmul.f32 %v2738, %v2736
      %v2740 = vxor.u32 %v2739, 2147483648
      %v2741 = vsel %vm2658, %v2740, %v2739
      %v2742 = vsub.s32 4, %v2718
      %v2743 = vsel %vm2658, %v2742, %v2718
      %v2744 = vsel %vm2657, %v490, %v2741
      %v2745 = vsel %vm2657, 0, %v2743
      %v2746 = vcosq.f32.pop %v2744
      %v2747 = vsinq.f32.pop %v2744
      %vm2748 = vweird.f32 %v490
      %v2749 = vand.u32 %v2745, 3
      %vm2750 = vcmp.lt.s32.totalorder %v2749, 2
      %vm2751 = vcmp.eq.s32.totalorder %v2749, 0
      %v2752 = vxor.u32 %v2747, 2147483648
      %v2753 = vsel %vm2751, %v2746, %v2752
      %vm2754 = vcmp.eq.s32.totalorder %v2749, 2
      %v2755 = vxor.u32 %v2746, 2147483648
      %v2756 = vsel %vm2754, %v2755, %v2747
      %v2757 = vsel %vm2750, %v2753, %v2756
      %v2758 = vsel %vm2748, nan, %v2757
      %v2759 = vand.u32 2147483647, %v491
      %vm2760 = vcmp.le.f32.partialorder %v2759, 0.7853982
      %vm2761 = vcmp.lt.s32.totalorder %v491, 0
      %v2762 = vand.u32 %v491, 2139095040
      %v2763 = vshrl.u32 %v2762, 23
      %v2764 = vsub.s32 %v2763, 127
      %v2765 = vand.u32 2147483647, %v491
      %v2766 = vand.u32 %v2765, 8388607
      %v2767 = vor.u32 %v2766, 8388608
      %v2768 = vsub.s32 0, %v2767
      %v2769 = vadd.s32 %v2764, 1
      %vm2770 = vcmp.gt.s32.totalorder %v2769, 0
      %v2771 = vsel %vm2770, %v2769, 0
      %v2772 = vshrl.u32 %v2771, 5
      %v2773 = vand.u32 %v2771, 31
      %v2774 = vsub.s32 32, %v2773
      %v2775 = vshrl.u32 683565275, %v2774
      %v2776 = vshll.u32 683565275, %v2773
      %v2777 = vshrl.u32 2475754826, %v2774
      %v2778 = vor.u32 %v2776, %v2777
      %v2779 = vshll.u32 2475754826, %v2773
      %v2780 = vshrl.u32 2131351028, %v2774
      %v2781 = vor.u32 %v2779, %v2780
      %v2782 = vshll.u32 2131351028, %v2773
      %v2783 = vshrl.u32 2102212464, %v2774
      %v2784 = vor.u32 %v2782, %v2783
      %v2785 = vshll.u32 2102212464, %v2773
      %v2786 = vshrl.u32 920167782, %v2774
      %v2787 = vor.u32 %v2785, %v2786
      %v2788 = vshll.u32 920167782, %v2773
      %v2789 = vshrl.u32 1326507024, %v2774
      %v2790 = vor.u32 %v2788, %v2789
      %vm2791 = vcmp.lt.s32.totalorder %v2772, 1
      %vm2792 = vcmp.lt.s32.totalorder %v2772, 2
      %vm2793 = vcmp.lt.s32.totalorder %v2772, 3
      %vm2794 = vcmp.lt.s32.totalorder %v2772, 4
      %v2795 = vsel %vm2791, %v2775, %v2778
      %v2796 = vsel %vm2794, %v2784, 2102212464
      %v2797 = vsel %vm2793, %v2781, %v2796
      %v2798 = vsel %vm2792, %v2795, %v2797
      %v2799 = vsel %vm2791, %v2778, %v2781
      %v2800 = vsel %vm2794, %v2787, 920167782
      %v2801 = vsel %vm2793, %v2784, %v2800
      %v2802 = vsel %vm2792, %v2799, %v2801
      %v2803 = vsel %vm2791, %v2781, %v2784
      %v2804 = vsel %vm2794, %v2790, 1326507024
      %v2805 = vsel %vm2793, %v2787, %v2804
      %v2806 = vsel %vm2792, %v2803, %v2805
      %v2807 = vshll.u32 %v2767, 8
      %v2808 = vmul.u32.u64.compose %v2807, %v2806
      %v2809 = vextract.low.u32 %v2808
      %v2810 = vextract.high.u32 %v2808
      %v2811 = vmul.u32.u64.compose %v2807, %v2802
      %v2812 = vextract.low.u32 %v2811
      %v2813 = vextract.high.u32 %v2811
      %v2814 = vmul.u32 %v2807, %v2798
      %v2815 = vadd.s32 %v2810, %v2812
      %vm2816 = vc.u32 %v2810, %v2812
      %v2817 = vadd.s32 %v2813, 1
      %v2818 = vsel %vm2816, %v2817, %v2813
      %v2819 = vadd.s32 %v2814, %v2818
      %v2820 = vadd.s32 %v2819, 536870912
      %v2821 = vshrl.u32 %v2820, 30
      %v2822 = vshll.u32 %v2821, 30
      %v2823 = vsub.s32 %v2819, %v2822
      %vm2824 = vcmp.lt.s32.totalorder %v2823, 0
      %v2825 = vsub.s32 0, %v2823
      %v2826 = vsel %vm2824, %v2825, %v2823
      %v2827 = vclz %v2826
      %v2828 = vsub.s32 %v2827, 2
      %vm2829 = vcmp.gt.s32.totalorder 0, %v2828
      %v2830 = vsel %vm2829, 0, %v2828
      %v2831 = vsub.s32 32, %v2830
      %v2832 = vshll.u32 %v2823, %v2830
      %v2833 = vshrl.u32 %v2815, %v2831
      %v2834 = vor.u32 %v2832, %v2833
      %v2835 = vsub.s32 4294967266, %v2830
      %v2836 = vadd.s32 %v2835, 127
      %v2837 = vshll.u32 %v2836, 23
      %v2838 = vor.u32 4788187, %v2837
      %v2839 = vand.u32 2147483647, %v2838
      %v2841 = vcvt.s32.f32 %v2834
      %v2842 = vmul.f32 %v2841, %v2839
      %v2843 = vxor.u32 %v2842, 2147483648
      %v2844 = vsel %vm2761, %v2843, %v2842
      %v2845 = vsub.s32 4, %v2821
      %v2846 = vsel %vm2761, %v2845, %v2821
      %v2847 = vsel %vm2760, %v491, %v2844
      %v2848 = vsel %vm2760, 0, %v2846
      %v2849 = vcosq.f32.pop %v2847
      %v2850 = vsinq.f32.pop %v2847
      %vm2851 = vweird.f32 %v491
      %v2852 = vand.u32 %v2848, 3
      %vm2853 = vcmp.lt.s32.totalorder %v2852, 2
      %vm2854 = vcmp.eq.s32.totalorder %v2852, 0
      %v2855 = vxor.u32 %v2850, 2147483648
      %v2856 = vsel %vm2854, %v2849, %v2855
      %vm2857 = vcmp.eq.s32.totalorder %v2852, 2
      %v2858 = vxor.u32 %v2849, 2147483648
      %v2859 = vsel %vm2857, %v2858, %v2850
      %v2860 = vsel %vm2853, %v2856, %v2859
      %v2861 = vsel %vm2851, nan, %v2860
      %v2862 = vand.u32 2147483647, %v492
      %vm2863 = vcmp.le.f32.partialorder %v2862, 0.7853982
      %vm2864 = vcmp.lt.s32.totalorder %v492, 0
      %v2865 = vand.u32 %v492, 2139095040
      %v2866 = vshrl.u32 %v2865, 23
      %v2867 = vsub.s32 %v2866, 127
      %v2868 = vand.u32 2147483647, %v492
      %v2869 = vand.u32 %v2868, 8388607
      %v2870 = vor.u32 %v2869, 8388608
      %v2871 = vsub.s32 0, %v2870
      %v2872 = vadd.s32 %v2867, 1
      %vm2873 = vcmp.gt.s32.totalorder %v2872, 0
      %v2874 = vsel %vm2873, %v2872, 0
      %v2875 = vshrl.u32 %v2874, 5
      %v2876 = vand.u32 %v2874, 31
      %v2877 = vsub.s32 32, %v2876
      %v2878 = vshrl.u32 683565275, %v2877
      %v2879 = vshll.u32 683565275, %v2876
      %v2880 = vshrl.u32 2475754826, %v2877
      %v2881 = vor.u32 %v2879, %v2880
      %v2882 = vshll.u32 2475754826, %v2876
      %v2883 = vshrl.u32 2131351028, %v2877
      %v2884 = vor.u32 %v2882, %v2883
      %v2885 = vshll.u32 2131351028, %v2876
      %v2886 = vshrl.u32 2102212464, %v2877
      %v2887 = vor.u32 %v2885, %v2886
      %v2888 = vshll.u32 2102212464, %v2876
      %v2889 = vshrl.u32 920167782, %v2877
      %v2890 = vor.u32 %v2888, %v2889
      %v2891 = vshll.u32 920167782, %v2876
      %v2892 = vshrl.u32 1326507024, %v2877
      %v2893 = vor.u32 %v2891, %v2892
      %vm2894 = vcmp.lt.s32.totalorder %v2875, 1
      %vm2895 = vcmp.lt.s32.totalorder %v2875, 2
      %vm2896 = vcmp.lt.s32.totalorder %v2875, 3
      %vm2897 = vcmp.lt.s32.totalorder %v2875, 4
      %v2898 = vsel %vm2894, %v2878, %v2881
      %v2899 = vsel %vm2897, %v2887, 2102212464
      %v2900 = vsel %vm2896, %v2884, %v2899
      %v2901 = vsel %vm2895, %v2898, %v2900
      %v2902 = vsel %vm2894, %v2881, %v2884
      %v2903 = vsel %vm2897, %v2890, 920167782
      %v2904 = vsel %vm2896, %v2887, %v2903
      %v2905 = vsel %vm2895, %v2902, %v2904
      %v2906 = vsel %vm2894, %v2884, %v2887
      %v2907 = vsel %vm2897, %v2893, 1326507024
      %v2908 = vsel %vm2896, %v2890, %v2907
      %v2909 = vsel %vm2895, %v2906, %v2908
      %v2910 = vshll.u32 %v2870, 8
      %v2911 = vmul.u32.u64.compose %v2910, %v2909
      %v2912 = vextract.low.u32 %v2911
      %v2913 = vextract.high.u32 %v2911
      %v2914 = vmul.u32.u64.compose %v2910, %v2905
      %v2915 = vextract.low.u32 %v2914
      %v2916 = vextract.high.u32 %v2914
      %v2917 = vmul.u32 %v2910, %v2901
      %v2918 = vadd.s32 %v2913, %v2915
      %vm2919 = vc.u32 %v2913, %v2915
      %v2920 = vadd.s32 %v2916, 1
      %v2921 = vsel %vm2919, %v2920, %v2916
      %v2922 = vadd.s32 %v2917, %v2921
      %v2923 = vadd.s32 %v2922, 536870912
      %v2924 = vshrl.u32 %v2923, 30
      %v2925 = vshll.u32 %v2924, 30
      %v2926 = vsub.s32 %v2922, %v2925
      %vm2927 = vcmp.lt.s32.totalorder %v2926, 0
      %v2928 = vsub.s32 0, %v2926
      %v2929 = vsel %vm2927, %v2928, %v2926
      %v2930 = vclz %v2929
      %v2931 = vsub.s32 %v2930, 2
      %vm2932 = vcmp.gt.s32.totalorder 0, %v2931
      %v2933 = vsel %vm2932, 0, %v2931
      %v2934 = vsub.s32 32, %v2933
      %v2935 = vshll.u32 %v2926, %v2933
      %v2936 = vshrl.u32 %v2918, %v2934
      %v2937 = vor.u32 %v2935, %v2936
      %v2938 = vsub.s32 4294967266, %v2933
      %v2939 = vadd.s32 %v2938, 127
      %v2940 = vshll.u32 %v2939, 23
      %v2941 = vor.u32 4788187, %v2940
      %v2942 = vand.u32 2147483647, %v2941
      %v2944 = vcvt.s32.f32 %v2937
      %v2945 = vmul.f32 %v2944, %v2942
      %v2946 = vxor.u32 %v2945, 2147483648
      %v2947 = vsel %vm2864, %v2946, %v2945
      %v2948 = vsub.s32 4, %v2924
      %v2949 = vsel %vm2864, %v2948, %v2924
      %v2950 = vsel %vm2863, %v492, %v2947
      %v2951 = vsel %vm2863, 0, %v2949
      %v2952 = vcosq.f32.pop %v2950
      %v2953 = vsinq.f32.pop %v2950
      %vm2954 = vweird.f32 %v492
      %v2955 = vand.u32 %v2951, 3
      %vm2956 = vcmp.lt.s32.totalorder %v2955, 2
      %vm2957 = vcmp.eq.s32.totalorder %v2955, 0
      %v2958 = vxor.u32 %v2953, 2147483648
      %v2959 = vsel %vm2957, %v2952, %v2958
      %vm2960 = vcmp.eq.s32.totalorder %v2955, 2
      %v2961 = vxor.u32 %v2952, 2147483648
      %v2962 = vsel %vm2960, %v2961, %v2953
      %v2963 = vsel %vm2956, %v2959, %v2962
      %v2964 = vsel %vm2954, nan, %v2963
      %2989 = vrot.lane.b32.xlu0 %v595, 80
      %v2990 = vpop.permute.xlu0 %2989
      %2991 = vrot.lane.b32.xlu0 %v698, 80
      %v2992 = vpop.permute.xlu0 %2991
      %2993 = vrot.lane.b32.xlu0 %v801, 80
      %v2994 = vpop.permute.xlu0 %2993
      %2995 = vrot.lane.b32.xlu0 %v904, 80
      %v2996 = vpop.permute.xlu0 %2995
      %2997 = vrot.lane.b32.xlu0 %v1007, 80
      %v2998 = vpop.permute.xlu0 %2997
      %2999 = vrot.lane.b32.xlu0 %v1110, 80
      %v3000 = vpop.permute.xlu0 %2999
      %3001 = vrot.lane.b32.xlu0 %v1213, 80
      %v3002 = vpop.permute.xlu0 %3001
      %3003 = vrot.lane.b32.xlu0 %v1316, 80
      %v3004 = vpop.permute.xlu0 %3003
      %3005 = vrot.lane.b32.xlu0 %v1419, 80
      %v3006 = vpop.permute.xlu0 %3005
      %3007 = vrot.lane.b32.xlu0 %v1522, 80
      %v3008 = vpop.permute.xlu0 %3007
      %3009 = vrot.lane.b32.xlu0 %v1625, 80
      %v3010 = vpop.permute.xlu0 %3009
      %3011 = vrot.lane.b32.xlu0 %v1728, 80
      %v3012 = vpop.permute.xlu0 %3011
      %3013 = vrot.lane.b32.xlu0 %v1831, 80
      %v3014 = vpop.permute.xlu0 %3013
      %3015 = vrot.lane.b32.xlu0 %v1934, 80
      %v3016 = vpop.permute.xlu0 %3015
      %3017 = vrot.lane.b32.xlu0 %v2037, 80
      %v3018 = vpop.permute.xlu0 %3017
      %3019 = vrot.lane.b32.xlu0 %v2140, 80
      %v3020 = vpop.permute.xlu0 %3019
      %3021 = vrot.lane.b32.xlu0 %v2243, 80
      %v3022 = vpop.permute.xlu0 %3021
      %3023 = vrot.lane.b32.xlu0 %v2346, 80
      %v3024 = vpop.permute.xlu0 %3023
      %3025 = vrot.lane.b32.xlu0 %v2449, 80
      %v3026 = vpop.permute.xlu0 %3025
      %3027 = vrot.lane.b32.xlu0 %v2552, 80
      %v3028 = vpop.permute.xlu0 %3027
      %3029 = vrot.lane.b32.xlu0 %v2655, 80
      %v3030 = vpop.permute.xlu0 %3029
      %3031 = vrot.lane.b32.xlu0 %v2758, 80
      %v3032 = vpop.permute.xlu0 %3031
      %3033 = vrot.lane.b32.xlu0 %v2861, 80
      %v3034 = vpop.permute.xlu0 %3033
      %3035 = vrot.lane.b32.xlu0 %v2964, 80
      %v3036 = vpop.permute.xlu0 %3035
      %vm3061 = vcmask 654336
      %v3062 = vsel %vm3061, %v147, %v2990
      %v3063 = vsel %vm3061, %v149, %v2992
      %v3064 = vsel %vm3061, %v151, %v2994
      %v3065 = vsel %vm3061, %v153, %v2996
      %v3066 = vsel %vm3061, %v155, %v2998
      %v3067 = vsel %vm3061, %v157, %v3000
      %v3068 = vsel %vm3061, %v159, %v3002
      %v3069 = vsel %vm3061, %v161, %v3004
      %v3070 = vsel %vm3061, %v163, %v3006
      %v3071 = vsel %vm3061, %v165, %v3008
      %v3072 = vsel %vm3061, %v167, %v3010
      %v3073 = vsel %vm3061, %v169, %v3012
      %v3074 = vsel %vm3061, %v171, %v3014
      %v3075 = vsel %vm3061, %v173, %v3016
      %v3076 = vsel %vm3061, %v175, %v3018
      %v3077 = vsel %vm3061, %v177, %v3020
      %v3078 = vsel %vm3061, %v179, %v3022
      %v3079 = vsel %vm3061, %v181, %v3024
      %v3080 = vsel %vm3061, %v183, %v3026
      %v3081 = vsel %vm3061, %v185, %v3028
      %v3082 = vsel %vm3061, %v187, %v3030
      %v3083 = vsel %vm3061, %v189, %v3032
      %v3084 = vsel %vm3061, %v191, %v3034
      %v3085 = vsel %vm3061, %v193, %v3036
      %v3086 = vld [vmem:[%s1] sm:$0xff]
      %v3087 = vld [vmem:[%s1 + $0x8] sm:$0xff]
      %v3088 = vld [vmem:[%s1 + $0x10] sm:$0xff]
      %v3089 = vld [vmem:[%s1 + $0x18] sm:$0xff]
      %v3090 = vld [vmem:[%s1 + $0x20] sm:$0xff]
      %v3091 = vld [vmem:[%s1 + $0x28] sm:$0xff]
      %v3092 = vld [vmem:[%s1 + $0x30] sm:$0xff]
      %v3093 = vld [vmem:[%s1 + $0x38] sm:$0xff]
      %v3094 = vld [vmem:[%s1 + $0x40] sm:$0xff]
      %v3095 = vld [vmem:[%s1 + $0x48] sm:$0xff]
      %v3096 = vld [vmem:[%s1 + $0x50] sm:$0xff]
      %v3097 = vld [vmem:[%s1 + $0xc8] sm:$0x1]
      %v3098 = vlaneseq
      %v3099 = vshrl.u32 %v3098, 7
      %v3100 = vsub.s32 0, %v3099
      %v3101 = vrot.slane %v3097, %v3100
      %vm3102 = vcmask 719872
      %v3104 = vsel %vm3102, %v3062, 0
      %v3107 = vsel %vm3102, %v3063, 0
      %v3110 = vsel %vm3102, %v3064, 0
      %v3113 = vsel %vm3102, %v3065, 0
      %v3116 = vsel %vm3102, %v3066, 0
      %v3119 = vsel %vm3102, %v3067, 0
      %v3122 = vsel %vm3102, %v3068, 0
      %v3125 = vsel %vm3102, %v3069, 0
      %v3128 = vsel %vm3102, %v3070, 0
      %v3131 = vsel %vm3102, %v3071, 0
      %v3134 = vsel %vm3102, %v3072, 0
      %v3137 = vsel %vm3102, %v3073, 0
      %v3140 = vsel %vm3102, %v3074, 0
      %v3143 = vsel %vm3102, %v3075, 0
      %v3146 = vsel %vm3102, %v3076, 0
      %v3149 = vsel %vm3102, %v3077, 0
      %v3152 = vsel %vm3102, %v3078, 0
      %v3155 = vsel %vm3102, %v3079, 0
      %v3158 = vsel %vm3102, %v3080, 0
      %v3161 = vsel %vm3102, %v3081, 0
      %v3164 = vsel %vm3102, %v3082, 0
      %v3167 = vsel %vm3102, %v3083, 0
      %v3170 = vsel %vm3102, %v3084, 0
      %v3173 = vsel %vm3102, %v3085, 0
      %3175 = vmatprep.subr.mxu0 0.0
      %3176 = vmatpush1.msra.mxu0 %v3086
      %3177 = vmatprep.subr.mxu0 0.0
      %3178 = vmatpush1.msra.mxu0 %v3087
      %3179 = vmatprep.subr.mxu0 0.0
      %3180 = vmatpush1.msra.mxu0 %v3088
      %3181 = vmatprep.subr.mxu0 0.0
      %3182 = vmatpush1.msra.mxu0 %v3089
      %3183 = vmatprep.subr.mxu0 0.0
      %3184 = vmatpush1.msra.mxu0 %v3090
      %3185 = vmatprep.subr.mxu0 0.0
      %3186 = vmatpush1.msra.mxu0 %v3091
      %3187 = vmatprep.subr.mxu0 0.0
      %3188 = vmatpush1.msra.mxu0 %v3092
      %3189 = vmatprep.subr.mxu0 0.0
      %3190 = vmatpush1.msra.mxu0 %v3093
      %3191 = vmatprep.subr.mxu0 0.0
      %3192 = vmatpush1.msra.mxu0 %v3094
      %3193 = vmatprep.subr.mxu0 0.0
      %3194 = vmatpush1.msra.mxu0 %v3095
      %3195 = vmatprep.subr.mxu0 0.0
      %3196 = vmatpush1.msra.mxu0 %v3096
      %3197 = vmatprep.subr.mxu0 0.0
      %3198 = vmatpush1.msra.mxu0 0.0
      %3199 = vmatprep.subr.mxu0 0.0
      %3200 = vmatpush1.msra.mxu0 0.0
      %3201 = vmatprep.subr.mxu0 0.0
      %3202 = vmatpush1.msra.mxu0 0.0
      %3203 = vmatprep.subr.mxu0 0.0
      %3204 = vmatpush1.msra.mxu0 0.0
      %3205 = vmatprep.subr.mxu0 0.0
      %3206 = vmatpush1.msra.mxu0 0.0
      %3207 = vmatprep.subr.mxu0 0.0
      %3208 = vmatpush1.msra.mxu0 0.0
      %3209 = vmatprep.subr.mxu0 0.0
      %3210 = vmatpush1.msra.mxu0 0.0
      %3211 = vmatprep.subr.mxu0 0.0
      %3212 = vmatpush1.msra.mxu0 0.0
      %3213 = vmatprep.subr.mxu0 0.0
      %3214 = vmatpush1.msra.mxu0 0.0
      %3215 = vmatprep.subr.mxu0 0.0
      %3216 = vmatpush1.msra.mxu0 0.0
      %3217 = vmatprep.subr.mxu0 0.0
      %3218 = vmatpush1.msra.mxu0 0.0
      %3219 = vmatprep.subr.mxu0 0.0
      %3220 = vmatpush1.msra.mxu0 0.0
      %3221 = vmatprep.subr.mxu0 0.0
      %3222 = vmatpush1.msra.mxu0 0.0
      %3223 = vmatprep.subr.mxu0 0.0
      %3224 = vmatpush1.msra.mxu0 0.0
      %3225 = vmatprep.subr.mxu0 0.0
      %3226 = vmatpush1.msra.mxu0 0.0
      %3227 = vmatprep.subr.mxu0 0.0
      %3228 = vmatpush1.msra.mxu0 0.0
      %3229 = vmatprep.subr.mxu0 0.0
      %3230 = vmatpush1.msra.mxu0 0.0
      %3231 = vmatprep.subr.mxu0 0.0
      %3232 = vmatpush1.msra.mxu0 0.0
      %3233 = vmatprep.subr.mxu0 0.0
      %3234 = vmatpush1.msra.mxu0 0.0
      %3235 = vmatprep.subr.mxu0 0.0
      %3236 = vmatpush1.msra.mxu0 0.0
      %3237 = vmatprep.subr.mxu0 0.0
      %3238 = vmatpush1.msra.mxu0 0.0
      %3239 = vmatprep.mubr.f32.mxu0 0.0
      %3240 = vmatmul.mubr.f32.gmra.mrb[0].mxu0 %v3104
      %v3241 = vpop.f32.mrb[0].mxu0
      %v3242 = vadd.f32 %v3101, %v3241
      %v3243 = vpop.f32.mrb[0].mxu0
      %3244 = vmatprep.mubr.f32.mxu0 0.0
      %3245 = vmatmul.mubr.f32.gmra.mrb[0].mxu0 %v3107
      %v3246 = vpop.f32.mrb[0].mxu0
      %v3247 = vadd.f32 %v3101, %v3246
      %v3248 = vpop.f32.mrb[0].mxu0
      %3249 = vmatprep.mubr.f32.mxu0 0.0
      %3250 = vmatmul.mubr.f32.gmra.mrb[0].mxu0 %v3110
      %v3251 = vpop.f32.mrb[0].mxu0
      %v3252 = vadd.f32 %v3101, %v3251
      %v3253 = vpop.f32.mrb[0].mxu0
      %3254 = vmatprep.mubr.f32.mxu0 0.0
      %3255 = vmatmul.mubr.f32.gmra.mrb[0].mxu0 %v3113
      %v3256 = vpop.f32.mrb[0].mxu0
      %v3257 = vadd.f32 %v3101, %v3256
      %v3258 = vpop.f32.mrb[0].mxu0
      %3259 = vmatprep.mubr.f32.mxu0 0.0
      %3260 = vmatmul.mubr.f32.gmra.mrb[0].mxu0 %v3116
      %v3261 = vpop.f32.mrb[0].mxu0
      %v3262 = vadd.f32 %v3101, %v3261
      %v3263 = vpop.f32.mrb[0].mxu0
      %3264 = vmatprep.mubr.f32.mxu0 0.0
      %3265 = vmatmul.mubr.f32.gmra.mrb[0].mxu0 %v3119
      %v3266 = vpop.f32.mrb[0].mxu0
      %v3267 = vadd.f32 %v3101, %v3266
      %v3268 = vpop.f32.mrb[0].mxu0
      %3269 = vmatprep.mubr.f32.mxu0 0.0
      %3270 = vmatmul.mubr.f32.gmra.mrb[0].mxu0 %v3122
      %v3271 = vpop.f32.mrb[0].mxu0
      %v3272 = vadd.f32 %v3101, %v3271
      %v3273 = vpop.f32.mrb[0].mxu0
      %3274 = vmatprep.mubr.f32.mxu0 0.0
      %3275 = vmatmul.mubr.f32.gmra.mrb[0].mxu0 %v3125
      %v3276 = vpop.f32.mrb[0].mxu0
      %v3277 = vadd.f32 %v3101, %v3276
      %v3278 = vpop.f32.mrb[0].mxu0
      %3279 = vmatprep.mubr.f32.mxu0 0.0
      %3280 = vmatmul.mubr.f32.gmra.mrb[0].mxu0 %v3128
      %v3281 = vpop.f32.mrb[0].mxu0
      %v3282 = vadd.f32 %v3101, %v3281
      %v3283 = vpop.f32.mrb[0].mxu0
      %3284 = vmatprep.mubr.f32.mxu0 0.0
      %3285 = vmatmul.mubr.f32.gmra.mrb[0].mxu0 %v3131
      %v3286 = vpop.f32.mrb[0].mxu0
      %v3287 = vadd.f32 %v3101, %v3286
      %v3288 = vpop.f32.mrb[0].mxu0
      %3289 = vmatprep.mubr.f32.mxu0 0.0
      %3290 = vmatmul.mubr.f32.gmra.mrb[0].mxu0 %v3134
      %v3291 = vpop.f32.mrb[0].mxu0
      %v3292 = vadd.f32 %v3101, %v3291
      %v3293 = vpop.f32.mrb[0].mxu0
      %3294 = vmatprep.mubr.f32.mxu0 0.0
      %3295 = vmatmul.mubr.f32.gmra.mrb[0].mxu0 %v3137
      %v3296 = vpop.f32.mrb[0].mxu0
      %v3297 = vadd.f32 %v3101, %v3296
      %v3298 = vpop.f32.mrb[0].mxu0
      %3299 = vmatprep.mubr.f32.mxu0 0.0
      %3300 = vmatmul.mubr.f32.gmra.mrb[0].mxu0 %v3140
      %v3301 = vpop.f32.mrb[0].mxu0
      %v3302 = vadd.f32 %v3101, %v3301
      %v3303 = vpop.f32.mrb[0].mxu0
      %3304 = vmatprep.mubr.f32.mxu0 0.0
      %3305 = vmatmul.mubr.f32.gmra.mrb[0].mxu0 %v3143
      %v3306 = vpop.f32.mrb[0].mxu0
      %v3307 = vadd.f32 %v3101, %v3306
      %v3308 = vpop.f32.mrb[0].mxu0
      %3309 = vmatprep.mubr.f32.mxu0 0.0
      %3310 = vmatmul.mubr.f32.gmra.mrb[0].mxu0 %v3146
      %v3311 = vpop.f32.mrb[0].mxu0
      %v3312 = vadd.f32 %v3101, %v3311
      %v3313 = vpop.f32.mrb[0].mxu0
      %3314 = vmatprep.mubr.f32.mxu0 0.0
      %3315 = vmatmul.mubr.f32.gmra.mrb[0].mxu0 %v3149
      %v3316 = vpop.f32.mrb[0].mxu0
      %v3317 = vadd.f32 %v3101, %v3316
      %v3318 = vpop.f32.mrb[0].mxu0
      %3319 = vmatprep.mubr.f32.mxu0 0.0
      %3320 = vmatmul.mubr.f32.gmra.mrb[0].mxu0 %v3152
      %v3321 = vpop.f32.mrb[0].mxu0
      %v3322 = vadd.f32 %v3101, %v3321
      %v3323 = vpop.f32.mrb[0].mxu0
      %3324 = vmatprep.mubr.f32.mxu0 0.0
      %3325 = vmatmul.mubr.f32.gmra.mrb[0].mxu0 %v3155
      %v3326 = vpop.f32.mrb[0].mxu0
      %v3327 = vadd.f32 %v3101, %v3326
      %v3328 = vpop.f32.mrb[0].mxu0
      %3329 = vmatprep.mubr.f32.mxu0 0.0
      %3330 = vmatmul.mubr.f32.gmra.mrb[0].mxu0 %v3158
      %v3331 = vpop.f32.mrb[0].mxu0
      %v3332 = vadd.f32 %v3101, %v3331
      %v3333 = vpop.f32.mrb[0].mxu0
      %3334 = vmatprep.mubr.f32.mxu0 0.0
      %3335 = vmatmul.mubr.f32.gmra.mrb[0].mxu0 %v3161
      %v3336 = vpop.f32.mrb[0].mxu0
      %v3337 = vadd.f32 %v3101, %v3336
      %v3338 = vpop.f32.mrb[0].mxu0
      %3339 = vmatprep.mubr.f32.mxu0 0.0
      %3340 = vmatmul.mubr.f32.gmra.mrb[0].mxu0 %v3164
      %v3341 = vpop.f32.mrb[0].mxu0
      %v3342 = vadd.f32 %v3101, %v3341
      %v3343 = vpop.f32.mrb[0].mxu0
      %3344 = vmatprep.mubr.f32.mxu0 0.0
      %3345 = vmatmul.mubr.f32.gmra.mrb[0].mxu0 %v3167
      %v3346 = vpop.f32.mrb[0].mxu0
      %v3347 = vadd.f32 %v3101, %v3346
      %v3348 = vpop.f32.mrb[0].mxu0
      %3349 = vmatprep.mubr.f32.mxu0 0.0
      %3350 = vmatmul.mubr.f32.gmra.mrb[0].mxu0 %v3170
      %v3351 = vpop.f32.mrb[0].mxu0
      %v3352 = vadd.f32 %v3101, %v3351
      %v3353 = vpop.f32.mrb[0].mxu0
      %3354 = vmatprep.mubr.f32.mxu0 0.0
      %3355 = vmatmul.mubr.f32.gmra.mrb[0].mxu0 %v3173
      %v3356 = vpop.f32.mrb[0].mxu0
      %v3357 = vadd.f32 %v3101, %v3356
      %v3358 = vpop.f32.mrb[0].mxu0
      %3359 = vdwg.mxu0
      %v3360 = vld [vmem:[%s1 + $0x58] sm:$0xff]
      %v3361 = vld [vmem:[%s1 + $0x60] sm:$0xff]
      %v3362 = vld [vmem:[%s1 + $0x68] sm:$0xff]
      %v3363 = vld [vmem:[%s1 + $0x70] sm:$0xff]
      %v3364 = vld [vmem:[%s1 + $0xc9] sm:$0x1]
      %v3365 = vlaneseq
      %v3366 = vshrl.u32 %v3365, 7
      %v3367 = vsub.s32 0, %v3366
      %v3368 = vrot.slane %v3364, %v3367
      %3393 = vrot.lane.b32.xlu0 %v147, 48
      %v3394 = vpop.permute.xlu0 %3393
      %3395 = vrot.lane.b32.xlu0 %v149, 48
      %v3396 = vpop.permute.xlu0 %3395
      %3397 = vrot.lane.b32.xlu0 %v151, 48
      %v3398 = vpop.permute.xlu0 %3397
      %3399 = vrot.lane.b32.xlu0 %v153, 48
      %v3400 = vpop.permute.xlu0 %3399
      %3401 = vrot.lane.b32.xlu0 %v155, 48
      %v3402 = vpop.permute.xlu0 %3401
      %3403 = vrot.lane.b32.xlu0 %v157, 48
      %v3404 = vpop.permute.xlu0 %3403
      %3405 = vrot.lane.b32.xlu0 %v159, 48
      %v3406 = vpop.permute.xlu0 %3405
      %3407 = vrot.lane.b32.xlu0 %v161, 48
      %v3408 = vpop.permute.xlu0 %3407
      %3409 = vrot.lane.b32.xlu0 %v163, 48
      %v3410 = vpop.permute.xlu0 %3409
      %3411 = vrot.lane.b32.xlu0 %v165, 48
      %v3412 = vpop.permute.xlu0 %3411
      %3413 = vrot.lane.b32.xlu0 %v167, 48
      %v3414 = vpop.permute.xlu0 %3413
      %3415 = vrot.lane.b32.xlu0 %v169, 48
      %v3416 = vpop.permute.xlu0 %3415
      %3417 = vrot.lane.b32.xlu0 %v171, 48
      %v3418 = vpop.permute.xlu0 %3417
      %3419 = vrot.lane.b32.xlu0 %v173, 48
      %v3420 = vpop.permute.xlu0 %3419
      %3421 = vrot.lane.b32.xlu0 %v175, 48
      %v3422 = vpop.permute.xlu0 %3421
      %3423 = vrot.lane.b32.xlu0 %v177, 48
      %v3424 = vpop.permute.xlu0 %3423
      %3425 = vrot.lane.b32.xlu0 %v179, 48
      %v3426 = vpop.permute.xlu0 %3425
      %3427 = vrot.lane.b32.xlu0 %v181, 48
      %v3428 = vpop.permute.xlu0 %3427
      %3429 = vrot.lane.b32.xlu0 %v183, 48
      %v3430 = vpop.permute.xlu0 %3429
      %3431 = vrot.lane.b32.xlu0 %v185, 48
      %v3432 = vpop.permute.xlu0 %3431
      %3433 = vrot.lane.b32.xlu0 %v187, 48
      %v3434 = vpop.permute.xlu0 %3433
      %3435 = vrot.lane.b32.xlu0 %v189, 48
      %v3436 = vpop.permute.xlu0 %3435
      %3437 = vrot.lane.b32.xlu0 %v191, 48
      %v3438 = vpop.permute.xlu0 %3437
      %3439 = vrot.lane.b32.xlu0 %v193, 48
      %v3440 = vpop.permute.xlu0 %3439
      %vm3441 = vcmask 261120
      %v3442 = vsel %vm3441, %v3394, 0
      %v3444 = vsel %vm3441, %v3396, 0
      %v3446 = vsel %vm3441, %v3398, 0
      %v3448 = vsel %vm3441, %v3400, 0
      %v3450 = vsel %vm3441, %v3402, 0
      %v3452 = vsel %vm3441, %v3404, 0
      %v3454 = vsel %vm3441, %v3406, 0
      %v3456 = vsel %vm3441, %v3408, 0
      %v3458 = vsel %vm3441, %v3410, 0
      %v3460 = vsel %vm3441, %v3412, 0
      %v3462 = vsel %vm3441, %v3414, 0
      %v3464 = vsel %vm3441, %v3416, 0
      %v3466 = vsel %vm3441, %v3418, 0
      %v3468 = vsel %vm3441, %v3420, 0
      %v3470 = vsel %vm3441, %v3422, 0
      %v3472 = vsel %vm3441, %v3424, 0
      %v3474 = vsel %vm3441, %v3426, 0
      %v3476 = vsel %vm3441, %v3428, 0
      %v3478 = vsel %vm3441, %v3430, 0
      %v3480 = vsel %vm3441, %v3432, 0
      %v3482 = vsel %vm3441, %v3434, 0
      %v3484 = vsel %vm3441, %v3436, 0
      %v3486 = vsel %vm3441, %v3438, 0
      %v3488 = vsel %vm3441, %v3440, 0
      %3490 = vmatprep.subr.mxu0 0.0
      %3491 = vmatpush1.msra.mxu0 %v3360
      %3492 = vmatprep.subr.mxu0 0.0
      %3493 = vmatpush1.msra.mxu0 %v3361
      %3494 = vmatprep.subr.mxu0 0.0
      %3495 = vmatpush1.msra.mxu0 %v3362
      %3496 = vmatprep.subr.mxu0 0.0
      %3497 = vmatpush1.msra.mxu0 %v3363
      %3498 = vmatprep.subr.mxu0 0.0
      %3499 = vmatpush1.msra.mxu0 0.0
      %3500 = vmatprep.subr.mxu0 0.0
      %3501 = vmatpush1.msra.mxu0 0.0
      %3502 = vmatprep.subr.mxu0 0.0
      %3503 = vmatpush1.msra.mxu0 0.0
      %3504 = vmatprep.subr.mxu0 0.0
      %3505 = vmatpush1.msra.mxu0 0.0
      %3506 = vmatprep.subr.mxu0 0.0
      %3507 = vmatpush1.msra.mxu0 0.0
      %3508 = vmatprep.subr.mxu0 0.0
      %3509 = vmatpush1.msra.mxu0 0.0
      %3510 = vmatprep.subr.mxu0 0.0
      %3511 = vmatpush1.msra.mxu0 0.0
      %3512 = vmatprep.subr.mxu0 0.0
      %3513 = vmatpush1.msra.mxu0 0.0
      %3514 = vmatprep.subr.mxu0 0.0
      %3515 = vmatpush1.msra.mxu0 0.0
      %3516 = vmatprep.subr.mxu0 0.0
      %3517 = vmatpush1.msra.mxu0 0.0
      %3518 = vmatprep.subr.mxu0 0.0
      %3519 = vmatpush1.msra.mxu0 0.0
      %3520 = vmatprep.subr.mxu0 0.0
      %3521 = vmatpush1.msra.mxu0 0.0
      %3522 = vmatprep.subr.mxu0 0.0
      %3523 = vmatpush1.msra.mxu0 0.0
      %3524 = vmatprep.subr.mxu0 0.0
      %3525 = vmatpush1.msra.mxu0 0.0
      %3526 = vmatprep.subr.mxu0 0.0
      %3527 = vmatpush1.msra.mxu0 0.0
      %3528 = vmatprep.subr.mxu0 0.0
      %3529 = vmatpush1.msra.mxu0 0.0
      %3530 = vmatprep.subr.mxu0 0.0
      %3531 = vmatpush1.msra.mxu0 0.0
      %3532 = vmatprep.subr.mxu0 0.0
      %3533 = vmatpush1.msra.mxu0 0.0
      %3534 = vmatprep.subr.mxu0 0.0
      %3535 = vmatpush1.msra.mxu0 0.0
      %3536 = vmatprep.subr.mxu0 0.0
      %3537 = vmatpush1.msra.mxu0 0.0
      %3538 = vmatprep.subr.mxu0 0.0
      %3539 = vmatpush1.msra.mxu0 0.0
      %3540 = vmatprep.subr.mxu0 0.0
      %3541 = vmatpush1.msra.mxu0 0.0
      %3542 = vmatprep.subr.mxu0 0.0
      %3543 = vmatpush1.msra.mxu0 0.0
      %3544 = vmatprep.subr.mxu0 0.0
      %3545 = vmatpush1.msra.mxu0 0.0
      %3546 = vmatprep.subr.mxu0 0.0
      %3547 = vmatpush1.msra.mxu0 0.0
      %3548 = vmatprep.subr.mxu0 0.0
      %3549 = vmatpush1.msra.mxu0 0.0
      %3550 = vmatprep.subr.mxu0 0.0
      %3551 = vmatpush1.msra.mxu0 0.0
      %3552 = vmatprep.subr.mxu0 0.0
      %3553 = vmatpush1.msra.mxu0 0.0
      %3554 = vmatprep.mubr.f32.mxu0 0.0
      %3555 = vmatmul.mubr.f32.gmra.mrb[0].mxu0 %v3442
      %v3556 = vpop.f32.mrb[0].mxu0
      %v3557 = vadd.f32 %v3368, %v3556
      %v3558 = vpop.f32.mrb[0].mxu0
      %3559 = vmatprep.mubr.f32.mxu0 0.0
      %3560 = vmatmul.mubr.f32.gmra.mrb[0].mxu0 %v3444
      %v3561 = vpop.f32.mrb[0].mxu0
      %v3562 = vadd.f32 %v3368, %v3561
      %v3563 = vpop.f32.mrb[0].mxu0
      %3564 = vmatprep.mubr.f32.mxu0 0.0
      %3565 = vmatmul.mubr.f32.gmra.mrb[0].mxu0 %v3446
      %v3566 = vpop.f32.mrb[0].mxu0
      %v3567 = vadd.f32 %v3368, %v3566
      %v3568 = vpop.f32.mrb[0].mxu0
      %3569 = vmatprep.mubr.f32.mxu0 0.0
      %3570 = vmatmul.mubr.f32.gmra.mrb[0].mxu0 %v3448
      %v3571 = vpop.f32.mrb[0].mxu0
      %v3572 = vadd.f32 %v3368, %v3571
      %v3573 = vpop.f32.mrb[0].mxu0
      %3574 = vmatprep.mubr.f32.mxu0 0.0
      %3575 = vmatmul.mubr.f32.gmra.mrb[0].mxu0 %v3450
      %v3576 = vpop.f32.mrb[0].mxu0
      %v3577 = vadd.f32 %v3368, %v3576
      %v3578 = vpop.f32.mrb[0].mxu0
      %3579 = vmatprep.mubr.f32.mxu0 0.0
      %3580 = vmatmul.mubr.f32.gmra.mrb[0].mxu0 %v3452
      %v3581 = vpop.f32.mrb[0].mxu0
      %v3582 = vadd.f32 %v3368, %v3581
      %v3583 = vpop.f32.mrb[0].mxu0
      %3584 = vmatprep.mubr.f32.mxu0 0.0
      %3585 = vmatmul.mubr.f32.gmra.mrb[0].mxu0 %v3454
      %v3586 = vpop.f32.mrb[0].mxu0
      %v3587 = vadd.f32 %v3368, %v3586
      %v3588 = vpop.f32.mrb[0].mxu0
      %3589 = vmatprep.mubr.f32.mxu0 0.0
      %3590 = vmatmul.mubr.f32.gmra.mrb[0].mxu0 %v3456
      %v3591 = vpop.f32.mrb[0].mxu0
      %v3592 = vadd.f32 %v3368, %v3591
      %v3593 = vpop.f32.mrb[0].mxu0
      %3594 = vmatprep.mubr.f32.mxu0 0.0
      %3595 = vmatmul.mubr.f32.gmra.mrb[0].mxu0 %v3458
      %v3596 = vpop.f32.mrb[0].mxu0
      %v3597 = vadd.f32 %v3368, %v3596
      %v3598 = vpop.f32.mrb[0].mxu0
      %3599 = vmatprep.mubr.f32.mxu0 0.0
      %3600 = vmatmul.mubr.f32.gmra.mrb[0].mxu0 %v3460
      %v3601 = vpop.f32.mrb[0].mxu0
      %v3602 = vadd.f32 %v3368, %v3601
      %v3603 = vpop.f32.mrb[0].mxu0
      %3604 = vmatprep.mubr.f32.mxu0 0.0
      %3605 = vmatmul.mubr.f32.gmra.mrb[0].mxu0 %v3462
      %v3606 = vpop.f32.mrb[0].mxu0
      %v3607 = vadd.f32 %v3368, %v3606
      %v3608 = vpop.f32.mrb[0].mxu0
      %3609 = vmatprep.mubr.f32.mxu0 0.0
      %3610 = vmatmul.mubr.f32.gmra.mrb[0].mxu0 %v3464
      %v3611 = vpop.f32.mrb[0].mxu0
      %v3612 = vadd.f32 %v3368, %v3611
      %v3613 = vpop.f32.mrb[0].mxu0
      %3614 = vmatprep.mubr.f32.mxu0 0.0
      %3615 = vmatmul.mubr.f32.gmra.mrb[0].mxu0 %v3466
      %v3616 = vpop.f32.mrb[0].mxu0
      %v3617 = vadd.f32 %v3368, %v3616
      %v3618 = vpop.f32.mrb[0].mxu0
      %3619 = vmatprep.mubr.f32.mxu0 0.0
      %3620 = vmatmul.mubr.f32.gmra.mrb[0].mxu0 %v3468
      %v3621 = vpop.f32.mrb[0].mxu0
      %v3622 = vadd.f32 %v3368, %v3621
      %v3623 = vpop.f32.mrb[0].mxu0
      %3624 = vmatprep.mubr.f32.mxu0 0.0
      %3625 = vmatmul.mubr.f32.gmra.mrb[0].mxu0 %v3470
      %v3626 = vpop.f32.mrb[0].mxu0
      %v3627 = vadd.f32 %v3368, %v3626
      %v3628 = vpop.f32.mrb[0].mxu0
      %3629 = vmatprep.mubr.f32.mxu0 0.0
      %3630 = vmatmul.mubr.f32.gmra.mrb[0].mxu0 %v3472
      %v3631 = vpop.f32.mrb[0].mxu0
      %v3632 = vadd.f32 %v3368, %v3631
      %v3633 = vpop.f32.mrb[0].mxu0
      %3634 = vmatprep.mubr.f32.mxu0 0.0
      %3635 = vmatmul.mubr.f32.gmra.mrb[0].mxu0 %v3474
      %v3636 = vpop.f32.mrb[0].mxu0
      %v3637 = vadd.f32 %v3368, %v3636
      %v3638 = vpop.f32.mrb[0].mxu0
      %3639 = vmatprep.mubr.f32.mxu0 0.0
      %3640 = vmatmul.mubr.f32.gmra.mrb[0].mxu0 %v3476
      %v3641 = vpop.f32.mrb[0].mxu0
      %v3642 = vadd.f32 %v3368, %v3641
      %v3643 = vpop.f32.mrb[0].mxu0
      %3644 = vmatprep.mubr.f32.mxu0 0.0
      %3645 = vmatmul.mubr.f32.gmra.mrb[0].mxu0 %v3478
      %v3646 = vpop.f32.mrb[0].mxu0
      %v3647 = vadd.f32 %v3368, %v3646
      %v3648 = vpop.f32.mrb[0].mxu0
      %3649 = vmatprep.mubr.f32.mxu0 0.0
      %3650 = vmatmul.mubr.f32.gmra.mrb[0].mxu0 %v3480
      %v3651 = vpop.f32.mrb[0].mxu0
      %v3652 = vadd.f32 %v3368, %v3651
      %v3653 = vpop.f32.mrb[0].mxu0
      %3654 = vmatprep.mubr.f32.mxu0 0.0
      %3655 = vmatmul.mubr.f32.gmra.mrb[0].mxu0 %v3482
      %v3656 = vpop.f32.mrb[0].mxu0
      %v3657 = vadd.f32 %v3368, %v3656
      %v3658 = vpop.f32.mrb[0].mxu0
      %3659 = vmatprep.mubr.f32.mxu0 0.0
      %3660 = vmatmul.mubr.f32.gmra.mrb[0].mxu0 %v3484
      %v3661 = vpop.f32.mrb[0].mxu0
      %v3662 = vadd.f32 %v3368, %v3661
      %v3663 = vpop.f32.mrb[0].mxu0
      %3664 = vmatprep.mubr.f32.mxu0 0.0
      %3665 = vmatmul.mubr.f32.gmra.mrb[0].mxu0 %v3486
      %v3666 = vpop.f32.mrb[0].mxu0
      %v3667 = vadd.f32 %v3368, %v3666
      %v3668 = vpop.f32.mrb[0].mxu0
      %3669 = vmatprep.mubr.f32.mxu0 0.0
      %3670 = vmatmul.mubr.f32.gmra.mrb[0].mxu0 %v3488
      %v3671 = vpop.f32.mrb[0].mxu0
      %v3672 = vadd.f32 %v3368, %v3671
      %v3673 = vpop.f32.mrb[0].mxu0
      %3674 = vdwg.mxu0
      %v3675 = vadd.f32 %v3242, %v3557
      %v3676 = vadd.f32 %v3247, %v3562
      %v3677 = vadd.f32 %v3252, %v3567
      %v3678 = vadd.f32 %v3257, %v3572
      %v3679 = vadd.f32 %v3262, %v3577
      %v3680 = vadd.f32 %v3267, %v3582
      %v3681 = vadd.f32 %v3272, %v3587
      %v3682 = vadd.f32 %v3277, %v3592
      %v3683 = vadd.f32 %v3282, %v3597
      %v3684 = vadd.f32 %v3287, %v3602
      %v3685 = vadd.f32 %v3292, %v3607
      %v3686 = vadd.f32 %v3297, %v3612
      %v3687 = vadd.f32 %v3302, %v3617
      %v3688 = vadd.f32 %v3307, %v3622
      %v3689 = vadd.f32 %v3312, %v3627
      %v3690 = vadd.f32 %v3317, %v3632
      %v3691 = vadd.f32 %v3322, %v3637
      %v3692 = vadd.f32 %v3327, %v3642
      %v3693 = vadd.f32 %v3332, %v3647
      %v3694 = vadd.f32 %v3337, %v3652
      %v3695 = vadd.f32 %v3342, %v3657
      %v3696 = vadd.f32 %v3347, %v3662
      %v3697 = vadd.f32 %v3352, %v3667
      %v3698 = vadd.f32 %v3357, %v3672
      %v3699 = vxor.u32 %v3675, 2147483648
      %v3700 = vxor.u32 %v3676, 2147483648
      %v3701 = vxor.u32 %v3677, 2147483648
      %v3702 = vxor.u32 %v3678, 2147483648
      %v3703 = vxor.u32 %v3679, 2147483648
      %v3704 = vxor.u32 %v3680, 2147483648
      %v3705 = vxor.u32 %v3681, 2147483648
      %v3706 = vxor.u32 %v3682, 2147483648
      %v3707 = vxor.u32 %v3683, 2147483648
      %v3708 = vxor.u32 %v3684, 2147483648
      %v3709 = vxor.u32 %v3685, 2147483648
      %v3710 = vxor.u32 %v3686, 2147483648
      %v3711 = vxor.u32 %v3687, 2147483648
      %v3712 = vxor.u32 %v3688, 2147483648
      %v3713 = vxor.u32 %v3689, 2147483648
      %v3714 = vxor.u32 %v3690, 2147483648
      %v3715 = vxor.u32 %v3691, 2147483648
      %v3716 = vxor.u32 %v3692, 2147483648
      %v3717 = vxor.u32 %v3693, 2147483648
      %v3718 = vxor.u32 %v3694, 2147483648
      %v3719 = vxor.u32 %v3695, 2147483648
      %v3720 = vxor.u32 %v3696, 2147483648
      %v3721 = vxor.u32 %v3697, 2147483648
      %v3722 = vxor.u32 %v3698, 2147483648
      %v3723 = vmul.f32 %v3699, 1.442695
      %v3724 = vpow.pop %v3723
      %v3725 = vmul.f32 %v3700, 1.442695
      %v3726 = vpow.pop %v3725
      %v3727 = vmul.f32 %v3701, 1.442695
      %v3728 = vpow.pop %v3727
      %v3729 = vmul.f32 %v3702, 1.442695
      %v3730 = vpow.pop %v3729
      %v3731 = vmul.f32 %v3703, 1.442695
      %v3732 = vpow.pop %v3731
      %v3733 = vmul.f32 %v3704, 1.442695
      %v3734 = vpow.pop %v3733
      %v3735 = vmul.f32 %v3705, 1.442695
      %v3736 = vpow.pop %v3735
      %v3737 = vmul.f32 %v3706, 1.442695
      %v3738 = vpow.pop %v3737
      %v3739 = vmul.f32 %v3707, 1.442695
      %v3740 = vpow.pop %v3739
      %v3741 = vmul.f32 %v3708, 1.442695
      %v3742 = vpow.pop %v3741
      %v3743 = vmul.f32 %v3709, 1.442695
      %v3744 = vpow.pop %v3743
      %v3745 = vmul.f32 %v3710, 1.442695
      %v3746 = vpow.pop %v3745
      %v3747 = vmul.f32 %v3711, 1.442695
      %v3748 = vpow.pop %v3747
      %v3749 = vmul.f32 %v3712, 1.442695
      %v3750 = vpow.pop %v3749
      %v3751 = vmul.f32 %v3713, 1.442695
      %v3752 = vpow.pop %v3751
      %v3753 = vmul.f32 %v3714, 1.442695
      %v3754 = vpow.pop %v3753
      %v3755 = vmul.f32 %v3715, 1.442695
      %v3756 = vpow.pop %v3755
      %v3757 = vmul.f32 %v3716, 1.442695
      %v3758 = vpow.pop %v3757
      %v3759 = vmul.f32 %v3717, 1.442695
      %v3760 = vpow.pop %v3759
      %v3761 = vmul.f32 %v3718, 1.442695
      %v3762 = vpow.pop %v3761
      %v3763 = vmul.f32 %v3719, 1.442695
      %v3764 = vpow.pop %v3763
      %v3765 = vmul.f32 %v3720, 1.442695
      %v3766 = vpow.pop %v3765
      %v3767 = vmul.f32 %v3721, 1.442695
      %v3768 = vpow.pop %v3767
      %v3769 = vmul.f32 %v3722, 1.442695
      %v3770 = vpow.pop %v3769
      %v3771 = vadd.f32 %v3724, 1.0
      %v3772 = vadd.f32 %v3726, 1.0
      %v3773 = vadd.f32 %v3728, 1.0
      %v3774 = vadd.f32 %v3730, 1.0
      %v3775 = vadd.f32 %v3732, 1.0
      %v3776 = vadd.f32 %v3734, 1.0
      %v3777 = vadd.f32 %v3736, 1.0
      %v3778 = vadd.f32 %v3738, 1.0
      %v3779 = vadd.f32 %v3740, 1.0
      %v3780 = vadd.f32 %v3742, 1.0
      %v3781 = vadd.f32 %v3744, 1.0
      %v3782 = vadd.f32 %v3746, 1.0
      %v3783 = vadd.f32 %v3748, 1.0
      %v3784 = vadd.f32 %v3750, 1.0
      %v3785 = vadd.f32 %v3752, 1.0
      %v3786 = vadd.f32 %v3754, 1.0
      %v3787 = vadd.f32 %v3756, 1.0
      %v3788 = vadd.f32 %v3758, 1.0
      %v3789 = vadd.f32 %v3760, 1.0
      %v3790 = vadd.f32 %v3762, 1.0
      %v3791 = vadd.f32 %v3764, 1.0
      %v3792 = vadd.f32 %v3766, 1.0
      %v3793 = vadd.f32 %v3768, 1.0
      %v3794 = vadd.f32 %v3770, 1.0
      %v3795 = vrcp.pop %v3771
      %v3796 = vmul.f32 1.0, %v3795
      %v3797 = vrcp.pop %v3772
      %v3798 = vmul.f32 1.0, %v3797
      %v3799 = vrcp.pop %v3773
      %v3800 = vmul.f32 1.0, %v3799
      %v3801 = vrcp.pop %v3774
      %v3802 = vmul.f32 1.0, %v3801
      %v3803 = vrcp.pop %v3775
      %v3804 = vmul.f32 1.0, %v3803
      %v3805 = vrcp.pop %v3776
      %v3806 = vmul.f32 1.0, %v3805
      %v3807 = vrcp.pop %v3777
      %v3808 = vmul.f32 1.0, %v3807
      %v3809 = vrcp.pop %v3778
      %v3810 = vmul.f32 1.0, %v3809
      %v3811 = vrcp.pop %v3779
      %v3812 = vmul.f32 1.0, %v3811
      %v3813 = vrcp.pop %v3780
      %v3814 = vmul.f32 1.0, %v3813
      %v3815 = vrcp.pop %v3781
      %v3816 = vmul.f32 1.0, %v3815
      %v3817 = vrcp.pop %v3782
      %v3818 = vmul.f32 1.0, %v3817
      %v3819 = vrcp.pop %v3783
      %v3820 = vmul.f32 1.0, %v3819
      %v3821 = vrcp.pop %v3784
      %v3822 = vmul.f32 1.0, %v3821
      %v3823 = vrcp.pop %v3785
      %v3824 = vmul.f32 1.0, %v3823
      %v3825 = vrcp.pop %v3786
      %v3826 = vmul.f32 1.0, %v3825
      %v3827 = vrcp.pop %v3787
      %v3828 = vmul.f32 1.0, %v3827
      %v3829 = vrcp.pop %v3788
      %v3830 = vmul.f32 1.0, %v3829
      %v3831 = vrcp.pop %v3789
      %v3832 = vmul.f32 1.0, %v3831
      %v3833 = vrcp.pop %v3790
      %v3834 = vmul.f32 1.0, %v3833
      %v3835 = vrcp.pop %v3791
      %v3836 = vmul.f32 1.0, %v3835
      %v3837 = vrcp.pop %v3792
      %v3838 = vmul.f32 1.0, %v3837
      %v3839 = vrcp.pop %v3793
      %v3840 = vmul.f32 1.0, %v3839
      %v3841 = vrcp.pop %v3794
      %v3842 = vmul.f32 1.0, %v3841
      %3867 = vrot.lane.b32.xlu0 %v3557, 64
      %v3868 = vpop.permute.xlu0 %3867
      %3869 = vrot.lane.b32.xlu0 %v3562, 64
      %v3870 = vpop.permute.xlu0 %3869
      %3871 = vrot.lane.b32.xlu0 %v3567, 64
      %v3872 = vpop.permute.xlu0 %3871
      %3873 = vrot.lane.b32.xlu0 %v3572, 64
      %v3874 = vpop.permute.xlu0 %3873
      %3875 = vrot.lane.b32.xlu0 %v3577, 64
      %v3876 = vpop.permute.xlu0 %3875
      %3877 = vrot.lane.b32.xlu0 %v3582, 64
      %v3878 = vpop.permute.xlu0 %3877
      %3879 = vrot.lane.b32.xlu0 %v3587, 64
      %v3880 = vpop.permute.xlu0 %3879
      %3881 = vrot.lane.b32.xlu0 %v3592, 64
      %v3882 = vpop.permute.xlu0 %3881
      %3883 = vrot.lane.b32.xlu0 %v3597, 64
      %v3884 = vpop.permute.xlu0 %3883
      %3885 = vrot.lane.b32.xlu0 %v3602, 64
      %v3886 = vpop.permute.xlu0 %3885
      %3887 = vrot.lane.b32.xlu0 %v3607, 64
      %v3888 = vpop.permute.xlu0 %3887
      %3889 = vrot.lane.b32.xlu0 %v3612, 64
      %v3890 = vpop.permute.xlu0 %3889
      %3891 = vrot.lane.b32.xlu0 %v3617, 64
      %v3892 = vpop.permute.xlu0 %3891
      %3893 = vrot.lane.b32.xlu0 %v3622, 64
      %v3894 = vpop.permute.xlu0 %3893
      %3895 = vrot.lane.b32.xlu0 %v3627, 64
      %v3896 = vpop.permute.xlu0 %3895
      %3897 = vrot.lane.b32.xlu0 %v3632, 64
      %v3898 = vpop.permute.xlu0 %3897
      %3899 = vrot.lane.b32.xlu0 %v3637, 64
      %v3900 = vpop.permute.xlu0 %3899
      %3901 = vrot.lane.b32.xlu0 %v3642, 64
      %v3902 = vpop.permute.xlu0 %3901
      %3903 = vrot.lane.b32.xlu0 %v3647, 64
      %v3904 = vpop.permute.xlu0 %3903
      %3905 = vrot.lane.b32.xlu0 %v3652, 64
      %v3906 = vpop.permute.xlu0 %3905
      %3907 = vrot.lane.b32.xlu0 %v3657, 64
      %v3908 = vpop.permute.xlu0 %3907
      %3909 = vrot.lane.b32.xlu0 %v3662, 64
      %v3910 = vpop.permute.xlu0 %3909
      %3911 = vrot.lane.b32.xlu0 %v3667, 64
      %v3912 = vpop.permute.xlu0 %3911
      %3913 = vrot.lane.b32.xlu0 %v3672, 64
      %v3914 = vpop.permute.xlu0 %3913
      %v3939 = vmul.f32 %v3796, %v3868
      %v3940 = vmul.f32 %v3798, %v3870
      %v3941 = vmul.f32 %v3800, %v3872
      %v3942 = vmul.f32 %v3802, %v3874
      %v3943 = vmul.f32 %v3804, %v3876
      %v3944 = vmul.f32 %v3806, %v3878
      %v3945 = vmul.f32 %v3808, %v3880
      %v3946 = vmul.f32 %v3810, %v3882
      %v3947 = vmul.f32 %v3812, %v3884
      %v3948 = vmul.f32 %v3814, %v3886
      %v3949 = vmul.f32 %v3816, %v3888
      %v3950 = vmul.f32 %v3818, %v3890
      %v3951 = vmul.f32 %v3820, %v3892
      %v3952 = vmul.f32 %v3822, %v3894
      %v3953 = vmul.f32 %v3824, %v3896
      %v3954 = vmul.f32 %v3826, %v3898
      %v3955 = vmul.f32 %v3828, %v3900
      %v3956 = vmul.f32 %v3830, %v3902
      %v3957 = vmul.f32 %v3832, %v3904
      %v3958 = vmul.f32 %v3834, %v3906
      %v3959 = vmul.f32 %v3836, %v3908
      %v3960 = vmul.f32 %v3838, %v3910
      %v3961 = vmul.f32 %v3840, %v3912
      %v3962 = vmul.f32 %v3842, %v3914
      %3987 = vrot.lane.b32.xlu0 %v3939, 64
      %v3988 = vpop.permute.xlu0 %3987
      %3989 = vrot.lane.b32.xlu0 %v3940, 64
      %v3990 = vpop.permute.xlu0 %3989
      %3991 = vrot.lane.b32.xlu0 %v3941, 64
      %v3992 = vpop.permute.xlu0 %3991
      %3993 = vrot.lane.b32.xlu0 %v3942, 64
      %v3994 = vpop.permute.xlu0 %3993
      %3995 = vrot.lane.b32.xlu0 %v3943, 64
      %v3996 = vpop.permute.xlu0 %3995
      %3997 = vrot.lane.b32.xlu0 %v3944, 64
      %v3998 = vpop.permute.xlu0 %3997
      %3999 = vrot.lane.b32.xlu0 %v3945, 64
      %v4000 = vpop.permute.xlu0 %3999
      %4001 = vrot.lane.b32.xlu0 %v3946, 64
      %v4002 = vpop.permute.xlu0 %4001
      %4003 = vrot.lane.b32.xlu0 %v3947, 64
      %v4004 = vpop.permute.xlu0 %4003
      %4005 = vrot.lane.b32.xlu0 %v3948, 64
      %v4006 = vpop.permute.xlu0 %4005
      %4007 = vrot.lane.b32.xlu0 %v3949, 64
      %v4008 = vpop.permute.xlu0 %4007
      %4009 = vrot.lane.b32.xlu0 %v3950, 64
      %v4010 = vpop.permute.xlu0 %4009
      %4011 = vrot.lane.b32.xlu0 %v3951, 64
      %v4012 = vpop.permute.xlu0 %4011
      %4013 = vrot.lane.b32.xlu0 %v3952, 64
      %v4014 = vpop.permute.xlu0 %4013
      %4015 = vrot.lane.b32.xlu0 %v3953, 64
      %v4016 = vpop.permute.xlu0 %4015
      %4017 = vrot.lane.b32.xlu0 %v3954, 64
      %v4018 = vpop.permute.xlu0 %4017
      %4019 = vrot.lane.b32.xlu0 %v3955, 64
      %v4020 = vpop.permute.xlu0 %4019
      %4021 = vrot.lane.b32.xlu0 %v3956, 64
      %v4022 = vpop.permute.xlu0 %4021
      %4023 = vrot.lane.b32.xlu0 %v3957, 64
      %v4024 = vpop.permute.xlu0 %4023
      %4025 = vrot.lane.b32.xlu0 %v3958, 64
      %v4026 = vpop.permute.xlu0 %4025
      %4027 = vrot.lane.b32.xlu0 %v3959, 64
      %v4028 = vpop.permute.xlu0 %4027
      %4029 = vrot.lane.b32.xlu0 %v3960, 64
      %v4030 = vpop.permute.xlu0 %4029
      %4031 = vrot.lane.b32.xlu0 %v3961, 64
      %v4032 = vpop.permute.xlu0 %4031
      %4033 = vrot.lane.b32.xlu0 %v3962, 64
      %v4034 = vpop.permute.xlu0 %4033
      %v4059 = vadd.f32 %v3242, %v3988
      %v4060 = vadd.f32 %v3247, %v3990
      %v4061 = vadd.f32 %v3252, %v3992
      %v4062 = vadd.f32 %v3257, %v3994
      %v4063 = vadd.f32 %v3262, %v3996
      %v4064 = vadd.f32 %v3267, %v3998
      %v4065 = vadd.f32 %v3272, %v4000
      %v4066 = vadd.f32 %v3277, %v4002
      %v4067 = vadd.f32 %v3282, %v4004
      %v4068 = vadd.f32 %v3287, %v4006
      %v4069 = vadd.f32 %v3292, %v4008
      %v4070 = vadd.f32 %v3297, %v4010
      %v4071 = vadd.f32 %v3302, %v4012
      %v4072 = vadd.f32 %v3307, %v4014
      %v4073 = vadd.f32 %v3312, %v4016
      %v4074 = vadd.f32 %v3317, %v4018
      %v4075 = vadd.f32 %v3322, %v4020
      %v4076 = vadd.f32 %v3327, %v4022
      %v4077 = vadd.f32 %v3332, %v4024
      %v4078 = vadd.f32 %v3337, %v4026
      %v4079 = vadd.f32 %v3342, %v4028
      %v4080 = vadd.f32 %v3347, %v4030
      %v4081 = vadd.f32 %v3352, %v4032
      %v4082 = vadd.f32 %v3357, %v4034
      %v4083 = vtanh.pop %v4059
      %v4084 = vtanh.pop %v4060
      %v4085 = vtanh.pop %v4061
      %v4086 = vtanh.pop %v4062
      %v4087 = vtanh.pop %v4063
      %v4088 = vtanh.pop %v4064
      %v4089 = vtanh.pop %v4065
      %v4090 = vtanh.pop %v4066
      %v4091 = vtanh.pop %v4067
      %v4092 = vtanh.pop %v4068
      %v4093 = vtanh.pop %v4069
      %v4094 = vtanh.pop %v4070
      %v4095 = vtanh.pop %v4071
      %v4096 = vtanh.pop %v4072
      %v4097 = vtanh.pop %v4073
      %v4098 = vtanh.pop %v4074
      %v4099 = vtanh.pop %v4075
      %v4100 = vtanh.pop %v4076
      %v4101 = vtanh.pop %v4077
      %v4102 = vtanh.pop %v4078
      %v4103 = vtanh.pop %v4079
      %v4104 = vtanh.pop %v4080
      %v4105 = vtanh.pop %v4081
      %v4106 = vtanh.pop %v4082
      %v4107 = vsub.f32 1.0, %v3796
      %v4108 = vsub.f32 1.0, %v3798
      %v4109 = vsub.f32 1.0, %v3800
      %v4110 = vsub.f32 1.0, %v3802
      %v4111 = vsub.f32 1.0, %v3804
      %v4112 = vsub.f32 1.0, %v3806
      %v4113 = vsub.f32 1.0, %v3808
      %v4114 = vsub.f32 1.0, %v3810
      %v4115 = vsub.f32 1.0, %v3812
      %v4116 = vsub.f32 1.0, %v3814
      %v4117 = vsub.f32 1.0, %v3816
      %v4118 = vsub.f32 1.0, %v3818
      %v4119 = vsub.f32 1.0, %v3820
      %v4120 = vsub.f32 1.0, %v3822
      %v4121 = vsub.f32 1.0, %v3824
      %v4122 = vsub.f32 1.0, %v3826
      %v4123 = vsub.f32 1.0, %v3828
      %v4124 = vsub.f32 1.0, %v3830
      %v4125 = vsub.f32 1.0, %v3832
      %v4126 = vsub.f32 1.0, %v3834
      %v4127 = vsub.f32 1.0, %v3836
      %v4128 = vsub.f32 1.0, %v3838
      %v4129 = vsub.f32 1.0, %v3840
      %v4130 = vsub.f32 1.0, %v3842
      %4155 = vrot.lane.b32.xlu0 %v4083, 96
      %v4156 = vpop.permute.xlu0 %4155
      %4157 = vrot.lane.b32.xlu0 %v4084, 96
      %v4158 = vpop.permute.xlu0 %4157
      %4159 = vrot.lane.b32.xlu0 %v4085, 96
      %v4160 = vpop.permute.xlu0 %4159
      %4161 = vrot.lane.b32.xlu0 %v4086, 96
      %v4162 = vpop.permute.xlu0 %4161
      %4163 = vrot.lane.b32.xlu0 %v4087, 96
      %v4164 = vpop.permute.xlu0 %4163
      %4165 = vrot.lane.b32.xlu0 %v4088, 96
      %v4166 = vpop.permute.xlu0 %4165
      %4167 = vrot.lane.b32.xlu0 %v4089, 96
      %v4168 = vpop.permute.xlu0 %4167
      %4169 = vrot.lane.b32.xlu0 %v4090, 96
      %v4170 = vpop.permute.xlu0 %4169
      %4171 = vrot.lane.b32.xlu0 %v4091, 96
      %v4172 = vpop.permute.xlu0 %4171
      %4173 = vrot.lane.b32.xlu0 %v4092, 96
      %v4174 = vpop.permute.xlu0 %4173
      %4175 = vrot.lane.b32.xlu0 %v4093, 96
      %v4176 = vpop.permute.xlu0 %4175
      %4177 = vrot.lane.b32.xlu0 %v4094, 96
      %v4178 = vpop.permute.xlu0 %4177
      %4179 = vrot.lane.b32.xlu0 %v4095, 96
      %v4180 = vpop.permute.xlu0 %4179
      %4181 = vrot.lane.b32.xlu0 %v4096, 96
      %v4182 = vpop.permute.xlu0 %4181
      %4183 = vrot.lane.b32.xlu0 %v4097, 96
      %v4184 = vpop.permute.xlu0 %4183
      %4185 = vrot.lane.b32.xlu0 %v4098, 96
      %v4186 = vpop.permute.xlu0 %4185
      %4187 = vrot.lane.b32.xlu0 %v4099, 96
      %v4188 = vpop.permute.xlu0 %4187
      %4189 = vrot.lane.b32.xlu0 %v4100, 96
      %v4190 = vpop.permute.xlu0 %4189
      %4191 = vrot.lane.b32.xlu0 %v4101, 96
      %v4192 = vpop.permute.xlu0 %4191
      %4193 = vrot.lane.b32.xlu0 %v4102, 96
      %v4194 = vpop.permute.xlu0 %4193
      %4195 = vrot.lane.b32.xlu0 %v4103, 96
      %v4196 = vpop.permute.xlu0 %4195
      %4197 = vrot.lane.b32.xlu0 %v4104, 96
      %v4198 = vpop.permute.xlu0 %4197
      %4199 = vrot.lane.b32.xlu0 %v4105, 96
      %v4200 = vpop.permute.xlu0 %4199
      %4201 = vrot.lane.b32.xlu0 %v4106, 96
      %v4202 = vpop.permute.xlu0 %4201
      %v4227 = vmul.f32 %v4107, %v4156
      %v4228 = vmul.f32 %v4108, %v4158
      %v4229 = vmul.f32 %v4109, %v4160
      %v4230 = vmul.f32 %v4110, %v4162
      %v4231 = vmul.f32 %v4111, %v4164
      %v4232 = vmul.f32 %v4112, %v4166
      %v4233 = vmul.f32 %v4113, %v4168
      %v4234 = vmul.f32 %v4114, %v4170
      %v4235 = vmul.f32 %v4115, %v4172
      %v4236 = vmul.f32 %v4116, %v4174
      %v4237 = vmul.f32 %v4117, %v4176
      %v4238 = vmul.f32 %v4118, %v4178
      %v4239 = vmul.f32 %v4119, %v4180
      %v4240 = vmul.f32 %v4120, %v4182
      %v4241 = vmul.f32 %v4121, %v4184
      %v4242 = vmul.f32 %v4122, %v4186
      %v4243 = vmul.f32 %v4123, %v4188
      %v4244 = vmul.f32 %v4124, %v4190
      %v4245 = vmul.f32 %v4125, %v4192
      %v4246 = vmul.f32 %v4126, %v4194
      %v4247 = vmul.f32 %v4127, %v4196
      %v4248 = vmul.f32 %v4128, %v4198
      %v4249 = vmul.f32 %v4129, %v4200
      %v4250 = vmul.f32 %v4130, %v4202
      %4251 = vrot.lane.b32.xlu0 %v147, 80
      %v4252 = vpop.permute.xlu0 %4251
      %4253 = vrot.lane.b32.xlu0 %v149, 80
      %v4254 = vpop.permute.xlu0 %4253
      %4255 = vrot.lane.b32.xlu0 %v151, 80
      %v4256 = vpop.permute.xlu0 %4255
      %4257 = vrot.lane.b32.xlu0 %v153, 80
      %v4258 = vpop.permute.xlu0 %4257
      %4259 = vrot.lane.b32.xlu0 %v155, 80
      %v4260 = vpop.permute.xlu0 %4259
      %4261 = vrot.lane.b32.xlu0 %v157, 80
      %v4262 = vpop.permute.xlu0 %4261
      %4263 = vrot.lane.b32.xlu0 %v159, 80
      %v4264 = vpop.permute.xlu0 %4263
      %4265 = vrot.lane.b32.xlu0 %v161, 80
      %v4266 = vpop.permute.xlu0 %4265
      %4267 = vrot.lane.b32.xlu0 %v163, 80
      %v4268 = vpop.permute.xlu0 %4267
      %4269 = vrot.lane.b32.xlu0 %v165, 80
      %v4270 = vpop.permute.xlu0 %4269
      %4271 = vrot.lane.b32.xlu0 %v167, 80
      %v4272 = vpop.permute.xlu0 %4271
      %4273 = vrot.lane.b32.xlu0 %v169, 80
      %v4274 = vpop.permute.xlu0 %4273
      %4275 = vrot.lane.b32.xlu0 %v171, 80
      %v4276 = vpop.permute.xlu0 %4275
      %4277 = vrot.lane.b32.xlu0 %v173, 80
      %v4278 = vpop.permute.xlu0 %4277
      %4279 = vrot.lane.b32.xlu0 %v175, 80
      %v4280 = vpop.permute.xlu0 %4279
      %4281 = vrot.lane.b32.xlu0 %v177, 80
      %v4282 = vpop.permute.xlu0 %4281
      %4283 = vrot.lane.b32.xlu0 %v179, 80
      %v4284 = vpop.permute.xlu0 %4283
      %4285 = vrot.lane.b32.xlu0 %v181, 80
      %v4286 = vpop.permute.xlu0 %4285
      %4287 = vrot.lane.b32.xlu0 %v183, 80
      %v4288 = vpop.permute.xlu0 %4287
      %4289 = vrot.lane.b32.xlu0 %v185, 80
      %v4290 = vpop.permute.xlu0 %4289
      %4291 = vrot.lane.b32.xlu0 %v187, 80
      %v4292 = vpop.permute.xlu0 %4291
      %4293 = vrot.lane.b32.xlu0 %v189, 80
      %v4294 = vpop.permute.xlu0 %4293
      %4295 = vrot.lane.b32.xlu0 %v191, 80
      %v4296 = vpop.permute.xlu0 %4295
      %4297 = vrot.lane.b32.xlu0 %v193, 80
      %v4298 = vpop.permute.xlu0 %4297
      %v4323 = vmul.f32 %v3796, %v4252
      %v4324 = vmul.f32 %v3798, %v4254
      %v4325 = vmul.f32 %v3800, %v4256
      %v4326 = vmul.f32 %v3802, %v4258
      %v4327 = vmul.f32 %v3804, %v4260
      %v4328 = vmul.f32 %v3806, %v4262
      %v4329 = vmul.f32 %v3808, %v4264
      %v4330 = vmul.f32 %v3810, %v4266
      %v4331 = vmul.f32 %v3812, %v4268
      %v4332 = vmul.f32 %v3814, %v4270
      %v4333 = vmul.f32 %v3816, %v4272
      %v4334 = vmul.f32 %v3818, %v4274
      %v4335 = vmul.f32 %v3820, %v4276
      %v4336 = vmul.f32 %v3822, %v4278
      %v4337 = vmul.f32 %v3824, %v4280
      %v4338 = vmul.f32 %v3826, %v4282
      %v4339 = vmul.f32 %v3828, %v4284
      %v4340 = vmul.f32 %v3830, %v4286
      %v4341 = vmul.f32 %v3832, %v4288
      %v4342 = vmul.f32 %v3834, %v4290
      %v4343 = vmul.f32 %v3836, %v4292
      %v4344 = vmul.f32 %v3838, %v4294
      %v4345 = vmul.f32 %v3840, %v4296
      %v4346 = vmul.f32 %v3842, %v4298
      %v4347 = vadd.f32 %v4227, %v4323
      %v4348 = vadd.f32 %v4228, %v4324
      %v4349 = vadd.f32 %v4229, %v4325
      %v4350 = vadd.f32 %v4230, %v4326
      %v4351 = vadd.f32 %v4231, %v4327
      %v4352 = vadd.f32 %v4232, %v4328
      %v4353 = vadd.f32 %v4233, %v4329
      %v4354 = vadd.f32 %v4234, %v4330
      %v4355 = vadd.f32 %v4235, %v4331
      %v4356 = vadd.f32 %v4236, %v4332
      %v4357 = vadd.f32 %v4237, %v4333
      %v4358 = vadd.f32 %v4238, %v4334
      %v4359 = vadd.f32 %v4239, %v4335
      %v4360 = vadd.f32 %v4240, %v4336
      %v4361 = vadd.f32 %v4241, %v4337
      %v4362 = vadd.f32 %v4242, %v4338
      %v4363 = vadd.f32 %v4243, %v4339
      %v4364 = vadd.f32 %v4244, %v4340
      %v4365 = vadd.f32 %v4245, %v4341
      %v4366 = vadd.f32 %v4246, %v4342
      %v4367 = vadd.f32 %v4247, %v4343
      %v4368 = vadd.f32 %v4248, %v4344
      %v4369 = vadd.f32 %v4249, %v4345
      %v4370 = vadd.f32 %v4250, %v4346
      %v4371 = vld [vmem:[%s1 + $0xb8] sm:$0xff]
      %v4372 = vld [vmem:[%s1 + $0xc0] sm:$0xff]
      %4373 = vrot.lane.b32.xlu0 %v147, 16
      %v4374 = vpop.permute.xlu0 %4373
      %4375 = vrot.lane.b32.xlu0 %v149, 16
      %v4376 = vpop.permute.xlu0 %4375
      %4377 = vrot.lane.b32.xlu0 %v151, 16
      %v4378 = vpop.permute.xlu0 %4377
      %4379 = vrot.lane.b32.xlu0 %v153, 16
      %v4380 = vpop.permute.xlu0 %4379
      %4381 = vrot.lane.b32.xlu0 %v155, 16
      %v4382 = vpop.permute.xlu0 %4381
      %4383 = vrot.lane.b32.xlu0 %v157, 16
      %v4384 = vpop.permute.xlu0 %4383
      %4385 = vrot.lane.b32.xlu0 %v159, 16
      %v4386 = vpop.permute.xlu0 %4385
      %4387 = vrot.lane.b32.xlu0 %v161, 16
      %v4388 = vpop.permute.xlu0 %4387
      %4389 = vrot.lane.b32.xlu0 %v163, 16
      %v4390 = vpop.permute.xlu0 %4389
      %4391 = vrot.lane.b32.xlu0 %v165, 16
      %v4392 = vpop.permute.xlu0 %4391
      %4393 = vrot.lane.b32.xlu0 %v167, 16
      %v4394 = vpop.permute.xlu0 %4393
      %4395 = vrot.lane.b32.xlu0 %v169, 16
      %v4396 = vpop.permute.xlu0 %4395
      %4397 = vrot.lane.b32.xlu0 %v171, 16
      %v4398 = vpop.permute.xlu0 %4397
      %4399 = vrot.lane.b32.xlu0 %v173, 16
      %v4400 = vpop.permute.xlu0 %4399
      %4401 = vrot.lane.b32.xlu0 %v175, 16
      %v4402 = vpop.permute.xlu0 %4401
      %4403 = vrot.lane.b32.xlu0 %v177, 16
      %v4404 = vpop.permute.xlu0 %4403
      %4405 = vrot.lane.b32.xlu0 %v179, 16
      %v4406 = vpop.permute.xlu0 %4405
      %4407 = vrot.lane.b32.xlu0 %v181, 16
      %v4408 = vpop.permute.xlu0 %4407
      %4409 = vrot.lane.b32.xlu0 %v183, 16
      %v4410 = vpop.permute.xlu0 %4409
      %4411 = vrot.lane.b32.xlu0 %v185, 16
      %v4412 = vpop.permute.xlu0 %4411
      %4413 = vrot.lane.b32.xlu0 %v187, 16
      %v4414 = vpop.permute.xlu0 %4413
      %4415 = vrot.lane.b32.xlu0 %v189, 16
      %v4416 = vpop.permute.xlu0 %4415
      %4417 = vrot.lane.b32.xlu0 %v191, 16
      %v4418 = vpop.permute.xlu0 %4417
      %4419 = vrot.lane.b32.xlu0 %v193, 16
      %v4420 = vpop.permute.xlu0 %4419
      %vm4421 = vcmask 130048
      %v4422 = vsel %vm4421, %v4374, 0
      %v4424 = vsel %vm4421, %v4376, 0
      %v4426 = vsel %vm4421, %v4378, 0
      %v4428 = vsel %vm4421, %v4380, 0
      %v4430 = vsel %vm4421, %v4382, 0
      %v4432 = vsel %vm4421, %v4384, 0
      %v4434 = vsel %vm4421, %v4386, 0
      %v4436 = vsel %vm4421, %v4388, 0
      %v4438 = vsel %vm4421, %v4390, 0
      %v4440 = vsel %vm4421, %v4392, 0
      %v4442 = vsel %vm4421, %v4394, 0
      %v4444 = vsel %vm4421, %v4396, 0
      %v4446 = vsel %vm4421, %v4398, 0
      %v4448 = vsel %vm4421, %v4400, 0
      %v4450 = vsel %vm4421, %v4402, 0
      %v4452 = vsel %vm4421, %v4404, 0
      %v4454 = vsel %vm4421, %v4406, 0
      %v4456 = vsel %vm4421, %v4408, 0
      %v4458 = vsel %vm4421, %v4410, 0
      %v4460 = vsel %vm4421, %v4412, 0
      %v4462 = vsel %vm4421, %v4414, 0
      %v4464 = vsel %vm4421, %v4416, 0
      %v4466 = vsel %vm4421, %v4418, 0
      %v4468 = vsel %vm4421, %v4420, 0
      %4470 = vmatprep.subr.mxu0 0.0
      %4471 = vmatpush1.msra.mxu0 %v4371
      %4472 = vmatprep.subr.mxu0 0.0
      %4473 = vmatpush1.msra.mxu0 %v4372
      %4474 = vmatprep.subr.mxu0 0.0
      %4475 = vmatpush1.msra.mxu0 0.0
      %4476 = vmatprep.subr.mxu0 0.0
      %4477 = vmatpush1.msra.mxu0 0.0
      %4478 = vmatprep.subr.mxu0 0.0
      %4479 = vmatpush1.msra.mxu0 0.0
      %4480 = vmatprep.subr.mxu0 0.0
      %4481 = vmatpush1.msra.mxu0 0.0
      %4482 = vmatprep.subr.mxu0 0.0
      %4483 = vmatpush1.msra.mxu0 0.0
      %4484 = vmatprep.subr.mxu0 0.0
      %4485 = vmatpush1.msra.mxu0 0.0
      %4486 = vmatprep.subr.mxu0 0.0
      %4487 = vmatpush1.msra.mxu0 0.0
      %4488 = vmatprep.subr.mxu0 0.0
      %4489 = vmatpush1.msra.mxu0 0.0
      %4490 = vmatprep.subr.mxu0 0.0
      %4491 = vmatpush1.msra.mxu0 0.0
      %4492 = vmatprep.subr.mxu0 0.0
      %4493 = vmatpush1.msra.mxu0 0.0
      %4494 = vmatprep.subr.mxu0 0.0
      %4495 = vmatpush1.msra.mxu0 0.0
      %4496 = vmatprep.subr.mxu0 0.0
      %4497 = vmatpush1.msra.mxu0 0.0
      %4498 = vmatprep.subr.mxu0 0.0
      %4499 = vmatpush1.msra.mxu0 0.0
      %4500 = vmatprep.subr.mxu0 0.0
      %4501 = vmatpush1.msra.mxu0 0.0
      %4502 = vmatprep.subr.mxu0 0.0
      %4503 = vmatpush1.msra.mxu0 0.0
      %4504 = vmatprep.subr.mxu0 0.0
      %4505 = vmatpush1.msra.mxu0 0.0
      %4506 = vmatprep.subr.mxu0 0.0
      %4507 = vmatpush1.msra.mxu0 0.0
      %4508 = vmatprep.subr.mxu0 0.0
      %4509 = vmatpush1.msra.mxu0 0.0
      %4510 = vmatprep.subr.mxu0 0.0
      %4511 = vmatpush1.msra.mxu0 0.0
      %4512 = vmatprep.subr.mxu0 0.0
      %4513 = vmatpush1.msra.mxu0 0.0
      %4514 = vmatprep.subr.mxu0 0.0
      %4515 = vmatpush1.msra.mxu0 0.0
      %4516 = vmatprep.subr.mxu0 0.0
      %4517 = vmatpush1.msra.mxu0 0.0
      %4518 = vmatprep.subr.mxu0 0.0
      %4519 = vmatpush1.msra.mxu0 0.0
      %4520 = vmatprep.subr.mxu0 0.0
      %4521 = vmatpush1.msra.mxu0 0.0
      %4522 = vmatprep.subr.mxu0 0.0
      %4523 = vmatpush1.msra.mxu0 0.0
      %4524 = vmatprep.subr.mxu0 0.0
      %4525 = vmatpush1.msra.mxu0 0.0
      %4526 = vmatprep.subr.mxu0 0.0
      %4527 = vmatpush1.msra.mxu0 0.0
      %4528 = vmatprep.subr.mxu0 0.0
      %4529 = vmatpush1.msra.mxu0 0.0
      %4530 = vmatprep.subr.mxu0 0.0
      %4531 = vmatpush1.msra.mxu0 0.0
      %4532 = vmatprep.subr.mxu0 0.0
      %4533 = vmatpush1.msra.mxu0 0.0
      %4534 = vmatprep.mubr.f32.mxu0 0.0
      %4535 = vmatmul.mubr.f32.gmra.mrb[0].mxu0 %v4422
      %v4536 = vpop.f32.mrb[0].mxu0
      %v4537 = vadd.f32 0.0, %v4536
      %v4538 = vpop.f32.mrb[0].mxu0
      %4539 = vmatprep.mubr.f32.mxu0 0.0
      %4540 = vmatmul.mubr.f32.gmra.mrb[0].mxu0 %v4424
      %v4541 = vpop.f32.mrb[0].mxu0
      %v4542 = vadd.f32 0.0, %v4541
      %v4543 = vpop.f32.mrb[0].mxu0
      %4544 = vmatprep.mubr.f32.mxu0 0.0
      %4545 = vmatmul.mubr.f32.gmra.mrb[0].mxu0 %v4426
      %v4546 = vpop.f32.mrb[0].mxu0
      %v4547 = vadd.f32 0.0, %v4546
      %v4548 = vpop.f32.mrb[0].mxu0
      %4549 = vmatprep.mubr.f32.mxu0 0.0
      %4550 = vmatmul.mubr.f32.gmra.mrb[0].mxu0 %v4428
      %v4551 = vpop.f32.mrb[0].mxu0
      %v4552 = vadd.f32 0.0, %v4551
      %v4553 = vpop.f32.mrb[0].mxu0
      %4554 = vmatprep.mubr.f32.mxu0 0.0
      %4555 = vmatmul.mubr.f32.gmra.mrb[0].mxu0 %v4430
      %v4556 = vpop.f32.mrb[0].mxu0
      %v4557 = vadd.f32 0.0, %v4556
      %v4558 = vpop.f32.mrb[0].mxu0
      %4559 = vmatprep.mubr.f32.mxu0 0.0
      %4560 = vmatmul.mubr.f32.gmra.mrb[0].mxu0 %v4432
      %v4561 = vpop.f32.mrb[0].mxu0
      %v4562 = vadd.f32 0.0, %v4561
      %v4563 = vpop.f32.mrb[0].mxu0
      %4564 = vmatprep.mubr.f32.mxu0 0.0
      %4565 = vmatmul.mubr.f32.gmra.mrb[0].mxu0 %v4434
      %v4566 = vpop.f32.mrb[0].mxu0
      %v4567 = vadd.f32 0.0, %v4566
      %v4568 = vpop.f32.mrb[0].mxu0
      %4569 = vmatprep.mubr.f32.mxu0 0.0
      %4570 = vmatmul.mubr.f32.gmra.mrb[0].mxu0 %v4436
      %v4571 = vpop.f32.mrb[0].mxu0
      %v4572 = vadd.f32 0.0, %v4571
      %v4573 = vpop.f32.mrb[0].mxu0
      %4574 = vmatprep.mubr.f32.mxu0 0.0
      %4575 = vmatmul.mubr.f32.gmra.mrb[0].mxu0 %v4438
      %v4576 = vpop.f32.mrb[0].mxu0
      %v4577 = vadd.f32 0.0, %v4576
      %v4578 = vpop.f32.mrb[0].mxu0
      %4579 = vmatprep.mubr.f32.mxu0 0.0
      %4580 = vmatmul.mubr.f32.gmra.mrb[0].mxu0 %v4440
      %v4581 = vpop.f32.mrb[0].mxu0
      %v4582 = vadd.f32 0.0, %v4581
      %v4583 = vpop.f32.mrb[0].mxu0
      %4584 = vmatprep.mubr.f32.mxu0 0.0
      %4585 = vmatmul.mubr.f32.gmra.mrb[0].mxu0 %v4442
      %v4586 = vpop.f32.mrb[0].mxu0
      %v4587 = vadd.f32 0.0, %v4586
      %v4588 = vpop.f32.mrb[0].mxu0
      %4589 = vmatprep.mubr.f32.mxu0 0.0
      %4590 = vmatmul.mubr.f32.gmra.mrb[0].mxu0 %v4444
      %v4591 = vpop.f32.mrb[0].mxu0
      %v4592 = vadd.f32 0.0, %v4591
      %v4593 = vpop.f32.mrb[0].mxu0
      %4594 = vmatprep.mubr.f32.mxu0 0.0
      %4595 = vmatmul.mubr.f32.gmra.mrb[0].mxu0 %v4446
      %v4596 = vpop.f32.mrb[0].mxu0
      %v4597 = vadd.f32 0.0, %v4596
      %v4598 = vpop.f32.mrb[0].mxu0
      %4599 = vmatprep.mubr.f32.mxu0 0.0
      %4600 = vmatmul.mubr.f32.gmra.mrb[0].mxu0 %v4448
      %v4601 = vpop.f32.mrb[0].mxu0
      %v4602 = vadd.f32 0.0, %v4601
      %v4603 = vpop.f32.mrb[0].mxu0
      %4604 = vmatprep.mubr.f32.mxu0 0.0
      %4605 = vmatmul.mubr.f32.gmra.mrb[0].mxu0 %v4450
      %v4606 = vpop.f32.mrb[0].mxu0
      %v4607 = vadd.f32 0.0, %v4606
      %v4608 = vpop.f32.mrb[0].mxu0
      %4609 = vmatprep.mubr.f32.mxu0 0.0
      %4610 = vmatmul.mubr.f32.gmra.mrb[0].mxu0 %v4452
      %v4611 = vpop.f32.mrb[0].mxu0
      %v4612 = vadd.f32 0.0, %v4611
      %v4613 = vpop.f32.mrb[0].mxu0
      %4614 = vmatprep.mubr.f32.mxu0 0.0
      %4615 = vmatmul.mubr.f32.gmra.mrb[0].mxu0 %v4454
      %v4616 = vpop.f32.mrb[0].mxu0
      %v4617 = vadd.f32 0.0, %v4616
      %v4618 = vpop.f32.mrb[0].mxu0
      %4619 = vmatprep.mubr.f32.mxu0 0.0
      %4620 = vmatmul.mubr.f32.gmra.mrb[0].mxu0 %v4456
      %v4621 = vpop.f32.mrb[0].mxu0
      %v4622 = vadd.f32 0.0, %v4621
      %v4623 = vpop.f32.mrb[0].mxu0
      %4624 = vmatprep.mubr.f32.mxu0 0.0
      %4625 = vmatmul.mubr.f32.gmra.mrb[0].mxu0 %v4458
      %v4626 = vpop.f32.mrb[0].mxu0
      %v4627 = vadd.f32 0.0, %v4626
      %v4628 = vpop.f32.mrb[0].mxu0
      %4629 = vmatprep.mubr.f32.mxu0 0.0
      %4630 = vmatmul.mubr.f32.gmra.mrb[0].mxu0 %v4460
      %v4631 = vpop.f32.mrb[0].mxu0
      %v4632 = vadd.f32 0.0, %v4631
      %v4633 = vpop.f32.mrb[0].mxu0
      %4634 = vmatprep.mubr.f32.mxu0 0.0
      %4635 = vmatmul.mubr.f32.gmra.mrb[0].mxu0 %v4462
      %v4636 = vpop.f32.mrb[0].mxu0
      %v4637 = vadd.f32 0.0, %v4636
      %v4638 = vpop.f32.mrb[0].mxu0
      %4639 = vmatprep.mubr.f32.mxu0 0.0
      %4640 = vmatmul.mubr.f32.gmra.mrb[0].mxu0 %v4464
      %v4641 = vpop.f32.mrb[0].mxu0
      %v4642 = vadd.f32 0.0, %v4641
      %v4643 = vpop.f32.mrb[0].mxu0
      %4644 = vmatprep.mubr.f32.mxu0 0.0
      %4645 = vmatmul.mubr.f32.gmra.mrb[0].mxu0 %v4466
      %v4646 = vpop.f32.mrb[0].mxu0
      %v4647 = vadd.f32 0.0, %v4646
      %v4648 = vpop.f32.mrb[0].mxu0
      %4649 = vmatprep.mubr.f32.mxu0 0.0
      %4650 = vmatmul.mubr.f32.gmra.mrb[0].mxu0 %v4468
      %v4651 = vpop.f32.mrb[0].mxu0
      %v4652 = vadd.f32 0.0, %v4651
      %v4653 = vpop.f32.mrb[0].mxu0
      %4654 = vdwg.mxu0
      %4679 = vrot.lane.b32.xlu0 %v4537, 32
      %v4680 = vpop.permute.xlu0 %4679
      %4681 = vrot.lane.b32.xlu0 %v4542, 32
      %v4682 = vpop.permute.xlu0 %4681
      %4683 = vrot.lane.b32.xlu0 %v4547, 32
      %v4684 = vpop.permute.xlu0 %4683
      %4685 = vrot.lane.b32.xlu0 %v4552, 32
      %v4686 = vpop.permute.xlu0 %4685
      %4687 = vrot.lane.b32.xlu0 %v4557, 32
      %v4688 = vpop.permute.xlu0 %4687
      %4689 = vrot.lane.b32.xlu0 %v4562, 32
      %v4690 = vpop.permute.xlu0 %4689
      %4691 = vrot.lane.b32.xlu0 %v4567, 32
      %v4692 = vpop.permute.xlu0 %4691
      %4693 = vrot.lane.b32.xlu0 %v4572, 32
      %v4694 = vpop.permute.xlu0 %4693
      %4695 = vrot.lane.b32.xlu0 %v4577, 32
      %v4696 = vpop.permute.xlu0 %4695
      %4697 = vrot.lane.b32.xlu0 %v4582, 32
      %v4698 = vpop.permute.xlu0 %4697
      %4699 = vrot.lane.b32.xlu0 %v4587, 32
      %v4700 = vpop.permute.xlu0 %4699
      %4701 = vrot.lane.b32.xlu0 %v4592, 32
      %v4702 = vpop.permute.xlu0 %4701
      %4703 = vrot.lane.b32.xlu0 %v4597, 32
      %v4704 = vpop.permute.xlu0 %4703
      %4705 = vrot.lane.b32.xlu0 %v4602, 32
      %v4706 = vpop.permute.xlu0 %4705
      %4707 = vrot.lane.b32.xlu0 %v4607, 32
      %v4708 = vpop.permute.xlu0 %4707
      %4709 = vrot.lane.b32.xlu0 %v4612, 32
      %v4710 = vpop.permute.xlu0 %4709
      %4711 = vrot.lane.b32.xlu0 %v4617, 32
      %v4712 = vpop.permute.xlu0 %4711
      %4713 = vrot.lane.b32.xlu0 %v4622, 32
      %v4714 = vpop.permute.xlu0 %4713
      %4715 = vrot.lane.b32.xlu0 %v4627, 32
      %v4716 = vpop.permute.xlu0 %4715
      %4717 = vrot.lane.b32.xlu0 %v4632, 32
      %v4718 = vpop.permute.xlu0 %4717
      %4719 = vrot.lane.b32.xlu0 %v4637, 32
      %v4720 = vpop.permute.xlu0 %4719
      %4721 = vrot.lane.b32.xlu0 %v4642, 32
      %v4722 = vpop.permute.xlu0 %4721
      %4723 = vrot.lane.b32.xlu0 %v4647, 32
      %v4724 = vpop.permute.xlu0 %4723
      %4725 = vrot.lane.b32.xlu0 %v4652, 32
      %v4726 = vpop.permute.xlu0 %4725
      %v4751 = vadd.f32 %v4347, %v4680
      %v4752 = vadd.f32 %v4348, %v4682
      %v4753 = vadd.f32 %v4349, %v4684
      %v4754 = vadd.f32 %v4350, %v4686
      %v4755 = vadd.f32 %v4351, %v4688
      %v4756 = vadd.f32 %v4352, %v4690
      %v4757 = vadd.f32 %v4353, %v4692
      %v4758 = vadd.f32 %v4354, %v4694
      %v4759 = vadd.f32 %v4355, %v4696
      %v4760 = vadd.f32 %v4356, %v4698
      %v4761 = vadd.f32 %v4357, %v4700
      %v4762 = vadd.f32 %v4358, %v4702
      %v4763 = vadd.f32 %v4359, %v4704
      %v4764 = vadd.f32 %v4360, %v4706
      %v4765 = vadd.f32 %v4361, %v4708
      %v4766 = vadd.f32 %v4362, %v4710
      %v4767 = vadd.f32 %v4363, %v4712
      %v4768 = vadd.f32 %v4364, %v4714
      %v4769 = vadd.f32 %v4365, %v4716
      %v4770 = vadd.f32 %v4366, %v4718
      %v4771 = vadd.f32 %v4367, %v4720
      %v4772 = vadd.f32 %v4368, %v4722
      %v4773 = vadd.f32 %v4369, %v4724
      %v4774 = vadd.f32 %v4370, %v4726
      %v4775 = vld [vmem:[%s1 + $0xcc] sm:$0x1]
      %v4776 = vlaneseq
      %v4777 = vshrl.u32 %v4776, 7
      %v4778 = vsub.s32 0, %v4777
      %v4779 = vrot.slane %v4775, %v4778
      %4781 = vrot.lane.b32.xlu0 %v4779, 32
      %v4782 = vpop.permute.xlu0 %4781
      %v4784 = vadd.f32 %v4751, %v4782
      %v4785 = vadd.f32 %v4752, %v4782
      %v4786 = vadd.f32 %v4753, %v4782
      %v4787 = vadd.f32 %v4754, %v4782
      %v4788 = vadd.f32 %v4755, %v4782
      %v4789 = vadd.f32 %v4756, %v4782
      %v4790 = vadd.f32 %v4757, %v4782
      %v4791 = vadd.f32 %v4758, %v4782
      %v4792 = vadd.f32 %v4759, %v4782
      %v4793 = vadd.f32 %v4760, %v4782
      %v4794 = vadd.f32 %v4761, %v4782
      %v4795 = vadd.f32 %v4762, %v4782
      %v4796 = vadd.f32 %v4763, %v4782
      %v4797 = vadd.f32 %v4764, %v4782
      %v4798 = vadd.f32 %v4765, %v4782
      %v4799 = vadd.f32 %v4766, %v4782
      %v4800 = vadd.f32 %v4767, %v4782
      %v4801 = vadd.f32 %v4768, %v4782
      %v4802 = vadd.f32 %v4769, %v4782
      %v4803 = vadd.f32 %v4770, %v4782
      %v4804 = vadd.f32 %v4771, %v4782
      %v4805 = vadd.f32 %v4772, %v4782
      %v4806 = vadd.f32 %v4773, %v4782
      %v4807 = vadd.f32 %v4774, %v4782
      %4832 = vrot.lane.b32.xlu0 %v4784, 96
      %v4833 = vpop.permute.xlu0 %4832
      %4834 = vrot.lane.b32.xlu0 %v4785, 96
      %v4835 = vpop.permute.xlu0 %4834
      %4836 = vrot.lane.b32.xlu0 %v4786, 96
      %v4837 = vpop.permute.xlu0 %4836
      %4838 = vrot.lane.b32.xlu0 %v4787, 96
      %v4839 = vpop.permute.xlu0 %4838
      %4840 = vrot.lane.b32.xlu0 %v4788, 96
      %v4841 = vpop.permute.xlu0 %4840
      %4842 = vrot.lane.b32.xlu0 %v4789, 96
      %v4843 = vpop.permute.xlu0 %4842
      %4844 = vrot.lane.b32.xlu0 %v4790, 96
      %v4845 = vpop.permute.xlu0 %4844
      %4846 = vrot.lane.b32.xlu0 %v4791, 96
      %v4847 = vpop.permute.xlu0 %4846
      %4848 = vrot.lane.b32.xlu0 %v4792, 96
      %v4849 = vpop.permute.xlu0 %4848
      %4850 = vrot.lane.b32.xlu0 %v4793, 96
      %v4851 = vpop.permute.xlu0 %4850
      %4852 = vrot.lane.b32.xlu0 %v4794, 96
      %v4853 = vpop.permute.xlu0 %4852
      %4854 = vrot.lane.b32.xlu0 %v4795, 96
      %v4855 = vpop.permute.xlu0 %4854
      %4856 = vrot.lane.b32.xlu0 %v4796, 96
      %v4857 = vpop.permute.xlu0 %4856
      %4858 = vrot.lane.b32.xlu0 %v4797, 96
      %v4859 = vpop.permute.xlu0 %4858
      %4860 = vrot.lane.b32.xlu0 %v4798, 96
      %v4861 = vpop.permute.xlu0 %4860
      %4862 = vrot.lane.b32.xlu0 %v4799, 96
      %v4863 = vpop.permute.xlu0 %4862
      %4864 = vrot.lane.b32.xlu0 %v4800, 96
      %v4865 = vpop.permute.xlu0 %4864
      %4866 = vrot.lane.b32.xlu0 %v4801, 96
      %v4867 = vpop.permute.xlu0 %4866
      %4868 = vrot.lane.b32.xlu0 %v4802, 96
      %v4869 = vpop.permute.xlu0 %4868
      %4870 = vrot.lane.b32.xlu0 %v4803, 96
      %v4871 = vpop.permute.xlu0 %4870
      %4872 = vrot.lane.b32.xlu0 %v4804, 96
      %v4873 = vpop.permute.xlu0 %4872
      %4874 = vrot.lane.b32.xlu0 %v4805, 96
      %v4875 = vpop.permute.xlu0 %4874
      %4876 = vrot.lane.b32.xlu0 %v4806, 96
      %v4877 = vpop.permute.xlu0 %4876
      %4878 = vrot.lane.b32.xlu0 %v4807, 96
      %v4879 = vpop.permute.xlu0 %4878
      %v4904 = vsel %vm3441, %v4833, 0.0
      %4905 = vadd.xlane.f32.xlu0 %v4904
      %v4906 = vpop.xlane.xlu0 %4905
      %v4907 = vsel %vm3441, %v4835, 0.0
      %4908 = vadd.xlane.f32.xlu0 %v4907
      %v4909 = vpop.xlane.xlu0 %4908
      %v4910 = vsel %vm3441, %v4837, 0.0
      %4911 = vadd.xlane.f32.xlu0 %v4910
      %v4912 = vpop.xlane.xlu0 %4911
      %v4913 = vsel %vm3441, %v4839, 0.0
      %4914 = vadd.xlane.f32.xlu0 %v4913
      %v4915 = vpop.xlane.xlu0 %4914
      %v4916 = vsel %vm3441, %v4841, 0.0
      %4917 = vadd.xlane.f32.xlu0 %v4916
      %v4918 = vpop.xlane.xlu0 %4917
      %v4919 = vsel %vm3441, %v4843, 0.0
      %4920 = vadd.xlane.f32.xlu0 %v4919
      %v4921 = vpop.xlane.xlu0 %4920
      %v4922 = vsel %vm3441, %v4845, 0.0
      %4923 = vadd.xlane.f32.xlu0 %v4922
      %v4924 = vpop.xlane.xlu0 %4923
      %v4925 = vsel %vm3441, %v4847, 0.0
      %4926 = vadd.xlane.f32.xlu0 %v4925
      %v4927 = vpop.xlane.xlu0 %4926
      %v4928 = vsel %vm3441, %v4849, 0.0
      %4929 = vadd.xlane.f32.xlu0 %v4928
      %v4930 = vpop.xlane.xlu0 %4929
      %v4931 = vsel %vm3441, %v4851, 0.0
      %4932 = vadd.xlane.f32.xlu0 %v4931
      %v4933 = vpop.xlane.xlu0 %4932
      %v4934 = vsel %vm3441, %v4853, 0.0
      %4935 = vadd.xlane.f32.xlu0 %v4934
      %v4936 = vpop.xlane.xlu0 %4935
      %v4937 = vsel %vm3441, %v4855, 0.0
      %4938 = vadd.xlane.f32.xlu0 %v4937
      %v4939 = vpop.xlane.xlu0 %4938
      %v4940 = vsel %vm3441, %v4857, 0.0
      %4941 = vadd.xlane.f32.xlu0 %v4940
      %v4942 = vpop.xlane.xlu0 %4941
      %v4943 = vsel %vm3441, %v4859, 0.0
      %4944 = vadd.xlane.f32.xlu0 %v4943
      %v4945 = vpop.xlane.xlu0 %4944
      %v4946 = vsel %vm3441, %v4861, 0.0
      %4947 = vadd.xlane.f32.xlu0 %v4946
      %v4948 = vpop.xlane.xlu0 %4947
      %v4949 = vsel %vm3441, %v4863, 0.0
      %4950 = vadd.xlane.f32.xlu0 %v4949
      %v4951 = vpop.xlane.xlu0 %4950
      %v4952 = vsel %vm3441, %v4865, 0.0
      %4953 = vadd.xlane.f32.xlu0 %v4952
      %v4954 = vpop.xlane.xlu0 %4953
      %v4955 = vsel %vm3441, %v4867, 0.0
      %4956 = vadd.xlane.f32.xlu0 %v4955
      %v4957 = vpop.xlane.xlu0 %4956
      %v4958 = vsel %vm3441, %v4869, 0.0
      %4959 = vadd.xlane.f32.xlu0 %v4958
      %v4960 = vpop.xlane.xlu0 %4959
      %v4961 = vsel %vm3441, %v4871, 0.0
      %4962 = vadd.xlane.f32.xlu0 %v4961
      %v4963 = vpop.xlane.xlu0 %4962
      %v4964 = vsel %vm3441, %v4873, 0.0
      %4965 = vadd.xlane.f32.xlu0 %v4964
      %v4966 = vpop.xlane.xlu0 %4965
      %v4967 = vsel %vm3441, %v4875, 0.0
      %4968 = vadd.xlane.f32.xlu0 %v4967
      %v4969 = vpop.xlane.xlu0 %4968
      %v4970 = vsel %vm3441, %v4877, 0.0
      %4971 = vadd.xlane.f32.xlu0 %v4970
      %v4972 = vpop.xlane.xlu0 %4971
      %v4973 = vsel %vm3441, %v4879, 0.0
      %4974 = vadd.xlane.f32.xlu0 %v4973
      %v4975 = vpop.xlane.xlu0 %4974
      %v4976 = vrcp.pop 32.0
      %v4977 = vmul.f32 %v4906, %v4976
      %v4978 = vmul.f32 %v4909, %v4976
      %v4979 = vmul.f32 %v4912, %v4976
      %v4980 = vmul.f32 %v4915, %v4976
      %v4981 = vmul.f32 %v4918, %v4976
      %v4982 = vmul.f32 %v4921, %v4976
      %v4983 = vmul.f32 %v4924, %v4976
      %v4984 = vmul.f32 %v4927, %v4976
      %v4985 = vmul.f32 %v4930, %v4976
      %v4986 = vmul.f32 %v4933, %v4976
      %v4987 = vmul.f32 %v4936, %v4976
      %v4988 = vmul.f32 %v4939, %v4976
      %v4989 = vmul.f32 %v4942, %v4976
      %v4990 = vmul.f32 %v4945, %v4976
      %v4991 = vmul.f32 %v4948, %v4976
      %v4992 = vmul.f32 %v4951, %v4976
      %v4993 = vmul.f32 %v4954, %v4976
      %v4994 = vmul.f32 %v4957, %v4976
      %v4995 = vmul.f32 %v4960, %v4976
      %v4996 = vmul.f32 %v4963, %v4976
      %v4997 = vmul.f32 %v4966, %v4976
      %v4998 = vmul.f32 %v4969, %v4976
      %v4999 = vmul.f32 %v4972, %v4976
      %v5000 = vmul.f32 %v4975, %v4976
      %v5001 = vsub.f32 %v4784, %v4977
      %v5002 = vsub.f32 %v4785, %v4978
      %v5003 = vsub.f32 %v4786, %v4979
      %v5004 = vsub.f32 %v4787, %v4980
      %v5005 = vsub.f32 %v4788, %v4981
      %v5006 = vsub.f32 %v4789, %v4982
      %v5007 = vsub.f32 %v4790, %v4983
      %v5008 = vsub.f32 %v4791, %v4984
      %v5009 = vsub.f32 %v4792, %v4985
      %v5010 = vsub.f32 %v4793, %v4986
      %v5011 = vsub.f32 %v4794, %v4987
      %v5012 = vsub.f32 %v4795, %v4988
      %v5013 = vsub.f32 %v4796, %v4989
      %v5014 = vsub.f32 %v4797, %v4990
      %v5015 = vsub.f32 %v4798, %v4991
      %v5016 = vsub.f32 %v4799, %v4992
      %v5017 = vsub.f32 %v4800, %v4993
      %v5018 = vsub.f32 %v4801, %v4994
      %v5019 = vsub.f32 %v4802, %v4995
      %v5020 = vsub.f32 %v4803, %v4996
      %v5021 = vsub.f32 %v4804, %v4997
      %v5022 = vsub.f32 %v4805, %v4998
      %v5023 = vsub.f32 %v4806, %v4999
      %v5024 = vsub.f32 %v4807, %v5000
      %v5025 = vmul.f32 %v5001, %v5001
      %v5026 = vmul.f32 %v5002, %v5002
      %v5027 = vmul.f32 %v5003, %v5003
      %v5028 = vmul.f32 %v5004, %v5004
      %v5029 = vmul.f32 %v5005, %v5005
      %v5030 = vmul.f32 %v5006, %v5006
      %v5031 = vmul.f32 %v5007, %v5007
      %v5032 = vmul.f32 %v5008, %v5008
      %v5033 = vmul.f32 %v5009, %v5009
      %v5034 = vmul.f32 %v5010, %v5010
      %v5035 = vmul.f32 %v5011, %v5011
      %v5036 = vmul.f32 %v5012, %v5012
      %v5037 = vmul.f32 %v5013, %v5013
      %v5038 = vmul.f32 %v5014, %v5014
      %v5039 = vmul.f32 %v5015, %v5015
      %v5040 = vmul.f32 %v5016, %v5016
      %v5041 = vmul.f32 %v5017, %v5017
      %v5042 = vmul.f32 %v5018, %v5018
      %v5043 = vmul.f32 %v5019, %v5019
      %v5044 = vmul.f32 %v5020, %v5020
      %v5045 = vmul.f32 %v5021, %v5021
      %v5046 = vmul.f32 %v5022, %v5022
      %v5047 = vmul.f32 %v5023, %v5023
      %v5048 = vmul.f32 %v5024, %v5024
      %5073 = vrot.lane.b32.xlu0 %v5025, 96
      %v5074 = vpop.permute.xlu0 %5073
      %5075 = vrot.lane.b32.xlu0 %v5026, 96
      %v5076 = vpop.permute.xlu0 %5075
      %5077 = vrot.lane.b32.xlu0 %v5027, 96
      %v5078 = vpop.permute.xlu0 %5077
      %5079 = vrot.lane.b32.xlu0 %v5028, 96
      %v5080 = vpop.permute.xlu0 %5079
      %5081 = vrot.lane.b32.xlu0 %v5029, 96
      %v5082 = vpop.permute.xlu0 %5081
      %5083 = vrot.lane.b32.xlu0 %v5030, 96
      %v5084 = vpop.permute.xlu0 %5083
      %5085 = vrot.lane.b32.xlu0 %v5031, 96
      %v5086 = vpop.permute.xlu0 %5085
      %5087 = vrot.lane.b32.xlu0 %v5032, 96
      %v5088 = vpop.permute.xlu0 %5087
      %5089 = vrot.lane.b32.xlu0 %v5033, 96
      %v5090 = vpop.permute.xlu0 %5089
      %5091 = vrot.lane.b32.xlu0 %v5034, 96
      %v5092 = vpop.permute.xlu0 %5091
      %5093 = vrot.lane.b32.xlu0 %v5035, 96
      %v5094 = vpop.permute.xlu0 %5093
      %5095 = vrot.lane.b32.xlu0 %v5036, 96
      %v5096 = vpop.permute.xlu0 %5095
      %5097 = vrot.lane.b32.xlu0 %v5037, 96
      %v5098 = vpop.permute.xlu0 %5097
      %5099 = vrot.lane.b32.xlu0 %v5038, 96
      %v5100 = vpop.permute.xlu0 %5099
      %5101 = vrot.lane.b32.xlu0 %v5039, 96
      %v5102 = vpop.permute.xlu0 %5101
      %5103 = vrot.lane.b32.xlu0 %v5040, 96
      %v5104 = vpop.permute.xlu0 %5103
      %5105 = vrot.lane.b32.xlu0 %v5041, 96
      %v5106 = vpop.permute.xlu0 %5105
      %5107 = vrot.lane.b32.xlu0 %v5042, 96
      %v5108 = vpop.permute.xlu0 %5107
      %5109 = vrot.lane.b32.xlu0 %v5043, 96
      %v5110 = vpop.permute.xlu0 %5109
      %5111 = vrot.lane.b32.xlu0 %v5044, 96
      %v5112 = vpop.permute.xlu0 %5111
      %5113 = vrot.lane.b32.xlu0 %v5045, 96
      %v5114 = vpop.permute.xlu0 %5113
      %5115 = vrot.lane.b32.xlu0 %v5046, 96
      %v5116 = vpop.permute.xlu0 %5115
      %5117 = vrot.lane.b32.xlu0 %v5047, 96
      %v5118 = vpop.permute.xlu0 %5117
      %5119 = vrot.lane.b32.xlu0 %v5048, 96
      %v5120 = vpop.permute.xlu0 %5119
      %v5145 = vsel %vm3441, %v5074, 0.0
      %5146 = vadd.xlane.f32.xlu0 %v5145
      %v5147 = vpop.xlane.xlu0 %5146
      %v5148 = vsel %vm3441, %v5076, 0.0
      %5149 = vadd.xlane.f32.xlu0 %v5148
      %v5150 = vpop.xlane.xlu0 %5149
      %v5151 = vsel %vm3441, %v5078, 0.0
      %5152 = vadd.xlane.f32.xlu0 %v5151
      %v5153 = vpop.xlane.xlu0 %5152
      %v5154 = vsel %vm3441, %v5080, 0.0
      %5155 = vadd.xlane.f32.xlu0 %v5154
      %v5156 = vpop.xlane.xlu0 %5155
      %v5157 = vsel %vm3441, %v5082, 0.0
      %5158 = vadd.xlane.f32.xlu0 %v5157
      %v5159 = vpop.xlane.xlu0 %5158
      %v5160 = vsel %vm3441, %v5084, 0.0
      %5161 = vadd.xlane.f32.xlu0 %v5160
      %v5162 = vpop.xlane.xlu0 %5161
      %v5163 = vsel %vm3441, %v5086, 0.0
      %5164 = vadd.xlane.f32.xlu0 %v5163
      %v5165 = vpop.xlane.xlu0 %5164
      %v5166 = vsel %vm3441, %v5088, 0.0
      %5167 = vadd.xlane.f32.xlu0 %v5166
      %v5168 = vpop.xlane.xlu0 %5167
      %v5169 = vsel %vm3441, %v5090, 0.0
      %5170 = vadd.xlane.f32.xlu0 %v5169
      %v5171 = vpop.xlane.xlu0 %5170
      %v5172 = vsel %vm3441, %v5092, 0.0
      %5173 = vadd.xlane.f32.xlu0 %v5172
      %v5174 = vpop.xlane.xlu0 %5173
      %v5175 = vsel %vm3441, %v5094, 0.0
      %5176 = vadd.xlane.f32.xlu0 %v5175
      %v5177 = vpop.xlane.xlu0 %5176
      %v5178 = vsel %vm3441, %v5096, 0.0
      %5179 = vadd.xlane.f32.xlu0 %v5178
      %v5180 = vpop.xlane.xlu0 %5179
      %v5181 = vsel %vm3441, %v5098, 0.0
      %5182 = vadd.xlane.f32.xlu0 %v5181
      %v5183 = vpop.xlane.xlu0 %5182
      %v5184 = vsel %vm3441, %v5100, 0.0
      %5185 = vadd.xlane.f32.xlu0 %v5184
      %v5186 = vpop.xlane.xlu0 %5185
      %v5187 = vsel %vm3441, %v5102, 0.0
      %5188 = vadd.xlane.f32.xlu0 %v5187
      %v5189 = vpop.xlane.xlu0 %5188
      %v5190 = vsel %vm3441, %v5104, 0.0
      %5191 = vadd.xlane.f32.xlu0 %v5190
      %v5192 = vpop.xlane.xlu0 %5191
      %v5193 = vsel %vm3441, %v5106, 0.0
      %5194 = vadd.xlane.f32.xlu0 %v5193
      %v5195 = vpop.xlane.xlu0 %5194
      %v5196 = vsel %vm3441, %v5108, 0.0
      %5197 = vadd.xlane.f32.xlu0 %v5196
      %v5198 = vpop.xlane.xlu0 %5197
      %v5199 = vsel %vm3441, %v5110, 0.0
      %5200 = vadd.xlane.f32.xlu0 %v5199
      %v5201 = vpop.xlane.xlu0 %5200
      %v5202 = vsel %vm3441, %v5112, 0.0
      %5203 = vadd.xlane.f32.xlu0 %v5202
      %v5204 = vpop.xlane.xlu0 %5203
      %v5205 = vsel %vm3441, %v5114, 0.0
      %5206 = vadd.xlane.f32.xlu0 %v5205
      %v5207 = vpop.xlane.xlu0 %5206
      %v5208 = vsel %vm3441, %v5116, 0.0
      %5209 = vadd.xlane.f32.xlu0 %v5208
      %v5210 = vpop.xlane.xlu0 %5209
      %v5211 = vsel %vm3441, %v5118, 0.0
      %5212 = vadd.xlane.f32.xlu0 %v5211
      %v5213 = vpop.xlane.xlu0 %5212
      %v5214 = vsel %vm3441, %v5120, 0.0
      %5215 = vadd.xlane.f32.xlu0 %v5214
      %v5216 = vpop.xlane.xlu0 %5215
      %v5217 = vmul.f32 %v5147, %v4976
      %v5218 = vmul.f32 %v5150, %v4976
      %v5219 = vmul.f32 %v5153, %v4976
      %v5220 = vmul.f32 %v5156, %v4976
      %v5221 = vmul.f32 %v5159, %v4976
      %v5222 = vmul.f32 %v5162, %v4976
      %v5223 = vmul.f32 %v5165, %v4976
      %v5224 = vmul.f32 %v5168, %v4976
      %v5225 = vmul.f32 %v5171, %v4976
      %v5226 = vmul.f32 %v5174, %v4976
      %v5227 = vmul.f32 %v5177, %v4976
      %v5228 = vmul.f32 %v5180, %v4976
      %v5229 = vmul.f32 %v5183, %v4976
      %v5230 = vmul.f32 %v5186, %v4976
      %v5231 = vmul.f32 %v5189, %v4976
      %v5232 = vmul.f32 %v5192, %v4976
      %v5233 = vmul.f32 %v5195, %v4976
      %v5234 = vmul.f32 %v5198, %v4976
      %v5235 = vmul.f32 %v5201, %v4976
      %v5236 = vmul.f32 %v5204, %v4976
      %v5237 = vmul.f32 %v5207, %v4976
      %v5238 = vmul.f32 %v5210, %v4976
      %v5239 = vmul.f32 %v5213, %v4976
      %v5240 = vmul.f32 %v5216, %v4976
      %v5241 = vadd.f32 %v5217, 1e-05
      %v5242 = vadd.f32 %v5218, 1e-05
      %v5243 = vadd.f32 %v5219, 1e-05
      %v5244 = vadd.f32 %v5220, 1e-05
      %v5245 = vadd.f32 %v5221, 1e-05
      %v5246 = vadd.f32 %v5222, 1e-05
      %v5247 = vadd.f32 %v5223, 1e-05
      %v5248 = vadd.f32 %v5224, 1e-05
      %v5249 = vadd.f32 %v5225, 1e-05
      %v5250 = vadd.f32 %v5226, 1e-05
      %v5251 = vadd.f32 %v5227, 1e-05
      %v5252 = vadd.f32 %v5228, 1e-05
      %v5253 = vadd.f32 %v5229, 1e-05
      %v5254 = vadd.f32 %v5230, 1e-05
      %v5255 = vadd.f32 %v5231, 1e-05
      %v5256 = vadd.f32 %v5232, 1e-05
      %v5257 = vadd.f32 %v5233, 1e-05
      %v5258 = vadd.f32 %v5234, 1e-05
      %v5259 = vadd.f32 %v5235, 1e-05
      %v5260 = vadd.f32 %v5236, 1e-05
      %v5261 = vadd.f32 %v5237, 1e-05
      %v5262 = vadd.f32 %v5238, 1e-05
      %v5263 = vadd.f32 %v5239, 1e-05
      %v5264 = vadd.f32 %v5240, 1e-05
      %v5265 = vrsqrt.pop %v5241
      %v5266 = vrsqrt.pop %v5242
      %v5267 = vrsqrt.pop %v5243
      %v5268 = vrsqrt.pop %v5244
      %v5269 = vrsqrt.pop %v5245
      %v5270 = vrsqrt.pop %v5246
      %v5271 = vrsqrt.pop %v5247
      %v5272 = vrsqrt.pop %v5248
      %v5273 = vrsqrt.pop %v5249
      %v5274 = vrsqrt.pop %v5250
      %v5275 = vrsqrt.pop %v5251
      %v5276 = vrsqrt.pop %v5252
      %v5277 = vrsqrt.pop %v5253
      %v5278 = vrsqrt.pop %v5254
      %v5279 = vrsqrt.pop %v5255
      %v5280 = vrsqrt.pop %v5256
      %v5281 = vrsqrt.pop %v5257
      %v5282 = vrsqrt.pop %v5258
      %v5283 = vrsqrt.pop %v5259
      %v5284 = vrsqrt.pop %v5260
      %v5285 = vrsqrt.pop %v5261
      %v5286 = vrsqrt.pop %v5262
      %v5287 = vrsqrt.pop %v5263
      %v5288 = vrsqrt.pop %v5264
      %v5289 = vmul.f32 %v5001, %v5265
      %v5290 = vmul.f32 %v5002, %v5266
      %v5291 = vmul.f32 %v5003, %v5267
      %v5292 = vmul.f32 %v5004, %v5268
      %v5293 = vmul.f32 %v5005, %v5269
      %v5294 = vmul.f32 %v5006, %v5270
      %v5295 = vmul.f32 %v5007, %v5271
      %v5296 = vmul.f32 %v5008, %v5272
      %v5297 = vmul.f32 %v5009, %v5273
      %v5298 = vmul.f32 %v5010, %v5274
      %v5299 = vmul.f32 %v5011, %v5275
      %v5300 = vmul.f32 %v5012, %v5276
      %v5301 = vmul.f32 %v5013, %v5277
      %v5302 = vmul.f32 %v5014, %v5278
      %v5303 = vmul.f32 %v5015, %v5279
      %v5304 = vmul.f32 %v5016, %v5280
      %v5305 = vmul.f32 %v5017, %v5281
      %v5306 = vmul.f32 %v5018, %v5282
      %v5307 = vmul.f32 %v5019, %v5283
      %v5308 = vmul.f32 %v5020, %v5284
      %v5309 = vmul.f32 %v5021, %v5285
      %v5310 = vmul.f32 %v5022, %v5286
      %v5311 = vmul.f32 %v5023, %v5287
      %v5312 = vmul.f32 %v5024, %v5288
      %v5313 = vld [vmem:[%s1 + $0xcd] sm:$0x1]
      %v5314 = vlaneseq
      %v5315 = vshrl.u32 %v5314, 7
      %v5316 = vsub.s32 0, %v5315
      %v5317 = vrot.slane %v5313, %v5316
      %5319 = vrot.lane.b32.xlu0 %v5317, 32
      %v5320 = vpop.permute.xlu0 %5319
      %v5322 = vmul.f32 %v5289, %v5320
      %v5323 = vmul.f32 %v5290, %v5320
      %v5324 = vmul.f32 %v5291, %v5320
      %v5325 = vmul.f32 %v5292, %v5320
      %v5326 = vmul.f32 %v5293, %v5320
      %v5327 = vmul.f32 %v5294, %v5320
      %v5328 = vmul.f32 %v5295, %v5320
      %v5329 = vmul.f32 %v5296, %v5320
      %v5330 = vmul.f32 %v5297, %v5320
      %v5331 = vmul.f32 %v5298, %v5320
      %v5332 = vmul.f32 %v5299, %v5320
      %v5333 = vmul.f32 %v5300, %v5320
      %v5334 = vmul.f32 %v5301, %v5320
      %v5335 = vmul.f32 %v5302, %v5320
      %v5336 = vmul.f32 %v5303, %v5320
      %v5337 = vmul.f32 %v5304, %v5320
      %v5338 = vmul.f32 %v5305, %v5320
      %v5339 = vmul.f32 %v5306, %v5320
      %v5340 = vmul.f32 %v5307, %v5320
      %v5341 = vmul.f32 %v5308, %v5320
      %v5342 = vmul.f32 %v5309, %v5320
      %v5343 = vmul.f32 %v5310, %v5320
      %v5344 = vmul.f32 %v5311, %v5320
      %v5345 = vmul.f32 %v5312, %v5320
      %v5346 = vld [vmem:[%s1 + $0xce] sm:$0x1]
      %v5347 = vlaneseq
      %v5348 = vshrl.u32 %v5347, 7
      %v5349 = vsub.s32 0, %v5348
      %v5350 = vrot.slane %v5346, %v5349
      %5352 = vrot.lane.b32.xlu0 %v5350, 32
      %v5353 = vpop.permute.xlu0 %5352
      %v5355 = vadd.f32 %v5322, %v5353
      %v5356 = vadd.f32 %v5323, %v5353
      %v5357 = vadd.f32 %v5324, %v5353
      %v5358 = vadd.f32 %v5325, %v5353
      %v5359 = vadd.f32 %v5326, %v5353
      %v5360 = vadd.f32 %v5327, %v5353
      %v5361 = vadd.f32 %v5328, %v5353
      %v5362 = vadd.f32 %v5329, %v5353
      %v5363 = vadd.f32 %v5330, %v5353
      %v5364 = vadd.f32 %v5331, %v5353
      %v5365 = vadd.f32 %v5332, %v5353
      %v5366 = vadd.f32 %v5333, %v5353
      %v5367 = vadd.f32 %v5334, %v5353
      %v5368 = vadd.f32 %v5335, %v5353
      %v5369 = vadd.f32 %v5336, %v5353
      %v5370 = vadd.f32 %v5337, %v5353
      %v5371 = vadd.f32 %v5338, %v5353
      %v5372 = vadd.f32 %v5339, %v5353
      %v5373 = vadd.f32 %v5340, %v5353
      %v5374 = vadd.f32 %v5341, %v5353
      %v5375 = vadd.f32 %v5342, %v5353
      %v5376 = vadd.f32 %v5343, %v5353
      %v5377 = vadd.f32 %v5344, %v5353
      %v5378 = vadd.f32 %v5345, %v5353
      %v5379 = vld [vmem:[%s1 + $0x78] sm:$0xff]
      %v5380 = vld [vmem:[%s1 + $0x80] sm:$0xff]
      %v5381 = vld [vmem:[%s1 + $0x88] sm:$0xff]
      %v5382 = vld [vmem:[%s1 + $0x90] sm:$0xff]
      %v5383 = vld [vmem:[%s1 + $0xcf] sm:$0x1]
      %v5384 = vlaneseq
      %v5385 = vshrl.u32 %v5384, 7
      %v5386 = vsub.s32 0, %v5385
      %v5387 = vrot.slane %v5383, %v5386
      %5412 = vrot.lane.b32.xlu0 %v5355, 96
      %v5413 = vpop.permute.xlu0 %5412
      %5414 = vrot.lane.b32.xlu0 %v5356, 96
      %v5415 = vpop.permute.xlu0 %5414
      %5416 = vrot.lane.b32.xlu0 %v5357, 96
      %v5417 = vpop.permute.xlu0 %5416
      %5418 = vrot.lane.b32.xlu0 %v5358, 96
      %v5419 = vpop.permute.xlu0 %5418
      %5420 = vrot.lane.b32.xlu0 %v5359, 96
      %v5421 = vpop.permute.xlu0 %5420
      %5422 = vrot.lane.b32.xlu0 %v5360, 96
      %v5423 = vpop.permute.xlu0 %5422
      %5424 = vrot.lane.b32.xlu0 %v5361, 96
      %v5425 = vpop.permute.xlu0 %5424
      %5426 = vrot.lane.b32.xlu0 %v5362, 96
      %v5427 = vpop.permute.xlu0 %5426
      %5428 = vrot.lane.b32.xlu0 %v5363, 96
      %v5429 = vpop.permute.xlu0 %5428
      %5430 = vrot.lane.b32.xlu0 %v5364, 96
      %v5431 = vpop.permute.xlu0 %5430
      %5432 = vrot.lane.b32.xlu0 %v5365, 96
      %v5433 = vpop.permute.xlu0 %5432
      %5434 = vrot.lane.b32.xlu0 %v5366, 96
      %v5435 = vpop.permute.xlu0 %5434
      %5436 = vrot.lane.b32.xlu0 %v5367, 96
      %v5437 = vpop.permute.xlu0 %5436
      %5438 = vrot.lane.b32.xlu0 %v5368, 96
      %v5439 = vpop.permute.xlu0 %5438
      %5440 = vrot.lane.b32.xlu0 %v5369, 96
      %v5441 = vpop.permute.xlu0 %5440
      %5442 = vrot.lane.b32.xlu0 %v5370, 96
      %v5443 = vpop.permute.xlu0 %5442
      %5444 = vrot.lane.b32.xlu0 %v5371, 96
      %v5445 = vpop.permute.xlu0 %5444
      %5446 = vrot.lane.b32.xlu0 %v5372, 96
      %v5447 = vpop.permute.xlu0 %5446
      %5448 = vrot.lane.b32.xlu0 %v5373, 96
      %v5449 = vpop.permute.xlu0 %5448
      %5450 = vrot.lane.b32.xlu0 %v5374, 96
      %v5451 = vpop.permute.xlu0 %5450
      %5452 = vrot.lane.b32.xlu0 %v5375, 96
      %v5453 = vpop.permute.xlu0 %5452
      %5454 = vrot.lane.b32.xlu0 %v5376, 96
      %v5455 = vpop.permute.xlu0 %5454
      %5456 = vrot.lane.b32.xlu0 %v5377, 96
      %v5457 = vpop.permute.xlu0 %5456
      %5458 = vrot.lane.b32.xlu0 %v5378, 96
      %v5459 = vpop.permute.xlu0 %5458
      %v5460 = vsel %vm3441, %v5413, 0
      %v5462 = vsel %vm3441, %v5415, 0
      %v5464 = vsel %vm3441, %v5417, 0
      %v5466 = vsel %vm3441, %v5419, 0
      %v5468 = vsel %vm3441, %v5421, 0
      %v5470 = vsel %vm3441, %v5423, 0
      %v5472 = vsel %vm3441, %v5425, 0
      %v5474 = vsel %vm3441, %v5427, 0
      %v5476 = vsel %vm3441, %v5429, 0
      %v5478 = vsel %vm3441, %v5431, 0
      %v5480 = vsel %vm3441, %v5433, 0
      %v5482 = vsel %vm3441, %v5435, 0
      %v5484 = vsel %vm3441, %v5437, 0
      %v5486 = vsel %vm3441, %v5439, 0
      %v5488 = vsel %vm3441, %v5441, 0
      %v5490 = vsel %vm3441, %v5443, 0
      %v5492 = vsel %vm3441, %v5445, 0
      %v5494 = vsel %vm3441, %v5447, 0
      %v5496 = vsel %vm3441, %v5449, 0
      %v5498 = vsel %vm3441, %v5451, 0
      %v5500 = vsel %vm3441, %v5453, 0
      %v5502 = vsel %vm3441, %v5455, 0
      %v5504 = vsel %vm3441, %v5457, 0
      %v5506 = vsel %vm3441, %v5459, 0
      %5508 = vmatprep.subr.mxu0 0.0
      %5509 = vmatpush1.msra.mxu0 %v5379
      %5510 = vmatprep.subr.mxu0 0.0
      %5511 = vmatpush1.msra.mxu0 %v5380
      %5512 = vmatprep.subr.mxu0 0.0
      %5513 = vmatpush1.msra.mxu0 %v5381
      %5514 = vmatprep.subr.mxu0 0.0
      %5515 = vmatpush1.msra.mxu0 %v5382
      %5516 = vmatprep.subr.mxu0 0.0
      %5517 = vmatpush1.msra.mxu0 0.0
      %5518 = vmatprep.subr.mxu0 0.0
      %5519 = vmatpush1.msra.mxu0 0.0
      %5520 = vmatprep.subr.mxu0 0.0
      %5521 = vmatpush1.msra.mxu0 0.0
      %5522 = vmatprep.subr.mxu0 0.0
      %5523 = vmatpush1.msra.mxu0 0.0
      %5524 = vmatprep.subr.mxu0 0.0
      %5525 = vmatpush1.msra.mxu0 0.0
      %5526 = vmatprep.subr.mxu0 0.0
      %5527 = vmatpush1.msra.mxu0 0.0
      %5528 = vmatprep.subr.mxu0 0.0
      %5529 = vmatpush1.msra.mxu0 0.0
      %5530 = vmatprep.subr.mxu0 0.0
      %5531 = vmatpush1.msra.mxu0 0.0
      %5532 = vmatprep.subr.mxu0 0.0
      %5533 = vmatpush1.msra.mxu0 0.0
      %5534 = vmatprep.subr.mxu0 0.0
      %5535 = vmatpush1.msra.mxu0 0.0
      %5536 = vmatprep.subr.mxu0 0.0
      %5537 = vmatpush1.msra.mxu0 0.0
      %5538 = vmatprep.subr.mxu0 0.0
      %5539 = vmatpush1.msra.mxu0 0.0
      %5540 = vmatprep.subr.mxu0 0.0
      %5541 = vmatpush1.msra.mxu0 0.0
      %5542 = vmatprep.subr.mxu0 0.0
      %5543 = vmatpush1.msra.mxu0 0.0
      %5544 = vmatprep.subr.mxu0 0.0
      %5545 = vmatpush1.msra.mxu0 0.0
      %5546 = vmatprep.subr.mxu0 0.0
      %5547 = vmatpush1.msra.mxu0 0.0
      %5548 = vmatprep.subr.mxu0 0.0
      %5549 = vmatpush1.msra.mxu0 0.0
      %5550 = vmatprep.subr.mxu0 0.0
      %5551 = vmatpush1.msra.mxu0 0.0
      %5552 = vmatprep.subr.mxu0 0.0
      %5553 = vmatpush1.msra.mxu0 0.0
      %5554 = vmatprep.subr.mxu0 0.0
      %5555 = vmatpush1.msra.mxu0 0.0
      %5556 = vmatprep.subr.mxu0 0.0
      %5557 = vmatpush1.msra.mxu0 0.0
      %5558 = vmatprep.subr.mxu0 0.0
      %5559 = vmatpush1.msra.mxu0 0.0
      %5560 = vmatprep.subr.mxu0 0.0
      %5561 = vmatpush1.msra.mxu0 0.0
      %5562 = vmatprep.subr.mxu0 0.0
      %5563 = vmatpush1.msra.mxu0 0.0
      %5564 = vmatprep.subr.mxu0 0.0
      %5565 = vmatpush1.msra.mxu0 0.0
      %5566 = vmatprep.subr.mxu0 0.0
      %5567 = vmatpush1.msra.mxu0 0.0
      %5568 = vmatprep.subr.mxu0 0.0
      %5569 = vmatpush1.msra.mxu0 0.0
      %5570 = vmatprep.subr.mxu0 0.0
      %5571 = vmatpush1.msra.mxu0 0.0
      %5572 = vmatprep.mubr.f32.mxu0 0.0
      %5573 = vmatmul.mubr.f32.gmra.mrb[0].mxu0 %v5460
      %v5574 = vpop.f32.mrb[0].mxu0
      %v5575 = vadd.f32 %v5387, %v5574
      %v5576 = vpop.f32.mrb[0].mxu0
      %5577 = vmatprep.mubr.f32.mxu0 0.0
      %5578 = vmatmul.mubr.f32.gmra.mrb[0].mxu0 %v5462
      %v5579 = vpop.f32.mrb[0].mxu0
      %v5580 = vpop.f32.mrb[0].mxu0
      %5581 = vmatprep.mubr.f32.mxu0 0.0
      %5582 = vmatmul.mubr.f32.gmra.mrb[0].mxu0 %v5464
      %v5583 = vpop.f32.mrb[0].mxu0
      %v5584 = vpop.f32.mrb[0].mxu0
      %5585 = vmatprep.mubr.f32.mxu0 0.0
      %5586 = vmatmul.mubr.f32.gmra.mrb[0].mxu0 %v5466
      %v5587 = vpop.f32.mrb[0].mxu0
      %v5588 = vadd.f32 %v5387, %v5587
      %v5589 = vpop.f32.mrb[0].mxu0
      %5590 = vmatprep.mubr.f32.mxu0 0.0
      %5591 = vmatmul.mubr.f32.gmra.mrb[0].mxu0 %v5468
      %v5592 = vpop.f32.mrb[0].mxu0
      %v5593 = vpop.f32.mrb[0].mxu0
      %5594 = vmatprep.mubr.f32.mxu0 0.0
      %5595 = vmatmul.mubr.f32.gmra.mrb[0].mxu0 %v5470
      %v5596 = vpop.f32.mrb[0].mxu0
      %v5597 = vpop.f32.mrb[0].mxu0
      %5598 = vmatprep.mubr.f32.mxu0 0.0
      %5599 = vmatmul.mubr.f32.gmra.mrb[0].mxu0 %v5472
      %v5600 = vpop.f32.mrb[0].mxu0
      %v5601 = vadd.f32 %v5387, %v5600
      %v5602 = vpop.f32.mrb[0].mxu0
      %5603 = vmatprep.mubr.f32.mxu0 0.0
      %5604 = vmatmul.mubr.f32.gmra.mrb[0].mxu0 %v5474
      %v5605 = vpop.f32.mrb[0].mxu0
      %v5606 = vpop.f32.mrb[0].mxu0
      %5607 = vmatprep.mubr.f32.mxu0 0.0
      %5608 = vmatmul.mubr.f32.gmra.mrb[0].mxu0 %v5476
      %v5609 = vpop.f32.mrb[0].mxu0
      %v5610 = vpop.f32.mrb[0].mxu0
      %5611 = vmatprep.mubr.f32.mxu0 0.0
      %5612 = vmatmul.mubr.f32.gmra.mrb[0].mxu0 %v5478
      %v5613 = vpop.f32.mrb[0].mxu0
      %v5614 = vadd.f32 %v5387, %v5613
      %v5615 = vpop.f32.mrb[0].mxu0
      %5616 = vmatprep.mubr.f32.mxu0 0.0
      %5617 = vmatmul.mubr.f32.gmra.mrb[0].mxu0 %v5480
      %v5618 = vpop.f32.mrb[0].mxu0
      %v5619 = vpop.f32.mrb[0].mxu0
      %5620 = vmatprep.mubr.f32.mxu0 0.0
      %5621 = vmatmul.mubr.f32.gmra.mrb[0].mxu0 %v5482
      %v5622 = vpop.f32.mrb[0].mxu0
      %v5623 = vpop.f32.mrb[0].mxu0
      %5624 = vmatprep.mubr.f32.mxu0 0.0
      %5625 = vmatmul.mubr.f32.gmra.mrb[0].mxu0 %v5484
      %v5626 = vpop.f32.mrb[0].mxu0
      %v5627 = vadd.f32 %v5387, %v5626
      %v5628 = vpop.f32.mrb[0].mxu0
      %5629 = vmatprep.mubr.f32.mxu0 0.0
      %5630 = vmatmul.mubr.f32.gmra.mrb[0].mxu0 %v5486
      %v5631 = vpop.f32.mrb[0].mxu0
      %v5632 = vpop.f32.mrb[0].mxu0
      %5633 = vmatprep.mubr.f32.mxu0 0.0
      %5634 = vmatmul.mubr.f32.gmra.mrb[0].mxu0 %v5488
      %v5635 = vpop.f32.mrb[0].mxu0
      %v5636 = vpop.f32.mrb[0].mxu0
      %5637 = vmatprep.mubr.f32.mxu0 0.0
      %5638 = vmatmul.mubr.f32.gmra.mrb[0].mxu0 %v5490
      %v5639 = vpop.f32.mrb[0].mxu0
      %v5640 = vadd.f32 %v5387, %v5639
      %v5641 = vpop.f32.mrb[0].mxu0
      %5642 = vmatprep.mubr.f32.mxu0 0.0
      %5643 = vmatmul.mubr.f32.gmra.mrb[0].mxu0 %v5492
      %v5644 = vpop.f32.mrb[0].mxu0
      %v5645 = vpop.f32.mrb[0].mxu0
      %5646 = vmatprep.mubr.f32.mxu0 0.0
      %5647 = vmatmul.mubr.f32.gmra.mrb[0].mxu0 %v5494
      %v5648 = vpop.f32.mrb[0].mxu0
      %v5649 = vpop.f32.mrb[0].mxu0
      %5650 = vmatprep.mubr.f32.mxu0 0.0
      %5651 = vmatmul.mubr.f32.gmra.mrb[0].mxu0 %v5496
      %v5652 = vpop.f32.mrb[0].mxu0
      %v5653 = vadd.f32 %v5387, %v5652
      %v5654 = vpop.f32.mrb[0].mxu0
      %5655 = vmatprep.mubr.f32.mxu0 0.0
      %5656 = vmatmul.mubr.f32.gmra.mrb[0].mxu0 %v5498
      %v5657 = vpop.f32.mrb[0].mxu0
      %v5658 = vpop.f32.mrb[0].mxu0
      %5659 = vmatprep.mubr.f32.mxu0 0.0
      %5660 = vmatmul.mubr.f32.gmra.mrb[0].mxu0 %v5500
      %v5661 = vpop.f32.mrb[0].mxu0
      %v5662 = vpop.f32.mrb[0].mxu0
      %5663 = vmatprep.mubr.f32.mxu0 0.0
      %5664 = vmatmul.mubr.f32.gmra.mrb[0].mxu0 %v5502
      %v5665 = vpop.f32.mrb[0].mxu0
      %v5666 = vadd.f32 %v5387, %v5665
      %v5667 = vpop.f32.mrb[0].mxu0
      %5668 = vmatprep.mubr.f32.mxu0 0.0
      %5669 = vmatmul.mubr.f32.gmra.mrb[0].mxu0 %v5504
      %v5670 = vpop.f32.mrb[0].mxu0
      %v5671 = vpop.f32.mrb[0].mxu0
      %5672 = vmatprep.mubr.f32.mxu0 0.0
      %5673 = vmatmul.mubr.f32.gmra.mrb[0].mxu0 %v5506
      %v5674 = vpop.f32.mrb[0].mxu0
      %v5675 = vpop.f32.mrb[0].mxu0
      %5676 = vdwg.mxu0
      %v5677 = vld [vmem:[%s1 + $0x98] sm:$0xff]
      %v5678 = vld [vmem:[%s1 + $0xa0] sm:$0xff]
      %v5679 = vld [vmem:[%s1 + $0xa8] sm:$0xff]
      %v5680 = vld [vmem:[%s1 + $0xb0] sm:$0xff]
      %v5681 = vld [vmem:[%s1 + $0xd0] sm:$0x1]
      %v5682 = vlaneseq
      %v5683 = vshrl.u32 %v5682, 7
      %v5684 = vsub.s32 0, %v5683
      %v5685 = vrot.slane %v5681, %v5684
      %5686 = vmatprep.subr.mxu0 0.0
      %5687 = vmatpush1.msra.mxu0 %v5677
      %5688 = vmatprep.subr.mxu0 0.0
      %5689 = vmatpush1.msra.mxu0 %v5678
      %5690 = vmatprep.subr.mxu0 0.0
      %5691 = vmatpush1.msra.mxu0 %v5679
      %5692 = vmatprep.subr.mxu0 0.0
      %5693 = vmatpush1.msra.mxu0 %v5680
      %5694 = vmatprep.subr.mxu0 0.0
      %5695 = vmatpush1.msra.mxu0 0.0
      %5696 = vmatprep.subr.mxu0 0.0
      %5697 = vmatpush1.msra.mxu0 0.0
      %5698 = vmatprep.subr.mxu0 0.0
      %5699 = vmatpush1.msra.mxu0 0.0
      %5700 = vmatprep.subr.mxu0 0.0
      %5701 = vmatpush1.msra.mxu0 0.0
      %5702 = vmatprep.subr.mxu0 0.0
      %5703 = vmatpush1.msra.mxu0 0.0
      %5704 = vmatprep.subr.mxu0 0.0
      %5705 = vmatpush1.msra.mxu0 0.0
      %5706 = vmatprep.subr.mxu0 0.0
      %5707 = vmatpush1.msra.mxu0 0.0
      %5708 = vmatprep.subr.mxu0 0.0
      %5709 = vmatpush1.msra.mxu0 0.0
      %5710 = vmatprep.subr.mxu0 0.0
      %5711 = vmatpush1.msra.mxu0 0.0
      %5712 = vmatprep.subr.mxu0 0.0
      %5713 = vmatpush1.msra.mxu0 0.0
      %5714 = vmatprep.subr.mxu0 0.0
      %5715 = vmatpush1.msra.mxu0 0.0
      %5716 = vmatprep.subr.mxu0 0.0
      %5717 = vmatpush1.msra.mxu0 0.0
      %5718 = vmatprep.subr.mxu0 0.0
      %5719 = vmatpush1.msra.mxu0 0.0
      %5720 = vmatprep.subr.mxu0 0.0
      %5721 = vmatpush1.msra.mxu0 0.0
      %5722 = vmatprep.subr.mxu0 0.0
      %5723 = vmatpush1.msra.mxu0 0.0
      %5724 = vmatprep.subr.mxu0 0.0
      %5725 = vmatpush1.msra.mxu0 0.0
      %5726 = vmatprep.subr.mxu0 0.0
      %5727 = vmatpush1.msra.mxu0 0.0
      %5728 = vmatprep.subr.mxu0 0.0
      %5729 = vmatpush1.msra.mxu0 0.0
      %5730 = vmatprep.subr.mxu0 0.0
      %5731 = vmatpush1.msra.mxu0 0.0
      %5732 = vmatprep.subr.mxu0 0.0
      %5733 = vmatpush1.msra.mxu0 0.0
      %5734 = vmatprep.subr.mxu0 0.0
      %5735 = vmatpush1.msra.mxu0 0.0
      %5736 = vmatprep.subr.mxu0 0.0
      %5737 = vmatpush1.msra.mxu0 0.0
      %5738 = vmatprep.subr.mxu0 0.0
      %5739 = vmatpush1.msra.mxu0 0.0
      %5740 = vmatprep.subr.mxu0 0.0
      %5741 = vmatpush1.msra.mxu0 0.0
      %5742 = vmatprep.subr.mxu0 0.0
      %5743 = vmatpush1.msra.mxu0 0.0
      %5744 = vmatprep.subr.mxu0 0.0
      %5745 = vmatpush1.msra.mxu0 0.0
      %5746 = vmatprep.subr.mxu0 0.0
      %5747 = vmatpush1.msra.mxu0 0.0
      %5748 = vmatprep.subr.mxu0 0.0
      %5749 = vmatpush1.msra.mxu0 0.0
      %5750 = vmatprep.mubr.f32.mxu0 0.0
      %5751 = vmatmul.mubr.f32.gmra.mrb[0].mxu0 %v5460
      %v5752 = vpop.f32.mrb[0].mxu0
      %v5753 = vpop.f32.mrb[0].mxu0
      %5754 = vmatprep.mubr.f32.mxu0 0.0
      %5755 = vmatmul.mubr.f32.gmra.mrb[0].mxu0 %v5462
      %v5756 = vpop.f32.mrb[0].mxu0
      %v5757 = vadd.f32 %v5685, %v5756
      %v5758 = vpop.f32.mrb[0].mxu0
      %5759 = vmatprep.mubr.f32.mxu0 0.0
      %5760 = vmatmul.mubr.f32.gmra.mrb[0].mxu0 %v5464
      %v5761 = vpop.f32.mrb[0].mxu0
      %v5762 = vadd.f32 %v5685, %v5761
      %v5763 = vpop.f32.mrb[0].mxu0
      %5764 = vmatprep.mubr.f32.mxu0 0.0
      %5765 = vmatmul.mubr.f32.gmra.mrb[0].mxu0 %v5466
      %v5766 = vpop.f32.mrb[0].mxu0
      %v5767 = vpop.f32.mrb[0].mxu0
      %5768 = vmatprep.mubr.f32.mxu0 0.0
      %5769 = vmatmul.mubr.f32.gmra.mrb[0].mxu0 %v5468
      %v5770 = vpop.f32.mrb[0].mxu0
      %v5771 = vadd.f32 %v5685, %v5770
      %v5772 = vpop.f32.mrb[0].mxu0
      %5773 = vmatprep.mubr.f32.mxu0 0.0
      %5774 = vmatmul.mubr.f32.gmra.mrb[0].mxu0 %v5470
      %v5775 = vpop.f32.mrb[0].mxu0
      %v5776 = vadd.f32 %v5685, %v5775
      %v5777 = vpop.f32.mrb[0].mxu0
      %5778 = vmatprep.mubr.f32.mxu0 0.0
      %5779 = vmatmul.mubr.f32.gmra.mrb[0].mxu0 %v5472
      %v5780 = vpop.f32.mrb[0].mxu0
      %v5781 = vpop.f32.mrb[0].mxu0
      %5782 = vmatprep.mubr.f32.mxu0 0.0
      %5783 = vmatmul.mubr.f32.gmra.mrb[0].mxu0 %v5474
      %v5784 = vpop.f32.mrb[0].mxu0
      %v5785 = vadd.f32 %v5685, %v5784
      %v5786 = vpop.f32.mrb[0].mxu0
      %5787 = vmatprep.mubr.f32.mxu0 0.0
      %5788 = vmatmul.mubr.f32.gmra.mrb[0].mxu0 %v5476
      %v5789 = vpop.f32.mrb[0].mxu0
      %v5790 = vadd.f32 %v5685, %v5789
      %v5791 = vpop.f32.mrb[0].mxu0
      %5792 = vmatprep.mubr.f32.mxu0 0.0
      %5793 = vmatmul.mubr.f32.gmra.mrb[0].mxu0 %v5478
      %v5794 = vpop.f32.mrb[0].mxu0
      %v5795 = vpop.f32.mrb[0].mxu0
      %5796 = vmatprep.mubr.f32.mxu0 0.0
      %5797 = vmatmul.mubr.f32.gmra.mrb[0].mxu0 %v5480
      %v5798 = vpop.f32.mrb[0].mxu0
      %v5799 = vadd.f32 %v5685, %v5798
      %v5800 = vpop.f32.mrb[0].mxu0
      %5801 = vmatprep.mubr.f32.mxu0 0.0
      %5802 = vmatmul.mubr.f32.gmra.mrb[0].mxu0 %v5482
      %v5803 = vpop.f32.mrb[0].mxu0
      %v5804 = vadd.f32 %v5685, %v5803
      %v5805 = vpop.f32.mrb[0].mxu0
      %5806 = vmatprep.mubr.f32.mxu0 0.0
      %5807 = vmatmul.mubr.f32.gmra.mrb[0].mxu0 %v5484
      %v5808 = vpop.f32.mrb[0].mxu0
      %v5809 = vpop.f32.mrb[0].mxu0
      %5810 = vmatprep.mubr.f32.mxu0 0.0
      %5811 = vmatmul.mubr.f32.gmra.mrb[0].mxu0 %v5486
      %v5812 = vpop.f32.mrb[0].mxu0
      %v5813 = vadd.f32 %v5685, %v5812
      %v5814 = vpop.f32.mrb[0].mxu0
      %5815 = vmatprep.mubr.f32.mxu0 0.0
      %5816 = vmatmul.mubr.f32.gmra.mrb[0].mxu0 %v5488
      %v5817 = vpop.f32.mrb[0].mxu0
      %v5818 = vadd.f32 %v5685, %v5817
      %v5819 = vpop.f32.mrb[0].mxu0
      %5820 = vmatprep.mubr.f32.mxu0 0.0
      %5821 = vmatmul.mubr.f32.gmra.mrb[0].mxu0 %v5490
      %v5822 = vpop.f32.mrb[0].mxu0
      %v5823 = vpop.f32.mrb[0].mxu0
      %5824 = vmatprep.mubr.f32.mxu0 0.0
      %5825 = vmatmul.mubr.f32.gmra.mrb[0].mxu0 %v5492
      %v5826 = vpop.f32.mrb[0].mxu0
      %v5827 = vadd.f32 %v5685, %v5826
      %v5828 = vpop.f32.mrb[0].mxu0
      %5829 = vmatprep.mubr.f32.mxu0 0.0
      %5830 = vmatmul.mubr.f32.gmra.mrb[0].mxu0 %v5494
      %v5831 = vpop.f32.mrb[0].mxu0
      %v5832 = vadd.f32 %v5685, %v5831
      %v5833 = vpop.f32.mrb[0].mxu0
      %5834 = vmatprep.mubr.f32.mxu0 0.0
      %5835 = vmatmul.mubr.f32.gmra.mrb[0].mxu0 %v5496
      %v5836 = vpop.f32.mrb[0].mxu0
      %v5837 = vpop.f32.mrb[0].mxu0
      %5838 = vmatprep.mubr.f32.mxu0 0.0
      %5839 = vmatmul.mubr.f32.gmra.mrb[0].mxu0 %v5498
      %v5840 = vpop.f32.mrb[0].mxu0
      %v5841 = vadd.f32 %v5685, %v5840
      %v5842 = vpop.f32.mrb[0].mxu0
      %5843 = vmatprep.mubr.f32.mxu0 0.0
      %5844 = vmatmul.mubr.f32.gmra.mrb[0].mxu0 %v5500
      %v5845 = vpop.f32.mrb[0].mxu0
      %v5846 = vadd.f32 %v5685, %v5845
      %v5847 = vpop.f32.mrb[0].mxu0
      %5848 = vmatprep.mubr.f32.mxu0 0.0
      %5849 = vmatmul.mubr.f32.gmra.mrb[0].mxu0 %v5502
      %v5850 = vpop.f32.mrb[0].mxu0
      %v5851 = vpop.f32.mrb[0].mxu0
      %5852 = vmatprep.mubr.f32.mxu0 0.0
      %5853 = vmatmul.mubr.f32.gmra.mrb[0].mxu0 %v5504
      %v5854 = vpop.f32.mrb[0].mxu0
      %v5855 = vadd.f32 %v5685, %v5854
      %v5856 = vpop.f32.mrb[0].mxu0
      %5857 = vmatprep.mubr.f32.mxu0 0.0
      %5858 = vmatmul.mubr.f32.gmra.mrb[0].mxu0 %v5506
      %v5859 = vpop.f32.mrb[0].mxu0
      %v5860 = vadd.f32 %v5685, %v5859
      %v5861 = vpop.f32.mrb[0].mxu0
      %5862 = vdwg.mxu0
      %v5863 = vadd.f32 %v5575, %v5757
      %v5864 = vadd.f32 %v5588, %v5771
      %v5865 = vadd.f32 %v5601, %v5785
      %v5866 = vadd.f32 %v5614, %v5799
      %v5867 = vadd.f32 %v5627, %v5813
      %v5868 = vadd.f32 %v5640, %v5827
      %v5869 = vadd.f32 %v5653, %v5841
      %v5870 = vadd.f32 %v5666, %v5855
      %v5871 = vmax.f32 %v5863, 0.0
      %v5872 = vmax.f32 %v5864, 0.0
      %v5873 = vmax.f32 %v5865, 0.0
      %v5874 = vmax.f32 %v5866, 0.0
      %v5875 = vmax.f32 %v5867, 0.0
      %v5876 = vmax.f32 %v5868, 0.0
      %v5877 = vmax.f32 %v5869, 0.0
      %v5878 = vmax.f32 %v5870, 0.0
      %v5879 = vadd.f32 %v5575, %v5762
      %v5880 = vadd.f32 %v5588, %v5776
      %v5881 = vadd.f32 %v5601, %v5790
      %v5882 = vadd.f32 %v5614, %v5804
      %v5883 = vadd.f32 %v5627, %v5818
      %v5884 = vadd.f32 %v5640, %v5832
      %v5885 = vadd.f32 %v5653, %v5846
      %v5886 = vadd.f32 %v5666, %v5860
      %v5887 = vmax.f32 %v5879, 0.0
      %v5888 = vmax.f32 %v5880, 0.0
      %v5889 = vmax.f32 %v5881, 0.0
      %v5890 = vmax.f32 %v5882, 0.0
      %v5891 = vmax.f32 %v5883, 0.0
      %v5892 = vmax.f32 %v5884, 0.0
      %v5893 = vmax.f32 %v5885, 0.0
      %v5894 = vmax.f32 %v5886, 0.0
      %v5895 = vld [vmem:[%s1 + $0xd1] sm:$0x1]
      %v5896 = vld [vmem:[%s1 + $0xd2] sm:$0x1]
      %v5897 = vlaneseq
      %v5898 = vshrl.u32 %v5897, 7
      %v5899 = vsub.s32 0, %v5898
      %v5900 = vrot.slane %v5895, %v5899
      %v5901 = vmul.f32 %v5871, %v5900
      %v5902 = vmul.f32 %v5872, %v5900
      %v5903 = vmul.f32 %v5873, %v5900
      %v5904 = vmul.f32 %v5874, %v5900
      %v5905 = vmul.f32 %v5875, %v5900
      %v5906 = vmul.f32 %v5876, %v5900
      %v5907 = vmul.f32 %v5877, %v5900
      %v5908 = vmul.f32 %v5878, %v5900
      %v5909 = vsel %vm3441, %v5901, 0.0
      %5910 = vadd.xlane.f32.xlu0 %v5909
      %v5911 = vpop.xlane.xlu0 %5910
      %v5912 = vsel %vm3441, %v5902, 0.0
      %5913 = vadd.xlane.f32.xlu0 %v5912
      %v5914 = vpop.xlane.xlu0 %5913
      %v5915 = vsel %vm3441, %v5903, 0.0
      %5916 = vadd.xlane.f32.xlu0 %v5915
      %v5917 = vpop.xlane.xlu0 %5916
      %v5918 = vsel %vm3441, %v5904, 0.0
      %5919 = vadd.xlane.f32.xlu0 %v5918
      %v5920 = vpop.xlane.xlu0 %5919
      %v5921 = vsel %vm3441, %v5905, 0.0
      %5922 = vadd.xlane.f32.xlu0 %v5921
      %v5923 = vpop.xlane.xlu0 %5922
      %v5924 = vsel %vm3441, %v5906, 0.0
      %5925 = vadd.xlane.f32.xlu0 %v5924
      %v5926 = vpop.xlane.xlu0 %5925
      %v5927 = vsel %vm3441, %v5907, 0.0
      %5928 = vadd.xlane.f32.xlu0 %v5927
      %v5929 = vpop.xlane.xlu0 %5928
      %v5930 = vsel %vm3441, %v5908, 0.0
      %5931 = vadd.xlane.f32.xlu0 %v5930
      %v5932 = vpop.xlane.xlu0 %5931
      %s5934 = vtos %v5896
      %v5935 = vstv %s5934
      %v5937 = vadd.f32 %v5911, %v5935
      %v5938 = vadd.f32 %v5914, %v5935
      %v5939 = vadd.f32 %v5917, %v5935
      %v5940 = vadd.f32 %v5920, %v5935
      %v5941 = vadd.f32 %v5923, %v5935
      %v5942 = vadd.f32 %v5926, %v5935
      %v5943 = vadd.f32 %v5929, %v5935
      %v5944 = vadd.f32 %v5932, %v5935
      %v5945 = vmul.f32 %v5887, %v5900
      %v5946 = vmul.f32 %v5888, %v5900
      %v5947 = vmul.f32 %v5889, %v5900
      %v5948 = vmul.f32 %v5890, %v5900
      %v5949 = vmul.f32 %v5891, %v5900
      %v5950 = vmul.f32 %v5892, %v5900
      %v5951 = vmul.f32 %v5893, %v5900
      %v5952 = vmul.f32 %v5894, %v5900
      %v5953 = vsel %vm3441, %v5945, 0.0
      %5954 = vadd.xlane.f32.xlu0 %v5953
      %v5955 = vpop.xlane.xlu0 %5954
      %v5956 = vsel %vm3441, %v5946, 0.0
      %5957 = vadd.xlane.f32.xlu0 %v5956
      %v5958 = vpop.xlane.xlu0 %5957
      %v5959 = vsel %vm3441, %v5947, 0.0
      %5960 = vadd.xlane.f32.xlu0 %v5959
      %v5961 = vpop.xlane.xlu0 %5960
      %v5962 = vsel %vm3441, %v5948, 0.0
      %5963 = vadd.xlane.f32.xlu0 %v5962
      %v5964 = vpop.xlane.xlu0 %5963
      %v5965 = vsel %vm3441, %v5949, 0.0
      %5966 = vadd.xlane.f32.xlu0 %v5965
      %v5967 = vpop.xlane.xlu0 %5966
      %v5968 = vsel %vm3441, %v5950, 0.0
      %5969 = vadd.xlane.f32.xlu0 %v5968
      %v5970 = vpop.xlane.xlu0 %5969
      %v5971 = vsel %vm3441, %v5951, 0.0
      %5972 = vadd.xlane.f32.xlu0 %v5971
      %v5973 = vpop.xlane.xlu0 %5972
      %v5974 = vsel %vm3441, %v5952, 0.0
      %5975 = vadd.xlane.f32.xlu0 %v5974
      %v5976 = vpop.xlane.xlu0 %5975
      %v5977 = vadd.f32 %v5955, %v5935
      %v5978 = vadd.f32 %v5958, %v5935
      %v5979 = vadd.f32 %v5961, %v5935
      %v5980 = vadd.f32 %v5964, %v5935
      %v5981 = vadd.f32 %v5967, %v5935
      %v5982 = vadd.f32 %v5970, %v5935
      %v5983 = vadd.f32 %v5973, %v5935
      %v5984 = vadd.f32 %v5976, %v5935
      %v5993 = vlaneseq
      %v5994 = vand.u32 %v5993, 127
      %v5995 = vlaneseq
      %v5996 = vshrl.u32 %v5995, 7
      %v5997 = vsub.s32 %v5994, %v5996
      %v5998 = vrot.slane %v5937, %v5997
      %v5999 = vlaneseq
      %v6000 = vshrl.u32 %v5999, 7
      %v6001 = vsub.s32 %v5994, %v6000
      %v6002 = vrot.slane %v5938, %v6001
      %v6003 = vlaneseq
      %v6004 = vshrl.u32 %v6003, 7
      %v6005 = vsub.s32 %v5994, %v6004
      %v6006 = vrot.slane %v5939, %v6005
      %v6007 = vlaneseq
      %v6008 = vshrl.u32 %v6007, 7
      %v6009 = vsub.s32 %v5994, %v6008
      %v6010 = vrot.slane %v5940, %v6009
      %v6011 = vlaneseq
      %v6012 = vshrl.u32 %v6011, 7
      %v6013 = vsub.s32 %v5994, %v6012
      %v6014 = vrot.slane %v5941, %v6013
      %v6015 = vlaneseq
      %v6016 = vshrl.u32 %v6015, 7
      %v6017 = vsub.s32 %v5994, %v6016
      %v6018 = vrot.slane %v5942, %v6017
      %v6019 = vlaneseq
      %v6020 = vshrl.u32 %v6019, 7
      %v6021 = vsub.s32 %v5994, %v6020
      %v6022 = vrot.slane %v5943, %v6021
      %v6023 = vlaneseq
      %v6024 = vshrl.u32 %v6023, 7
      %v6025 = vsub.s32 %v5994, %v6024
      %v6026 = vrot.slane %v5944, %v6025
      %vm6027 = vcmask 1041409
      %v6028 = vsel %vm6027, %v6002, %v5998
      %vm6029 = vcmask 1042434
      %v6030 = vsel %vm6029, %v6006, %v6028
      %vm6031 = vcmask 1043459
      %v6032 = vsel %vm6031, %v6010, %v6030
      %vm6033 = vcmask 1044484
      %v6034 = vsel %vm6033, %v6014, %v6032
      %vm6035 = vcmask 1045509
      %v6036 = vsel %vm6035, %v6018, %v6034
      %vm6037 = vcmask 1046534
      %v6038 = vsel %vm6037, %v6022, %v6036
      %vm6039 = vcmask 1047559
      %v6040 = vsel %vm6039, %v6026, %v6038
      %v6050 = vadd.s32 %v5994, 4294967288
      %v6051 = vlaneseq
      %v6052 = vshrl.u32 %v6051, 7
      %v6053 = vsub.s32 %v6050, %v6052
      %v6054 = vrot.slane %v5977, %v6053
      %v6055 = vlaneseq
      %v6056 = vshrl.u32 %v6055, 7
      %v6057 = vsub.s32 %v6050, %v6056
      %v6058 = vrot.slane %v5978, %v6057
      %v6059 = vlaneseq
      %v6060 = vshrl.u32 %v6059, 7
      %v6061 = vsub.s32 %v6050, %v6060
      %v6062 = vrot.slane %v5979, %v6061
      %v6063 = vlaneseq
      %v6064 = vshrl.u32 %v6063, 7
      %v6065 = vsub.s32 %v6050, %v6064
      %v6066 = vrot.slane %v5980, %v6065
      %v6067 = vlaneseq
      %v6068 = vshrl.u32 %v6067, 7
      %v6069 = vsub.s32 %v6050, %v6068
      %v6070 = vrot.slane %v5981, %v6069
      %v6071 = vlaneseq
      %v6072 = vshrl.u32 %v6071, 7
      %v6073 = vsub.s32 %v6050, %v6072
      %v6074 = vrot.slane %v5982, %v6073
      %v6075 = vlaneseq
      %v6076 = vshrl.u32 %v6075, 7
      %v6077 = vsub.s32 %v6050, %v6076
      %v6078 = vrot.slane %v5983, %v6077
      %v6079 = vlaneseq
      %v6080 = vshrl.u32 %v6079, 7
      %v6081 = vsub.s32 %v6050, %v6080
      %v6082 = vrot.slane %v5984, %v6081
      %v6083 = vsel %vm6027, %v6058, %v6054
      %v6084 = vsel %vm6029, %v6062, %v6083
      %v6085 = vsel %vm6031, %v6066, %v6084
      %v6086 = vsel %vm6033, %v6070, %v6085
      %v6087 = vsel %vm6035, %v6074, %v6086
      %v6088 = vsel %vm6037, %v6078, %v6087
      %v6089 = vsel %vm6039, %v6082, %v6088
      %vm6091 = vcmask 64512
      %v6092 = vsel %vm6091, %v6040, %v6089
      %6093 = vst.msk [vmem:[%s146] sm:$0xff] %vm4421, %v6092
      %p6094 = scmp.lt.s32.totalorder %s13, 7
      %s6095 = scalar_select %p6094, %s13, 7
      %s6096 = smul.addr %s6095, 8
      %s6097 = scalar_lea.vmem %s2, %s6096
      // Predicated region
      $region29: #{general_model_forward.1} parent=27 // pred_check
        %p6098 = pneg %p78
      $region30: #{general_model_forward.1} parent=27 // pred_check_branch
        %6100 = sbr.rel (%p6098) target = $region32
      $region31: #{general_model_forward.1} parent=27 // pred_region
        _
      $region32: #{general_model_forward.1} parent=27 // pred_fallthru
        _
    $region28: #{general_model_forward.1} parent=5 // pred_fallthru
      _
    %p6101 = scmp.le.s32.totalorder 2, %s8
    // Predicated region
    $region33: #{general_model_forward.1} parent=5 // pred_check
      %p6102 = pneg %p6101
    $region34: #{general_model_forward.1} parent=5 // pred_check_branch
      %6104 = sbr.rel (%p6102) target = $region36
    $region35: #{general_model_forward.1} parent=5 // pred_region
      %s6105 = ssub.s32 %s8, 2
      // Predicated region
      $region37: #{general_model_forward.1} parent=35 // pred_check
        %p6106 = pneg %p84
      $region38: #{general_model_forward.1} parent=35 // pred_check_branch
        %6108 = sbr.rel (%p6106) target = $region40
      $region39: #{general_model_forward.1} parent=35 // pred_region
        %p6109 = scmp.lt.s32.totalorder %s14, 7
        %s6110 = scalar_select %p6109, %s14, 7
        %s6111 = smul.addr %s6110, 8
        %s6112 = scalar_lea.vmem %s2, %s6111
      $region40: #{general_model_forward.1} parent=35 // pred_fallthru
        _
    $region36: #{general_model_forward.1} parent=5 // pred_fallthru
      _
  $region6: #{general_model_forward.1} parent=0 // loop_footer
    %s12 = sadd.s32 1, %s8
  $region7: #{general_model_forward.1} parent=0 // loop_footer_branch
    %7 = sbr.rel target = $region3
  $region8: #{general_model_forward.1} parent=0 // loop_exit
    _

</llo_original>
